<compile_context>
chip_gen: v7x
topology: tpu7x:2x2x1
jax: 0.10.0
libtpu: 0.0.40
codegen_flags: <defaults>
</compile_context>

<pallas_src>
import math
from functools import partial

import jax
import jax.numpy as jnp
from jax import lax
from jax.experimental import pallas as pl
from jax.experimental.pallas import tpu as pltpu

INPUT_SIZE = 4
HIDDEN_SIZE = 64
NUM_LAYERS = 2
FC_HIDDEN = 32

HP = 128            # padded per-gate width (one 128-lane vreg tile)
G4 = 4 * HP         # padded stacked-gate width (i|f|g|o, each 128 lanes)
FCHP = 128          # padded fc hidden width
OUTP = 128          # padded output lane width (lane-dense store)
BP_MIN = 8          # sublane-full batch tile


def predictor_kernel(x_ref,      # [T*BP, F]    bf16, time-major, batch-padded
                     wih0_ref,   # [F, G4]      bf16 (gate-padded cols)
                     whh0_ref,   # [HP, G4]     bf16 (zero rows H:HP)
                     b0_ref,     # [1, G4]      f32  (b_ih0 + b_hh0, gate-padded)
                     w1_ref,     # [2*HP, G4]   bf16 ([W_ih1; W_hh1] stacked)
                     b1_ref,     # [1, G4]      f32
                     wfc1_ref,   # [HP, FCHP]   bf16
                     bfc1_ref,   # [1, FCHP]    f32
                     wfc2_ref,   # [FCHP, OUTP] bf16 (zero cols F:OUTP)
                     bfc2_ref,   # [1, OUTP]    f32
                     out_ref,    # [BP, OUTP]   f32  (lane-dense; wrapper slices)
                     xw0_ref):   # scratch [T*BP, G4] f32
    BP = out_ref.shape[0]
    TBP = x_ref.shape[0]
    T = TBP // BP
    G4k = b0_ref.shape[1]
    HPk = G4k // 4

    # ---- hoisted layer-0 input projection: one matmul for ALL timesteps ----
    xw0_ref[...] = (jnp.dot(x_ref[...], wih0_ref[...],
                            preferred_element_type=jnp.float32)
                    + b0_ref[...])

    whh0 = whh0_ref[...]
    w1 = w1_ref[...]
    # pre-broadcast fused layer-1 bias once (JAX does not CSE broadcast_in_dim)
    b1b = jnp.broadcast_to(b1_ref[...], (BP, G4k))

    def gates_to_hc(gates, c):
        # 128-lane-aligned full-vreg slices; padded lanes stay exactly zero:
        # i=f=o=sigmoid(0)=0.5, g=tanh(0)=0 -> c_pad=0.5*c_pad(=0), h_pad=0.
        i = jax.nn.sigmoid(gates[:, 0 * HPk:1 * HPk])
        f = jax.nn.sigmoid(gates[:, 1 * HPk:2 * HPk])
        g = jnp.tanh(gates[:, 2 * HPk:3 * HPk])
        o = jax.nn.sigmoid(gates[:, 3 * HPk:4 * HPk])
        c_new = f * c + i * g
        h_new = o * jnp.tanh(c_new)
        return h_new, c_new

    def body(t, carry):
        h0, c0, h1, c1 = carry
        row = pl.multiple_of(t * BP, BP)
        # layer 0: only the recurrent matmul is on the serial chain now
        g0 = xw0_ref[pl.ds(row, BP), :] + jnp.dot(
            h0.astype(jnp.bfloat16), whh0, preferred_element_type=jnp.float32)
        h0, c0 = gates_to_hc(g0, c0)
        # layer 1: fused input+recurrent matmul, K = 2*HP = 256
        h01 = jnp.concatenate([h0, h1], axis=1).astype(jnp.bfloat16)
        g1 = jnp.dot(h01, w1, preferred_element_type=jnp.float32) + b1b
        h1, c1 = gates_to_hc(g1, c1)
        return h0, c0, h1, c1

    z = jnp.zeros((BP, HPk), jnp.float32)
    _, _, h1, _ = lax.fori_loop(0, T, body, (z, z, z, z), unroll=True)

    # dropout(0.2) / dropout(0.1) -> identity in eval mode
    # fc head: Linear(H,32) -> ReLU -> Linear(32,F)  (padded to 128-lane tiles)
    z1 = jnp.dot(h1.astype(jnp.bfloat16), wfc1_ref[...],
                 preferred_element_type=jnp.float32) + bfc1_ref[...]
    z1 = jnp.maximum(z1, 0.0)
    y = jnp.dot(z1.astype(jnp.bfloat16), wfc2_ref[...],
                preferred_element_type=jnp.float32) + bfc2_ref[...]
    out_ref[...] = y.astype(out_ref.dtype)       # lane-dense (128) unmasked store


def _gate_pad_cols(w_t, H):
    """[in, 4H] (gates i|f|g|o each H wide) -> [in, 4*HP], each gate placed in
    the first H lanes of its own 128-lane block; padded lanes are zero."""
    parts = []
    for g in range(4):
        blk = w_t[:, g * H:(g + 1) * H]
        parts.append(jnp.pad(blk, ((0, 0), (0, HP - H))))
    return jnp.concatenate(parts, axis=1)


def init_params(key, input_size=INPUT_SIZE, hidden_size=HIDDEN_SIZE):
    """Deterministic parameter init mirroring PyTorch default uniform init."""
    ks = jax.random.split(key, 16)
    klstm = 1.0 / math.sqrt(hidden_size)

    def u(k, shape, bound):
        return jax.random.uniform(k, shape, jnp.float32, -bound, bound)

    p = {}
    # LSTM layer 0
    p["w_ih0"] = u(ks[0], (4 * hidden_size, input_size), klstm)
    p["w_hh0"] = u(ks[1], (4 * hidden_size, hidden_size), klstm)
    p["b_ih0"] = u(ks[2], (4 * hidden_size,), klstm)
    p["b_hh0"] = u(ks[3], (4 * hidden_size,), klstm)
    # LSTM layer 1
    p["w_ih1"] = u(ks[4], (4 * hidden_size, hidden_size), klstm)
    p["w_hh1"] = u(ks[5], (4 * hidden_size, hidden_size), klstm)
    p["b_ih1"] = u(ks[6], (4 * hidden_size,), klstm)
    p["b_hh1"] = u(ks[7], (4 * hidden_size,), klstm)
    # fc head
    kfc1 = 1.0 / math.sqrt(hidden_size)
    kfc2 = 1.0 / math.sqrt(FC_HIDDEN)
    p["w_fc1"] = u(ks[8], (FC_HIDDEN, hidden_size), kfc1)
    p["b_fc1"] = u(ks[9], (FC_HIDDEN,), kfc1)
    p["w_fc2"] = u(ks[10], (input_size, FC_HIDDEN), kfc2)
    p["b_fc2"] = u(ks[11], (input_size,), kfc2)
    return p


@partial(jax.jit, static_argnames=())
def deep_system_predictor(x, p):
    """x: [B, T, F] float32 -> [B, F] float32."""
    B, T, F = x.shape
    H = p["w_hh0"].shape[1]
    BP = max(BP_MIN, ((B + 7) // 8) * 8)          # sublane-full batch tile

    # time-major, batch padded with zero rows, flattened for the hoisted matmul
    x_tm = jnp.transpose(x, (1, 0, 2)).astype(jnp.float32)        # [T, B, F]
    x_tm = jnp.pad(x_tm, ((0, 0), (0, BP - B), (0, 0)))           # [T, BP, F]
    x_flat = x_tm.reshape(T * BP, F).astype(jnp.bfloat16)         # [T*BP, F]

    # ---- layer 0 weights: gate-padded columns, bf16 matmul operands ----
    wih0 = _gate_pad_cols(p["w_ih0"].T, H).astype(jnp.bfloat16)               # [F, G4]
    whh0 = jnp.zeros((HP, G4), jnp.float32).at[:H].set(
        _gate_pad_cols(p["w_hh0"].T, H)).astype(jnp.bfloat16)                 # [HP, G4]
    b0 = _gate_pad_cols((p["b_ih0"] + p["b_hh0"]).reshape(1, 4 * H), H)       # [1, G4]

    # ---- layer 1: stacked [W_ih1; W_hh1] for the fused [h0|h1] matmul ----
    w1 = jnp.zeros((2 * HP, G4), jnp.float32)
    w1 = w1.at[:H].set(_gate_pad_cols(p["w_ih1"].T, H))
    w1 = w1.at[HP:HP + H].set(_gate_pad_cols(p["w_hh1"].T, H))
    w1 = w1.astype(jnp.bfloat16)                                              # [2HP, G4]
    b1 = _gate_pad_cols((p["b_ih1"] + p["b_hh1"]).reshape(1, 4 * H), H)       # [1, G4]

    # ---- fc head, padded to 128-lane-dense tiles (zero pad rows/cols) ----
    wfc1 = jnp.zeros((HP, FCHP), jnp.float32).at[:H, :FC_HIDDEN].set(p["w_fc1"].T)
    wfc1 = wfc1.astype(jnp.bfloat16)                                          # [HP, FCHP]
    bfc1 = jnp.zeros((1, FCHP), jnp.float32).at[:, :FC_HIDDEN].set(
        p["b_fc1"].reshape(1, -1))
    wfc2 = jnp.zeros((FCHP, OUTP), jnp.float32).at[:FC_HIDDEN, :F].set(p["w_fc2"].T)
    wfc2 = wfc2.astype(jnp.bfloat16)                                          # [FCHP, OUTP]
    bfc2 = jnp.zeros((1, OUTP), jnp.float32).at[:, :F].set(
        p["b_fc2"].reshape(1, F))

    vmem = pl.BlockSpec(memory_space=pltpu.MemorySpace.VMEM)
    out = pl.pallas_call(
        predictor_kernel,
        out_shape=jax.ShapeDtypeStruct((BP, OUTP), jnp.float32),
        in_specs=[vmem] * 10,
        out_specs=vmem,
        scratch_shapes=[pltpu.VMEM((T * BP, G4), jnp.float32)],
    )(x_flat, wih0, whh0, b0, w1, b1, wfc1, bfc1, wfc2, bfc2)
    return out[:B, :F]


def reference_forward(x, p):
    """Pure-JAX reference matching torch semantics (eval mode, f32)."""
    B, T, F = x.shape
    H = p["w_hh0"].shape[1]

    def cell(x_t, h, c, w_ih, w_hh, b_ih, b_hh):
        gates = x_t @ w_ih.T + b_ih + h @ w_hh.T + b_hh
        i, f, g, o = jnp.split(gates, 4, axis=-1)
        i, f, o = jax.nn.sigmoid(i), jax.nn.sigmoid(f), jax.nn.sigmoid(o)
        g = jnp.tanh(g)
        c_new = f * c + i * g
        return o * jnp.tanh(c_new), c_new

    h0 = c0 = h1 = c1 = jnp.zeros((B, H), jnp.float32)
    for t in range(T):
        h0, c0 = cell(x[:, t, :], h0, c0, p["w_ih0"], p["w_hh0"], p["b_ih0"], p["b_hh0"])
        h1, c1 = cell(h0, h1, c1, p["w_ih1"], p["w_hh1"], p["b_ih1"], p["b_hh1"])
    z = jnp.maximum(h1 @ p["w_fc1"].T + p["b_fc1"], 0.0)
    return z @ p["w_fc2"].T + p["b_fc2"]


if __name__ == "__main__":
    key = jax.random.PRNGKey(0)
    kx, kp = jax.random.split(key)

    B, T = 2, 8
    x = jax.random.normal(kx, (B, T, INPUT_SIZE), jnp.float32)
    params = init_params(kp)

    out = deep_system_predictor(x, params)
    out = jax.block_until_ready(out)

    ref = reference_forward(x, params)
    assert out.shape == (B, INPUT_SIZE)
    # bf16 matmul operands (f32 accumulate) vs f32 reference -> loosened tol
    assert jnp.allclose(out, ref, atol=5e-2, rtol=5e-2), "mismatch vs JAX reference"

    print("KERNEL_OK")
</pallas_src>

<mosaic_0001>
module attributes {stable_mosaic.version = 11 : i64} {
  func.func @predictor_kernel(%arg0: memref<64x4xbf16, #tpu.memory_space<vmem>>, %arg1: memref<4x512xbf16, #tpu.memory_space<vmem>>, %arg2: memref<128x512xbf16, #tpu.memory_space<vmem>>, %arg3: memref<1x512xf32, #tpu.memory_space<vmem>>, %arg4: memref<256x512xbf16, #tpu.memory_space<vmem>>, %arg5: memref<1x512xf32, #tpu.memory_space<vmem>>, %arg6: memref<128x128xbf16, #tpu.memory_space<vmem>>, %arg7: memref<1x128xf32, #tpu.memory_space<vmem>>, %arg8: memref<128x128xbf16, #tpu.memory_space<vmem>>, %arg9: memref<1x128xf32, #tpu.memory_space<vmem>>, %arg10: memref<8x128xf32, #tpu.memory_space<vmem>>, %arg11: memref<64x512xf32, #tpu.memory_space<vmem>>) attributes {dimension_semantics = [], scalar_prefetch = 0 : i64, scratch_operands = 1 : i64, tpu.core_type = #tpu.core_type<tc>} {
    %c0 = arith.constant 0 : index
    %c0_0 = arith.constant 0 : index
    %0 = vector.load %arg0[%c0, %c0_0] : memref<64x4xbf16, #tpu.memory_space<vmem>>, vector<64x4xbf16>
    %c0_1 = arith.constant 0 : index
    %c0_2 = arith.constant 0 : index
    %1 = vector.load %arg1[%c0_1, %c0_2] : memref<4x512xbf16, #tpu.memory_space<vmem>>, vector<4x512xbf16>
    %cst = arith.constant dense<0.000000e+00> : vector<64x512xf32>
    %2 = tpu.matmul %0, %1, %cst {dimension_numbers = #tpu.dot_dimension_numbers<[1], [0], [0], [1], [0, 0, 1, 1], [], []>} : vector<64x4xbf16>, vector<4x512xbf16>, vector<64x512xf32> -> vector<64x512xf32>
    %c0_3 = arith.constant 0 : index
    %c0_4 = arith.constant 0 : index
    %3 = vector.load %arg3[%c0_3, %c0_4] : memref<1x512xf32, #tpu.memory_space<vmem>>, vector<1x512xf32>
    %4 = vector.broadcast %3 : vector<1x512xf32> to vector<64x512xf32>
    %5 = arith.addf %2, %4 : vector<64x512xf32>
    %c0_5 = arith.constant 0 : index
    %c0_6 = arith.constant 0 : index
    %6 = vector.load %arg11[%c0_5, %c0_6] : memref<64x512xf32, #tpu.memory_space<vmem>>, vector<64x512xf32>
    tpu.vector_store %arg11[%c0_5, %c0_6], %5 {strides = array<i32>} : memref<64x512xf32, #tpu.memory_space<vmem>>, vector<64x512xf32>,
    %c0_7 = arith.constant 0 : index
    %c0_8 = arith.constant 0 : index
    %7 = vector.load %arg2[%c0_7, %c0_8] : memref<128x512xbf16, #tpu.memory_space<vmem>>, vector<128x512xbf16>
    %c0_9 = arith.constant 0 : index
    %c0_10 = arith.constant 0 : index
    %8 = vector.load %arg4[%c0_9, %c0_10] : memref<256x512xbf16, #tpu.memory_space<vmem>>, vector<256x512xbf16>
    %c0_11 = arith.constant 0 : index
    %c0_12 = arith.constant 0 : index
    %9 = vector.load %arg5[%c0_11, %c0_12] : memref<1x512xf32, #tpu.memory_space<vmem>>, vector<1x512xf32>
    %10 = vector.shape_cast %9 : vector<1x512xf32> to vector<1x512xf32>
    %11 = vector.broadcast %10 : vector<1x512xf32> to vector<8x512xf32>
    %cst_13 = arith.constant 0.000000e+00 : f32
    %12 = vector.broadcast %cst_13 : f32 to vector<8x128xf32>
    %c0_i32 = arith.constant 0 : i32
    %c8_i32 = arith.constant 8 : i32
    %13 = arith.muli %c0_i32, %c8_i32 : i32
    %14 = tpu.assume_multiple %13, 8 : i32
    %15 = arith.index_cast %14 : i32 to index
    %c0_14 = arith.constant 0 : index
    %16 = vector.load %arg11[%15, %c0_14] : memref<64x512xf32, #tpu.memory_space<vmem>>, vector<8x512xf32>
    %17 = arith.truncf %12 : vector<8x128xf32> to vector<8x128xbf16>
    %cst_15 = arith.constant dense<0.000000e+00> : vector<8x512xf32>
    %18 = tpu.matmul %17, %7, %cst_15 {dimension_numbers = #tpu.dot_dimension_numbers<[1], [0], [0], [1], [0, 0, 1, 1], [], []>} : vector<8x128xbf16>, vector<128x512xbf16>, vector<8x512xf32> -> vector<8x512xf32>
    %19 = arith.addf %16, %18 : vector<8x512xf32>
    %20 = vector.extract_strided_slice %19 {offsets = [0, 0], sizes = [8, 128], strides = [1, 1]} : vector<8x512xf32> to vector<8x128xf32>
    %21 = arith.negf %20 : vector<8x128xf32>
    %22 = math.exp %21 : vector<8x128xf32>
    %cst_16 = arith.constant 1.000000e+00 : f32
    %23 = vector.broadcast %cst_16 : f32 to vector<8x128xf32>
    %24 = arith.addf %23, %22 : vector<8x128xf32>
    %25 = arith.divf %23, %24 : vector<8x128xf32>
    %26 = vector.extract_strided_slice %19 {offsets = [0, 128], sizes = [8, 128], strides = [1, 1]} : vector<8x512xf32> to vector<8x128xf32>
    %27 = arith.negf %26 : vector<8x128xf32>
    %28 = math.exp %27 : vector<8x128xf32>
    %cst_17 = arith.constant 1.000000e+00 : f32
    %29 = vector.broadcast %cst_17 : f32 to vector<8x128xf32>
    %30 = arith.addf %29, %28 : vector<8x128xf32>
    %31 = arith.divf %29, %30 : vector<8x128xf32>
    %32 = vector.extract_strided_slice %19 {offsets = [0, 256], sizes = [8, 128], strides = [1, 1]} : vector<8x512xf32> to vector<8x128xf32>
    %33 = math.tanh %32 : vector<8x128xf32>
    %34 = vector.extract_strided_slice %19 {offsets = [0, 384], sizes = [8, 128], strides = [1, 1]} : vector<8x512xf32> to vector<8x128xf32>
    %35 = arith.negf %34 : vector<8x128xf32>
    %36 = math.exp %35 : vector<8x128xf32>
    %cst_18 = arith.constant 1.000000e+00 : f32
    %37 = vector.broadcast %cst_18 : f32 to vector<8x128xf32>
    %38 = arith.addf %37, %36 : vector<8x128xf32>
    %39 = arith.divf %37, %38 : vector<8x128xf32>
    %40 = arith.mulf %31, %12 : vector<8x128xf32>
    %41 = arith.mulf %25, %33 : vector<8x128xf32>
    %42 = arith.addf %40, %41 : vector<8x128xf32>
    %43 = math.tanh %42 : vector<8x128xf32>
    %44 = arith.mulf %39, %43 : vector<8x128xf32>
    %45 = tpu.concatenate %44, %12 in 1 : vector<8x128xf32>, vector<8x128xf32> -> vector<8x256xf32>
    %46 = arith.truncf %45 : vector<8x256xf32> to vector<8x256xbf16>
    %cst_19 = arith.constant dense<0.000000e+00> : vector<8x512xf32>
    %47 = tpu.matmul %46, %8, %cst_19 {dimension_numbers = #tpu.dot_dimension_numbers<[1], [0], [0], [1], [0, 0, 1, 1], [], []>} : vector<8x256xbf16>, vector<256x512xbf16>, vector<8x512xf32> -> vector<8x512xf32>
    %48 = arith.addf %47, %11 : vector<8x512xf32>
    %49 = vector.extract_strided_slice %48 {offsets = [0, 0], sizes = [8, 128], strides = [1, 1]} : vector<8x512xf32> to vector<8x128xf32>
    %50 = arith.negf %49 : vector<8x128xf32>
    %51 = math.exp %50 : vector<8x128xf32>
    %cst_20 = arith.constant 1.000000e+00 : f32
    %52 = vector.broadcast %cst_20 : f32 to vector<8x128xf32>
    %53 = arith.addf %52, %51 : vector<8x128xf32>
    %54 = arith.divf %52, %53 : vector<8x128xf32>
    %55 = vector.extract_strided_slice %48 {offsets = [0, 128], sizes = [8, 128], strides = [1, 1]} : vector<8x512xf32> to vector<8x128xf32>
    %56 = arith.negf %55 : vector<8x128xf32>
    %57 = math.exp %56 : vector<8x128xf32>
    %cst_21 = arith.constant 1.000000e+00 : f32
    %58 = vector.broadcast %cst_21 : f32 to vector<8x128xf32>
    %59 = arith.addf %58, %57 : vector<8x128xf32>
    %60 = arith.divf %58, %59 : vector<8x128xf32>
    %61 = vector.extract_strided_slice %48 {offsets = [0, 256], sizes = [8, 128], strides = [1, 1]} : vector<8x512xf32> to vector<8x128xf32>
    %62 = math.tanh %61 : vector<8x128xf32>
    %63 = vector.extract_strided_slice %48 {offsets = [0, 384], sizes = [8, 128], strides = [1, 1]} : vector<8x512xf32> to vector<8x128xf32>
    %64 = arith.negf %63 : vector<8x128xf32>
    %65 = math.exp %64 : vector<8x128xf32>
    %cst_22 = arith.constant 1.000000e+00 : f32
    %66 = vector.broadcast %cst_22 : f32 to vector<8x128xf32>
    %67 = arith.addf %66, %65 : vector<8x128xf32>
    %68 = arith.divf %66, %67 : vector<8x128xf32>
    %69 = arith.mulf %60, %12 : vector<8x128xf32>
    %70 = arith.mulf %54, %62 : vector<8x128xf32>
    %71 = arith.addf %69, %70 : vector<8x128xf32>
    %72 = math.tanh %71 : vector<8x128xf32>
    %73 = arith.mulf %68, %72 : vector<8x128xf32>
    %c1_i32 = arith.constant 1 : i32
    %c8_i32_23 = arith.constant 8 : i32
    %74 = arith.muli %c1_i32, %c8_i32_23 : i32
    %75 = tpu.assume_multiple %74, 8 : i32
    %76 = arith.index_cast %75 : i32 to index
    %c0_24 = arith.constant 0 : index
    %77 = vector.load %arg11[%76, %c0_24] : memref<64x512xf32, #tpu.memory_space<vmem>>, vector<8x512xf32>
    %78 = arith.truncf %44 : vector<8x128xf32> to vector<8x128xbf16>
    %cst_25 = arith.constant dense<0.000000e+00> : vector<8x512xf32>
    %79 = tpu.matmul %78, %7, %cst_25 {dimension_numbers = #tpu.dot_dimension_numbers<[1], [0], [0], [1], [0, 0, 1, 1], [], []>} : vector<8x128xbf16>, vector<128x512xbf16>, vector<8x512xf32> -> vector<8x512xf32>
    %80 = arith.addf %77, %79 : vector<8x512xf32>
    %81 = vector.extract_strided_slice %80 {offsets = [0, 0], sizes = [8, 128], strides = [1, 1]} : vector<8x512xf32> to vector<8x128xf32>
    %82 = arith.negf %81 : vector<8x128xf32>
    %83 = math.exp %82 : vector<8x128xf32>
    %cst_26 = arith.constant 1.000000e+00 : f32
    %84 = vector.broadcast %cst_26 : f32 to vector<8x128xf32>
    %85 = arith.addf %84, %83 : vector<8x128xf32>
    %86 = arith.divf %84, %85 : vector<8x128xf32>
    %87 = vector.extract_strided_slice %80 {offsets = [0, 128], sizes = [8, 128], strides = [1, 1]} : vector<8x512xf32> to vector<8x128xf32>
    %88 = arith.negf %87 : vector<8x128xf32>
    %89 = math.exp %88 : vector<8x128xf32>
    %cst_27 = arith.constant 1.000000e+00 : f32
    %90 = vector.broadcast %cst_27 : f32 to vector<8x128xf32>
    %91 = arith.addf %90, %89 : vector<8x128xf32>
    %92 = arith.divf %90, %91 : vector<8x128xf32>
    %93 = vector.extract_strided_slice %80 {offsets = [0, 256], sizes = [8, 128], strides = [1, 1]} : vector<8x512xf32> to vector<8x128xf32>
    %94 = math.tanh %93 : vector<8x128xf32>
    %95 = vector.extract_strided_slice %80 {offsets = [0, 384], sizes = [8, 128], strides = [1, 1]} : vector<8x512xf32> to vector<8x128xf32>
    %96 = arith.negf %95 : vector<8x128xf32>
    %97 = math.exp %96 : vector<8x128xf32>
    %cst_28 = arith.constant 1.000000e+00 : f32
    %98 = vector.broadcast %cst_28 : f32 to vector<8x128xf32>
    %99 = arith.addf %98, %97 : vector<8x128xf32>
    %100 = arith.divf %98, %99 : vector<8x128xf32>
    %101 = arith.mulf %92, %42 : vector<8x128xf32>
    %102 = arith.mulf %86, %94 : vector<8x128xf32>
    %103 = arith.addf %101, %102 : vector<8x128xf32>
    %104 = math.tanh %103 : vector<8x128xf32>
    %105 = arith.mulf %100, %104 : vector<8x128xf32>
    %106 = tpu.concatenate %105, %73 in 1 : vector<8x128xf32>, vector<8x128xf32> -> vector<8x256xf32>
    %107 = arith.truncf %106 : vector<8x256xf32> to vector<8x256xbf16>
    %cst_29 = arith.constant dense<0.000000e+00> : vector<8x512xf32>
    %108 = tpu.matmul %107, %8, %cst_29 {dimension_numbers = #tpu.dot_dimension_numbers<[1], [0], [0], [1], [0, 0, 1, 1], [], []>} : vector<8x256xbf16>, vector<256x512xbf16>, vector<8x512xf32> -> vector<8x512xf32>
    %109 = arith.addf %108, %11 : vector<8x512xf32>
    %110 = vector.extract_strided_slice %109 {offsets = [0, 0], sizes = [8, 128], strides = [1, 1]} : vector<8x512xf32> to vector<8x128xf32>
    %111 = arith.negf %110 : vector<8x128xf32>
    %112 = math.exp %111 : vector<8x128xf32>
    %cst_30 = arith.constant 1.000000e+00 : f32
    %113 = vector.broadcast %cst_30 : f32 to vector<8x128xf32>
    %114 = arith.addf %113, %112 : vector<8x128xf32>
    %115 = arith.divf %113, %114 : vector<8x128xf32>
    %116 = vector.extract_strided_slice %109 {offsets = [0, 128], sizes = [8, 128], strides = [1, 1]} : vector<8x512xf32> to vector<8x128xf32>
    %117 = arith.negf %116 : vector<8x128xf32>
    %118 = math.exp %117 : vector<8x128xf32>
    %cst_31 = arith.constant 1.000000e+00 : f32
    %119 = vector.broadcast %cst_31 : f32 to vector<8x128xf32>
    %120 = arith.addf %119, %118 : vector<8x128xf32>
    %121 = arith.divf %119, %120 : vector<8x128xf32>
    %122 = vector.extract_strided_slice %109 {offsets = [0, 256], sizes = [8, 128], strides = [1, 1]} : vector<8x512xf32> to vector<8x128xf32>
    %123 = math.tanh %122 : vector<8x128xf32>
    %124 = vector.extract_strided_slice %109 {offsets = [0, 384], sizes = [8, 128], strides = [1, 1]} : vector<8x512xf32> to vector<8x128xf32>
    %125 = arith.negf %124 : vector<8x128xf32>
    %126 = math.exp %125 : vector<8x128xf32>
    %cst_32 = arith.constant 1.000000e+00 : f32
    %127 = vector.broadcast %cst_32 : f32 to vector<8x128xf32>
    %128 = arith.addf %127, %126 : vector<8x128xf32>
    %129 = arith.divf %127, %128 : vector<8x128xf32>
    %130 = arith.mulf %121, %71 : vector<8x128xf32>
    %131 = arith.mulf %115, %123 : vector<8x128xf32>
    %132 = arith.addf %130, %131 : vector<8x128xf32>
    %133 = math.tanh %132 : vector<8x128xf32>
    %134 = arith.mulf %129, %133 : vector<8x128xf32>
    %c2_i32 = arith.constant 2 : i32
    %c8_i32_33 = arith.constant 8 : i32
    %135 = arith.muli %c2_i32, %c8_i32_33 : i32
    %136 = tpu.assume_multiple %135, 8 : i32
    %137 = arith.index_cast %136 : i32 to index
    %c0_34 = arith.constant 0 : index
    %138 = vector.load %arg11[%137, %c0_34] : memref<64x512xf32, #tpu.memory_space<vmem>>, vector<8x512xf32>
    %139 = arith.truncf %105 : vector<8x128xf32> to vector<8x128xbf16>
    %cst_35 = arith.constant dense<0.000000e+00> : vector<8x512xf32>
    %140 = tpu.matmul %139, %7, %cst_35 {dimension_numbers = #tpu.dot_dimension_numbers<[1], [0], [0], [1], [0, 0, 1, 1], [], []>} : vector<8x128xbf16>, vector<128x512xbf16>, vector<8x512xf32> -> vector<8x512xf32>
    %141 = arith.addf %138, %140 : vector<8x512xf32>
    %142 = vector.extract_strided_slice %141 {offsets = [0, 0], sizes = [8, 128], strides = [1, 1]} : vector<8x512xf32> to vector<8x128xf32>
    %143 = arith.negf %142 : vector<8x128xf32>
    %144 = math.exp %143 : vector<8x128xf32>
    %cst_36 = arith.constant 1.000000e+00 : f32
    %145 = vector.broadcast %cst_36 : f32 to vector<8x128xf32>
    %146 = arith.addf %145, %144 : vector<8x128xf32>
    %147 = arith.divf %145, %146 : vector<8x128xf32>
    %148 = vector.extract_strided_slice %141 {offsets = [0, 128], sizes = [8, 128], strides = [1, 1]} : vector<8x512xf32> to vector<8x128xf32>
    %149 = arith.negf %148 : vector<8x128xf32>
    %150 = math.exp %149 : vector<8x128xf32>
    %cst_37 = arith.constant 1.000000e+00 : f32
    %151 = vector.broadcast %cst_37 : f32 to vector<8x128xf32>
    %152 = arith.addf %151, %150 : vector<8x128xf32>
    %153 = arith.divf %151, %152 : vector<8x128xf32>
    %154 = vector.extract_strided_slice %141 {offsets = [0, 256], sizes = [8, 128], strides = [1, 1]} : vector<8x512xf32> to vector<8x128xf32>
    %155 = math.tanh %154 : vector<8x128xf32>
    %156 = vector.extract_strided_slice %141 {offsets = [0, 384], sizes = [8, 128], strides = [1, 1]} : vector<8x512xf32> to vector<8x128xf32>
    %157 = arith.negf %156 : vector<8x128xf32>
    %158 = math.exp %157 : vector<8x128xf32>
    %cst_38 = arith.constant 1.000000e+00 : f32
    %159 = vector.broadcast %cst_38 : f32 to vector<8x128xf32>
    %160 = arith.addf %159, %158 : vector<8x128xf32>
    %161 = arith.divf %159, %160 : vector<8x128xf32>
    %162 = arith.mulf %153, %103 : vector<8x128xf32>
    %163 = arith.mulf %147, %155 : vector<8x128xf32>
    %164 = arith.addf %162, %163 : vector<8x128xf32>
    %165 = math.tanh %164 : vector<8x128xf32>
    %166 = arith.mulf %161, %165 : vector<8x128xf32>
    %167 = tpu.concatenate %166, %134 in 1 : vector<8x128xf32>, vector<8x128xf32> -> vector<8x256xf32>
    %168 = arith.truncf %167 : vector<8x256xf32> to vector<8x256xbf16>
    %cst_39 = arith.constant dense<0.000000e+00> : vector<8x512xf32>
    %169 = tpu.matmul %168, %8, %cst_39 {dimension_numbers = #tpu.dot_dimension_numbers<[1], [0], [0], [1], [0, 0, 1, 1], [], []>} : vector<8x256xbf16>, vector<256x512xbf16>, vector<8x512xf32> -> vector<8x512xf32>
    %170 = arith.addf %169, %11 : vector<8x512xf32>
    %171 = vector.extract_strided_slice %170 {offsets = [0, 0], sizes = [8, 128], strides = [1, 1]} : vector<8x512xf32> to vector<8x128xf32>
    %172 = arith.negf %171 : vector<8x128xf32>
    %173 = math.exp %172 : vector<8x128xf32>
    %cst_40 = arith.constant 1.000000e+00 : f32
    %174 = vector.broadcast %cst_40 : f32 to vector<8x128xf32>
    %175 = arith.addf %174, %173 : vector<8x128xf32>
    %176 = arith.divf %174, %175 : vector<8x128xf32>
    %177 = vector.extract_strided_slice %170 {offsets = [0, 128], sizes = [8, 128], strides = [1, 1]} : vector<8x512xf32> to vector<8x128xf32>
    %178 = arith.negf %177 : vector<8x128xf32>
    %179 = math.exp %178 : vector<8x128xf32>
    %cst_41 = arith.constant 1.000000e+00 : f32
    %180 = vector.broadcast %cst_41 : f32 to vector<8x128xf32>
    %181 = arith.addf %180, %179 : vector<8x128xf32>
    %182 = arith.divf %180, %181 : vector<8x128xf32>
    %183 = vector.extract_strided_slice %170 {offsets = [0, 256], sizes = [8, 128], strides = [1, 1]} : vector<8x512xf32> to vector<8x128xf32>
    %184 = math.tanh %183 : vector<8x128xf32>
    %185 = vector.extract_strided_slice %170 {offsets = [0, 384], sizes = [8, 128], strides = [1, 1]} : vector<8x512xf32> to vector<8x128xf32>
    %186 = arith.negf %185 : vector<8x128xf32>
    %187 = math.exp %186 : vector<8x128xf32>
    %cst_42 = arith.constant 1.000000e+00 : f32
    %188 = vector.broadcast %cst_42 : f32 to vector<8x128xf32>
    %189 = arith.addf %188, %187 : vector<8x128xf32>
    %190 = arith.divf %188, %189 : vector<8x128xf32>
    %191 = arith.mulf %182, %132 : vector<8x128xf32>
    %192 = arith.mulf %176, %184 : vector<8x128xf32>
    %193 = arith.addf %191, %192 : vector<8x128xf32>
    %194 = math.tanh %193 : vector<8x128xf32>
    %195 = arith.mulf %190, %194 : vector<8x128xf32>
    %c3_i32 = arith.constant 3 : i32
    %c8_i32_43 = arith.constant 8 : i32
    %196 = arith.muli %c3_i32, %c8_i32_43 : i32
    %197 = tpu.assume_multiple %196, 8 : i32
    %198 = arith.index_cast %197 : i32 to index
    %c0_44 = arith.constant 0 : index
    %199 = vector.load %arg11[%198, %c0_44] : memref<64x512xf32, #tpu.memory_space<vmem>>, vector<8x512xf32>
    %200 = arith.truncf %166 : vector<8x128xf32> to vector<8x128xbf16>
    %cst_45 = arith.constant dense<0.000000e+00> : vector<8x512xf32>
    %201 = tpu.matmul %200, %7, %cst_45 {dimension_numbers = #tpu.dot_dimension_numbers<[1], [0], [0], [1], [0, 0, 1, 1], [], []>} : vector<8x128xbf16>, vector<128x512xbf16>, vector<8x512xf32> -> vector<8x512xf32>
    %202 = arith.addf %199, %201 : vector<8x512xf32>
    %203 = vector.extract_strided_slice %202 {offsets = [0, 0], sizes = [8, 128], strides = [1, 1]} : vector<8x512xf32> to vector<8x128xf32>
    %204 = arith.negf %203 : vector<8x128xf32>
    %205 = math.exp %204 : vector<8x128xf32>
    %cst_46 = arith.constant 1.000000e+00 : f32
    %206 = vector.broadcast %cst_46 : f32 to vector<8x128xf32>
    %207 = arith.addf %206, %205 : vector<8x128xf32>
    %208 = arith.divf %206, %207 : vector<8x128xf32>
    %209 = vector.extract_strided_slice %202 {offsets = [0, 128], sizes = [8, 128], strides = [1, 1]} : vector<8x512xf32> to vector<8x128xf32>
    %210 = arith.negf %209 : vector<8x128xf32>
    %211 = math.exp %210 : vector<8x128xf32>
    %cst_47 = arith.constant 1.000000e+00 : f32
    %212 = vector.broadcast %cst_47 : f32 to vector<8x128xf32>
    %213 = arith.addf %212, %211 : vector<8x128xf32>
    %214 = arith.divf %212, %213 : vector<8x128xf32>
    %215 = vector.extract_strided_slice %202 {offsets = [0, 256], sizes = [8, 128], strides = [1, 1]} : vector<8x512xf32> to vector<8x128xf32>
    %216 = math.tanh %215 : vector<8x128xf32>
    %217 = vector.extract_strided_slice %202 {offsets = [0, 384], sizes = [8, 128], strides = [1, 1]} : vector<8x512xf32> to vector<8x128xf32>
    %218 = arith.negf %217 : vector<8x128xf32>
    %219 = math.exp %218 : vector<8x128xf32>
    %cst_48 = arith.constant 1.000000e+00 : f32
    %220 = vector.broadcast %cst_48 : f32 to vector<8x128xf32>
    %221 = arith.addf %220, %219 : vector<8x128xf32>
    %222 = arith.divf %220, %221 : vector<8x128xf32>
    %223 = arith.mulf %214, %164 : vector<8x128xf32>
    %224 = arith.mulf %208, %216 : vector<8x128xf32>
    %225 = arith.addf %223, %224 : vector<8x128xf32>
    %226 = math.tanh %225 : vector<8x128xf32>
    %227 = arith.mulf %222, %226 : vector<8x128xf32>
    %228 = tpu.concatenate %227, %195 in 1 : vector<8x128xf32>, vector<8x128xf32> -> vector<8x256xf32>
    %229 = arith.truncf %228 : vector<8x256xf32> to vector<8x256xbf16>
    %cst_49 = arith.constant dense<0.000000e+00> : vector<8x512xf32>
    %230 = tpu.matmul %229, %8, %cst_49 {dimension_numbers = #tpu.dot_dimension_numbers<[1], [0], [0], [1], [0, 0, 1, 1], [], []>} : vector<8x256xbf16>, vector<256x512xbf16>, vector<8x512xf32> -> vector<8x512xf32>
    %231 = arith.addf %230, %11 : vector<8x512xf32>
    %232 = vector.extract_strided_slice %231 {offsets = [0, 0], sizes = [8, 128], strides = [1, 1]} : vector<8x512xf32> to vector<8x128xf32>
    %233 = arith.negf %232 : vector<8x128xf32>
    %234 = math.exp %233 : vector<8x128xf32>
    %cst_50 = arith.constant 1.000000e+00 : f32
    %235 = vector.broadcast %cst_50 : f32 to vector<8x128xf32>
    %236 = arith.addf %235, %234 : vector<8x128xf32>
    %237 = arith.divf %235, %236 : vector<8x128xf32>
    %238 = vector.extract_strided_slice %231 {offsets = [0, 128], sizes = [8, 128], strides = [1, 1]} : vector<8x512xf32> to vector<8x128xf32>
    %239 = arith.negf %238 : vector<8x128xf32>
    %240 = math.exp %239 : vector<8x128xf32>
    %cst_51 = arith.constant 1.000000e+00 : f32
    %241 = vector.broadcast %cst_51 : f32 to vector<8x128xf32>
    %242 = arith.addf %241, %240 : vector<8x128xf32>
    %243 = arith.divf %241, %242 : vector<8x128xf32>
    %244 = vector.extract_strided_slice %231 {offsets = [0, 256], sizes = [8, 128], strides = [1, 1]} : vector<8x512xf32> to vector<8x128xf32>
    %245 = math.tanh %244 : vector<8x128xf32>
    %246 = vector.extract_strided_slice %231 {offsets = [0, 384], sizes = [8, 128], strides = [1, 1]} : vector<8x512xf32> to vector<8x128xf32>
    %247 = arith.negf %246 : vector<8x128xf32>
    %248 = math.exp %247 : vector<8x128xf32>
    %cst_52 = arith.constant 1.000000e+00 : f32
    %249 = vector.broadcast %cst_52 : f32 to vector<8x128xf32>
    %250 = arith.addf %249, %248 : vector<8x128xf32>
    %251 = arith.divf %249, %250 : vector<8x128xf32>
    %252 = arith.mulf %243, %193 : vector<8x128xf32>
    %253 = arith.mulf %237, %245 : vector<8x128xf32>
    %254 = arith.addf %252, %253 : vector<8x128xf32>
    %255 = math.tanh %254 : vector<8x128xf32>
    %256 = arith.mulf %251, %255 : vector<8x128xf32>
    %c4_i32 = arith.constant 4 : i32
    %c8_i32_53 = arith.constant 8 : i32
    %257 = arith.muli %c4_i32, %c8_i32_53 : i32
    %258 = tpu.assume_multiple %257, 8 : i32
    %259 = arith.index_cast %258 : i32 to index
    %c0_54 = arith.constant 0 : index
    %260 = vector.load %arg11[%259, %c0_54] : memref<64x512xf32, #tpu.memory_space<vmem>>, vector<8x512xf32>
    %261 = arith.truncf %227 : vector<8x128xf32> to vector<8x128xbf16>
    %cst_55 = arith.constant dense<0.000000e+00> : vector<8x512xf32>
    %262 = tpu.matmul %261, %7, %cst_55 {dimension_numbers = #tpu.dot_dimension_numbers<[1], [0], [0], [1], [0, 0, 1, 1], [], []>} : vector<8x128xbf16>, vector<128x512xbf16>, vector<8x512xf32> -> vector<8x512xf32>
    %263 = arith.addf %260, %262 : vector<8x512xf32>
    %264 = vector.extract_strided_slice %263 {offsets = [0, 0], sizes = [8, 128], strides = [1, 1]} : vector<8x512xf32> to vector<8x128xf32>
    %265 = arith.negf %264 : vector<8x128xf32>
    %266 = math.exp %265 : vector<8x128xf32>
    %cst_56 = arith.constant 1.000000e+00 : f32
    %267 = vector.broadcast %cst_56 : f32 to vector<8x128xf32>
    %268 = arith.addf %267, %266 : vector<8x128xf32>
    %269 = arith.divf %267, %268 : vector<8x128xf32>
    %270 = vector.extract_strided_slice %263 {offsets = [0, 128], sizes = [8, 128], strides = [1, 1]} : vector<8x512xf32> to vector<8x128xf32>
    %271 = arith.negf %270 : vector<8x128xf32>
    %272 = math.exp %271 : vector<8x128xf32>
    %cst_57 = arith.constant 1.000000e+00 : f32
    %273 = vector.broadcast %cst_57 : f32 to vector<8x128xf32>
    %274 = arith.addf %273, %272 : vector<8x128xf32>
    %275 = arith.divf %273, %274 : vector<8x128xf32>
    %276 = vector.extract_strided_slice %263 {offsets = [0, 256], sizes = [8, 128], strides = [1, 1]} : vector<8x512xf32> to vector<8x128xf32>
    %277 = math.tanh %276 : vector<8x128xf32>
    %278 = vector.extract_strided_slice %263 {offsets = [0, 384], sizes = [8, 128], strides = [1, 1]} : vector<8x512xf32> to vector<8x128xf32>
    %279 = arith.negf %278 : vector<8x128xf32>
    %280 = math.exp %279 : vector<8x128xf32>
    %cst_58 = arith.constant 1.000000e+00 : f32
    %281 = vector.broadcast %cst_58 : f32 to vector<8x128xf32>
    %282 = arith.addf %281, %280 : vector<8x128xf32>
    %283 = arith.divf %281, %282 : vector<8x128xf32>
    %284 = arith.mulf %275, %225 : vector<8x128xf32>
    %285 = arith.mulf %269, %277 : vector<8x128xf32>
    %286 = arith.addf %284, %285 : vector<8x128xf32>
    %287 = math.tanh %286 : vector<8x128xf32>
    %288 = arith.mulf %283, %287 : vector<8x128xf32>
    %289 = tpu.concatenate %288, %256 in 1 : vector<8x128xf32>, vector<8x128xf32> -> vector<8x256xf32>
    %290 = arith.truncf %289 : vector<8x256xf32> to vector<8x256xbf16>
    %cst_59 = arith.constant dense<0.000000e+00> : vector<8x512xf32>
    %291 = tpu.matmul %290, %8, %cst_59 {dimension_numbers = #tpu.dot_dimension_numbers<[1], [0], [0], [1], [0, 0, 1, 1], [], []>} : vector<8x256xbf16>, vector<256x512xbf16>, vector<8x512xf32> -> vector<8x512xf32>
    %292 = arith.addf %291, %11 : vector<8x512xf32>
    %293 = vector.extract_strided_slice %292 {offsets = [0, 0], sizes = [8, 128], strides = [1, 1]} : vector<8x512xf32> to vector<8x128xf32>
    %294 = arith.negf %293 : vector<8x128xf32>
    %295 = math.exp %294 : vector<8x128xf32>
    %cst_60 = arith.constant 1.000000e+00 : f32
    %296 = vector.broadcast %cst_60 : f32 to vector<8x128xf32>
    %297 = arith.addf %296, %295 : vector<8x128xf32>
    %298 = arith.divf %296, %297 : vector<8x128xf32>
    %299 = vector.extract_strided_slice %292 {offsets = [0, 128], sizes = [8, 128], strides = [1, 1]} : vector<8x512xf32> to vector<8x128xf32>
    %300 = arith.negf %299 : vector<8x128xf32>
    %301 = math.exp %300 : vector<8x128xf32>
    %cst_61 = arith.constant 1.000000e+00 : f32
    %302 = vector.broadcast %cst_61 : f32 to vector<8x128xf32>
    %303 = arith.addf %302, %301 : vector<8x128xf32>
    %304 = arith.divf %302, %303 : vector<8x128xf32>
    %305 = vector.extract_strided_slice %292 {offsets = [0, 256], sizes = [8, 128], strides = [1, 1]} : vector<8x512xf32> to vector<8x128xf32>
    %306 = math.tanh %305 : vector<8x128xf32>
    %307 = vector.extract_strided_slice %292 {offsets = [0, 384], sizes = [8, 128], strides = [1, 1]} : vector<8x512xf32> to vector<8x128xf32>
    %308 = arith.negf %307 : vector<8x128xf32>
    %309 = math.exp %308 : vector<8x128xf32>
    %cst_62 = arith.constant 1.000000e+00 : f32
    %310 = vector.broadcast %cst_62 : f32 to vector<8x128xf32>
    %311 = arith.addf %310, %309 : vector<8x128xf32>
    %312 = arith.divf %310, %311 : vector<8x128xf32>
    %313 = arith.mulf %304, %254 : vector<8x128xf32>
    %314 = arith.mulf %298, %306 : vector<8x128xf32>
    %315 = arith.addf %313, %314 : vector<8x128xf32>
    %316 = math.tanh %315 : vector<8x128xf32>
    %317 = arith.mulf %312, %316 : vector<8x128xf32>
    %c5_i32 = arith.constant 5 : i32
    %c8_i32_63 = arith.constant 8 : i32
    %318 = arith.muli %c5_i32, %c8_i32_63 : i32
    %319 = tpu.assume_multiple %318, 8 : i32
    %320 = arith.index_cast %319 : i32 to index
    %c0_64 = arith.constant 0 : index
    %321 = vector.load %arg11[%320, %c0_64] : memref<64x512xf32, #tpu.memory_space<vmem>>, vector<8x512xf32>
    %322 = arith.truncf %288 : vector<8x128xf32> to vector<8x128xbf16>
    %cst_65 = arith.constant dense<0.000000e+00> : vector<8x512xf32>
    %323 = tpu.matmul %322, %7, %cst_65 {dimension_numbers = #tpu.dot_dimension_numbers<[1], [0], [0], [1], [0, 0, 1, 1], [], []>} : vector<8x128xbf16>, vector<128x512xbf16>, vector<8x512xf32> -> vector<8x512xf32>
    %324 = arith.addf %321, %323 : vector<8x512xf32>
    %325 = vector.extract_strided_slice %324 {offsets = [0, 0], sizes = [8, 128], strides = [1, 1]} : vector<8x512xf32> to vector<8x128xf32>
    %326 = arith.negf %325 : vector<8x128xf32>
    %327 = math.exp %326 : vector<8x128xf32>
    %cst_66 = arith.constant 1.000000e+00 : f32
    %328 = vector.broadcast %cst_66 : f32 to vector<8x128xf32>
    %329 = arith.addf %328, %327 : vector<8x128xf32>
    %330 = arith.divf %328, %329 : vector<8x128xf32>
    %331 = vector.extract_strided_slice %324 {offsets = [0, 128], sizes = [8, 128], strides = [1, 1]} : vector<8x512xf32> to vector<8x128xf32>
    %332 = arith.negf %331 : vector<8x128xf32>
    %333 = math.exp %332 : vector<8x128xf32>
    %cst_67 = arith.constant 1.000000e+00 : f32
    %334 = vector.broadcast %cst_67 : f32 to vector<8x128xf32>
    %335 = arith.addf %334, %333 : vector<8x128xf32>
    %336 = arith.divf %334, %335 : vector<8x128xf32>
    %337 = vector.extract_strided_slice %324 {offsets = [0, 256], sizes = [8, 128], strides = [1, 1]} : vector<8x512xf32> to vector<8x128xf32>
    %338 = math.tanh %337 : vector<8x128xf32>
    %339 = vector.extract_strided_slice %324 {offsets = [0, 384], sizes = [8, 128], strides = [1, 1]} : vector<8x512xf32> to vector<8x128xf32>
    %340 = arith.negf %339 : vector<8x128xf32>
    %341 = math.exp %340 : vector<8x128xf32>
    %cst_68 = arith.constant 1.000000e+00 : f32
    %342 = vector.broadcast %cst_68 : f32 to vector<8x128xf32>
    %343 = arith.addf %342, %341 : vector<8x128xf32>
    %344 = arith.divf %342, %343 : vector<8x128xf32>
    %345 = arith.mulf %336, %286 : vector<8x128xf32>
    %346 = arith.mulf %330, %338 : vector<8x128xf32>
    %347 = arith.addf %345, %346 : vector<8x128xf32>
    %348 = math.tanh %347 : vector<8x128xf32>
    %349 = arith.mulf %344, %348 : vector<8x128xf32>
    %350 = tpu.concatenate %349, %317 in 1 : vector<8x128xf32>, vector<8x128xf32> -> vector<8x256xf32>
    %351 = arith.truncf %350 : vector<8x256xf32> to vector<8x256xbf16>
    %cst_69 = arith.constant dense<0.000000e+00> : vector<8x512xf32>
    %352 = tpu.matmul %351, %8, %cst_69 {dimension_numbers = #tpu.dot_dimension_numbers<[1], [0], [0], [1], [0, 0, 1, 1], [], []>} : vector<8x256xbf16>, vector<256x512xbf16>, vector<8x512xf32> -> vector<8x512xf32>
    %353 = arith.addf %352, %11 : vector<8x512xf32>
    %354 = vector.extract_strided_slice %353 {offsets = [0, 0], sizes = [8, 128], strides = [1, 1]} : vector<8x512xf32> to vector<8x128xf32>
    %355 = arith.negf %354 : vector<8x128xf32>
    %356 = math.exp %355 : vector<8x128xf32>
    %cst_70 = arith.constant 1.000000e+00 : f32
    %357 = vector.broadcast %cst_70 : f32 to vector<8x128xf32>
    %358 = arith.addf %357, %356 : vector<8x128xf32>
    %359 = arith.divf %357, %358 : vector<8x128xf32>
    %360 = vector.extract_strided_slice %353 {offsets = [0, 128], sizes = [8, 128], strides = [1, 1]} : vector<8x512xf32> to vector<8x128xf32>
    %361 = arith.negf %360 : vector<8x128xf32>
    %362 = math.exp %361 : vector<8x128xf32>
    %cst_71 = arith.constant 1.000000e+00 : f32
    %363 = vector.broadcast %cst_71 : f32 to vector<8x128xf32>
    %364 = arith.addf %363, %362 : vector<8x128xf32>
    %365 = arith.divf %363, %364 : vector<8x128xf32>
    %366 = vector.extract_strided_slice %353 {offsets = [0, 256], sizes = [8, 128], strides = [1, 1]} : vector<8x512xf32> to vector<8x128xf32>
    %367 = math.tanh %366 : vector<8x128xf32>
    %368 = vector.extract_strided_slice %353 {offsets = [0, 384], sizes = [8, 128], strides = [1, 1]} : vector<8x512xf32> to vector<8x128xf32>
    %369 = arith.negf %368 : vector<8x128xf32>
    %370 = math.exp %369 : vector<8x128xf32>
    %cst_72 = arith.constant 1.000000e+00 : f32
    %371 = vector.broadcast %cst_72 : f32 to vector<8x128xf32>
    %372 = arith.addf %371, %370 : vector<8x128xf32>
    %373 = arith.divf %371, %372 : vector<8x128xf32>
    %374 = arith.mulf %365, %315 : vector<8x128xf32>
    %375 = arith.mulf %359, %367 : vector<8x128xf32>
    %376 = arith.addf %374, %375 : vector<8x128xf32>
    %377 = math.tanh %376 : vector<8x128xf32>
    %378 = arith.mulf %373, %377 : vector<8x128xf32>
    %c6_i32 = arith.constant 6 : i32
    %c8_i32_73 = arith.constant 8 : i32
    %379 = arith.muli %c6_i32, %c8_i32_73 : i32
    %380 = tpu.assume_multiple %379, 8 : i32
    %381 = arith.index_cast %380 : i32 to index
    %c0_74 = arith.constant 0 : index
    %382 = vector.load %arg11[%381, %c0_74] : memref<64x512xf32, #tpu.memory_space<vmem>>, vector<8x512xf32>
    %383 = arith.truncf %349 : vector<8x128xf32> to vector<8x128xbf16>
    %cst_75 = arith.constant dense<0.000000e+00> : vector<8x512xf32>
    %384 = tpu.matmul %383, %7, %cst_75 {dimension_numbers = #tpu.dot_dimension_numbers<[1], [0], [0], [1], [0, 0, 1, 1], [], []>} : vector<8x128xbf16>, vector<128x512xbf16>, vector<8x512xf32> -> vector<8x512xf32>
    %385 = arith.addf %382, %384 : vector<8x512xf32>
    %386 = vector.extract_strided_slice %385 {offsets = [0, 0], sizes = [8, 128], strides = [1, 1]} : vector<8x512xf32> to vector<8x128xf32>
    %387 = arith.negf %386 : vector<8x128xf32>
    %388 = math.exp %387 : vector<8x128xf32>
    %cst_76 = arith.constant 1.000000e+00 : f32
    %389 = vector.broadcast %cst_76 : f32 to vector<8x128xf32>
    %390 = arith.addf %389, %388 : vector<8x128xf32>
    %391 = arith.divf %389, %390 : vector<8x128xf32>
    %392 = vector.extract_strided_slice %385 {offsets = [0, 128], sizes = [8, 128], strides = [1, 1]} : vector<8x512xf32> to vector<8x128xf32>
    %393 = arith.negf %392 : vector<8x128xf32>
    %394 = math.exp %393 : vector<8x128xf32>
    %cst_77 = arith.constant 1.000000e+00 : f32
    %395 = vector.broadcast %cst_77 : f32 to vector<8x128xf32>
    %396 = arith.addf %395, %394 : vector<8x128xf32>
    %397 = arith.divf %395, %396 : vector<8x128xf32>
    %398 = vector.extract_strided_slice %385 {offsets = [0, 256], sizes = [8, 128], strides = [1, 1]} : vector<8x512xf32> to vector<8x128xf32>
    %399 = math.tanh %398 : vector<8x128xf32>
    %400 = vector.extract_strided_slice %385 {offsets = [0, 384], sizes = [8, 128], strides = [1, 1]} : vector<8x512xf32> to vector<8x128xf32>
    %401 = arith.negf %400 : vector<8x128xf32>
    %402 = math.exp %401 : vector<8x128xf32>
    %cst_78 = arith.constant 1.000000e+00 : f32
    %403 = vector.broadcast %cst_78 : f32 to vector<8x128xf32>
    %404 = arith.addf %403, %402 : vector<8x128xf32>
    %405 = arith.divf %403, %404 : vector<8x128xf32>
    %406 = arith.mulf %397, %347 : vector<8x128xf32>
    %407 = arith.mulf %391, %399 : vector<8x128xf32>
    %408 = arith.addf %406, %407 : vector<8x128xf32>
    %409 = math.tanh %408 : vector<8x128xf32>
    %410 = arith.mulf %405, %409 : vector<8x128xf32>
    %411 = tpu.concatenate %410, %378 in 1 : vector<8x128xf32>, vector<8x128xf32> -> vector<8x256xf32>
    %412 = arith.truncf %411 : vector<8x256xf32> to vector<8x256xbf16>
    %cst_79 = arith.constant dense<0.000000e+00> : vector<8x512xf32>
    %413 = tpu.matmul %412, %8, %cst_79 {dimension_numbers = #tpu.dot_dimension_numbers<[1], [0], [0], [1], [0, 0, 1, 1], [], []>} : vector<8x256xbf16>, vector<256x512xbf16>, vector<8x512xf32> -> vector<8x512xf32>
    %414 = arith.addf %413, %11 : vector<8x512xf32>
    %415 = vector.extract_strided_slice %414 {offsets = [0, 0], sizes = [8, 128], strides = [1, 1]} : vector<8x512xf32> to vector<8x128xf32>
    %416 = arith.negf %415 : vector<8x128xf32>
    %417 = math.exp %416 : vector<8x128xf32>
    %cst_80 = arith.constant 1.000000e+00 : f32
    %418 = vector.broadcast %cst_80 : f32 to vector<8x128xf32>
    %419 = arith.addf %418, %417 : vector<8x128xf32>
    %420 = arith.divf %418, %419 : vector<8x128xf32>
    %421 = vector.extract_strided_slice %414 {offsets = [0, 128], sizes = [8, 128], strides = [1, 1]} : vector<8x512xf32> to vector<8x128xf32>
    %422 = arith.negf %421 : vector<8x128xf32>
    %423 = math.exp %422 : vector<8x128xf32>
    %cst_81 = arith.constant 1.000000e+00 : f32
    %424 = vector.broadcast %cst_81 : f32 to vector<8x128xf32>
    %425 = arith.addf %424, %423 : vector<8x128xf32>
    %426 = arith.divf %424, %425 : vector<8x128xf32>
    %427 = vector.extract_strided_slice %414 {offsets = [0, 256], sizes = [8, 128], strides = [1, 1]} : vector<8x512xf32> to vector<8x128xf32>
    %428 = math.tanh %427 : vector<8x128xf32>
    %429 = vector.extract_strided_slice %414 {offsets = [0, 384], sizes = [8, 128], strides = [1, 1]} : vector<8x512xf32> to vector<8x128xf32>
    %430 = arith.negf %429 : vector<8x128xf32>
    %431 = math.exp %430 : vector<8x128xf32>
    %cst_82 = arith.constant 1.000000e+00 : f32
    %432 = vector.broadcast %cst_82 : f32 to vector<8x128xf32>
    %433 = arith.addf %432, %431 : vector<8x128xf32>
    %434 = arith.divf %432, %433 : vector<8x128xf32>
    %435 = arith.mulf %426, %376 : vector<8x128xf32>
    %436 = arith.mulf %420, %428 : vector<8x128xf32>
    %437 = arith.addf %435, %436 : vector<8x128xf32>
    %438 = math.tanh %437 : vector<8x128xf32>
    %439 = arith.mulf %434, %438 : vector<8x128xf32>
    %c7_i32 = arith.constant 7 : i32
    %c8_i32_83 = arith.constant 8 : i32
    %440 = arith.muli %c7_i32, %c8_i32_83 : i32
    %441 = tpu.assume_multiple %440, 8 : i32
    %442 = arith.index_cast %441 : i32 to index
    %c0_84 = arith.constant 0 : index
    %443 = vector.load %arg11[%442, %c0_84] : memref<64x512xf32, #tpu.memory_space<vmem>>, vector<8x512xf32>
    %444 = arith.truncf %410 : vector<8x128xf32> to vector<8x128xbf16>
    %cst_85 = arith.constant dense<0.000000e+00> : vector<8x512xf32>
    %445 = tpu.matmul %444, %7, %cst_85 {dimension_numbers = #tpu.dot_dimension_numbers<[1], [0], [0], [1], [0, 0, 1, 1], [], []>} : vector<8x128xbf16>, vector<128x512xbf16>, vector<8x512xf32> -> vector<8x512xf32>
    %446 = arith.addf %443, %445 : vector<8x512xf32>
    %447 = vector.extract_strided_slice %446 {offsets = [0, 0], sizes = [8, 128], strides = [1, 1]} : vector<8x512xf32> to vector<8x128xf32>
    %448 = arith.negf %447 : vector<8x128xf32>
    %449 = math.exp %448 : vector<8x128xf32>
    %cst_86 = arith.constant 1.000000e+00 : f32
    %450 = vector.broadcast %cst_86 : f32 to vector<8x128xf32>
    %451 = arith.addf %450, %449 : vector<8x128xf32>
    %452 = arith.divf %450, %451 : vector<8x128xf32>
    %453 = vector.extract_strided_slice %446 {offsets = [0, 128], sizes = [8, 128], strides = [1, 1]} : vector<8x512xf32> to vector<8x128xf32>
    %454 = arith.negf %453 : vector<8x128xf32>
    %455 = math.exp %454 : vector<8x128xf32>
    %cst_87 = arith.constant 1.000000e+00 : f32
    %456 = vector.broadcast %cst_87 : f32 to vector<8x128xf32>
    %457 = arith.addf %456, %455 : vector<8x128xf32>
    %458 = arith.divf %456, %457 : vector<8x128xf32>
    %459 = vector.extract_strided_slice %446 {offsets = [0, 256], sizes = [8, 128], strides = [1, 1]} : vector<8x512xf32> to vector<8x128xf32>
    %460 = math.tanh %459 : vector<8x128xf32>
    %461 = vector.extract_strided_slice %446 {offsets = [0, 384], sizes = [8, 128], strides = [1, 1]} : vector<8x512xf32> to vector<8x128xf32>
    %462 = arith.negf %461 : vector<8x128xf32>
    %463 = math.exp %462 : vector<8x128xf32>
    %cst_88 = arith.constant 1.000000e+00 : f32
    %464 = vector.broadcast %cst_88 : f32 to vector<8x128xf32>
    %465 = arith.addf %464, %463 : vector<8x128xf32>
    %466 = arith.divf %464, %465 : vector<8x128xf32>
    %467 = arith.mulf %458, %408 : vector<8x128xf32>
    %468 = arith.mulf %452, %460 : vector<8x128xf32>
    %469 = arith.addf %467, %468 : vector<8x128xf32>
    %470 = math.tanh %469 : vector<8x128xf32>
    %471 = arith.mulf %466, %470 : vector<8x128xf32>
    %472 = tpu.concatenate %471, %439 in 1 : vector<8x128xf32>, vector<8x128xf32> -> vector<8x256xf32>
    %473 = arith.truncf %472 : vector<8x256xf32> to vector<8x256xbf16>
    %cst_89 = arith.constant dense<0.000000e+00> : vector<8x512xf32>
    %474 = tpu.matmul %473, %8, %cst_89 {dimension_numbers = #tpu.dot_dimension_numbers<[1], [0], [0], [1], [0, 0, 1, 1], [], []>} : vector<8x256xbf16>, vector<256x512xbf16>, vector<8x512xf32> -> vector<8x512xf32>
    %475 = arith.addf %474, %11 : vector<8x512xf32>
    %476 = vector.extract_strided_slice %475 {offsets = [0, 0], sizes = [8, 128], strides = [1, 1]} : vector<8x512xf32> to vector<8x128xf32>
    %477 = arith.negf %476 : vector<8x128xf32>
    %478 = math.exp %477 : vector<8x128xf32>
    %cst_90 = arith.constant 1.000000e+00 : f32
    %479 = vector.broadcast %cst_90 : f32 to vector<8x128xf32>
    %480 = arith.addf %479, %478 : vector<8x128xf32>
    %481 = arith.divf %479, %480 : vector<8x128xf32>
    %482 = vector.extract_strided_slice %475 {offsets = [0, 128], sizes = [8, 128], strides = [1, 1]} : vector<8x512xf32> to vector<8x128xf32>
    %483 = arith.negf %482 : vector<8x128xf32>
    %484 = math.exp %483 : vector<8x128xf32>
    %cst_91 = arith.constant 1.000000e+00 : f32
    %485 = vector.broadcast %cst_91 : f32 to vector<8x128xf32>
    %486 = arith.addf %485, %484 : vector<8x128xf32>
    %487 = arith.divf %485, %486 : vector<8x128xf32>
    %488 = vector.extract_strided_slice %475 {offsets = [0, 256], sizes = [8, 128], strides = [1, 1]} : vector<8x512xf32> to vector<8x128xf32>
    %489 = math.tanh %488 : vector<8x128xf32>
    %490 = vector.extract_strided_slice %475 {offsets = [0, 384], sizes = [8, 128], strides = [1, 1]} : vector<8x512xf32> to vector<8x128xf32>
    %491 = arith.negf %490 : vector<8x128xf32>
    %492 = math.exp %491 : vector<8x128xf32>
    %cst_92 = arith.constant 1.000000e+00 : f32
    %493 = vector.broadcast %cst_92 : f32 to vector<8x128xf32>
    %494 = arith.addf %493, %492 : vector<8x128xf32>
    %495 = arith.divf %493, %494 : vector<8x128xf32>
    %496 = arith.mulf %487, %437 : vector<8x128xf32>
    %497 = arith.mulf %481, %489 : vector<8x128xf32>
    %498 = arith.addf %496, %497 : vector<8x128xf32>
    %499 = math.tanh %498 : vector<8x128xf32>
    %500 = arith.mulf %495, %499 : vector<8x128xf32>
    %c8_i32_93 = arith.constant 8 : i32
    %501 = arith.truncf %500 : vector<8x128xf32> to vector<8x128xbf16>
    %c0_94 = arith.constant 0 : index
    %c0_95 = arith.constant 0 : index
    %502 = vector.load %arg6[%c0_94, %c0_95] : memref<128x128xbf16, #tpu.memory_space<vmem>>, vector<128x128xbf16>
    %cst_96 = arith.constant dense<0.000000e+00> : vector<8x128xf32>
    %503 = tpu.matmul %501, %502, %cst_96 {dimension_numbers = #tpu.dot_dimension_numbers<[1], [0], [0], [1], [0, 0, 1, 1], [], []>} : vector<8x128xbf16>, vector<128x128xbf16>, vector<8x128xf32> -> vector<8x128xf32>
    %c0_97 = arith.constant 0 : index
    %c0_98 = arith.constant 0 : index
    %504 = vector.load %arg7[%c0_97, %c0_98] : memref<1x128xf32, #tpu.memory_space<vmem>>, vector<1x128xf32>
    %505 = vector.broadcast %504 : vector<1x128xf32> to vector<8x128xf32>
    %506 = arith.addf %503, %505 : vector<8x128xf32>
    %cst_99 = arith.constant 0.000000e+00 : f32
    %507 = vector.broadcast %cst_99 : f32 to vector<8x128xf32>
    %508 = arith.maximumf %506, %507 : vector<8x128xf32>
    %509 = arith.truncf %508 : vector<8x128xf32> to vector<8x128xbf16>
    %c0_100 = arith.constant 0 : index
    %c0_101 = arith.constant 0 : index
    %510 = vector.load %arg8[%c0_100, %c0_101] : memref<128x128xbf16, #tpu.memory_space<vmem>>, vector<128x128xbf16>
    %cst_102 = arith.constant dense<0.000000e+00> : vector<8x128xf32>
    %511 = tpu.matmul %509, %510, %cst_102 {dimension_numbers = #tpu.dot_dimension_numbers<[1], [0], [0], [1], [0, 0, 1, 1], [], []>} : vector<8x128xbf16>, vector<128x128xbf16>, vector<8x128xf32> -> vector<8x128xf32>
    %c0_103 = arith.constant 0 : index
    %c0_104 = arith.constant 0 : index
    %512 = vector.load %arg9[%c0_103, %c0_104] : memref<1x128xf32, #tpu.memory_space<vmem>>, vector<1x128xf32>
    %513 = vector.broadcast %512 : vector<1x128xf32> to vector<8x128xf32>
    %514 = arith.addf %511, %513 : vector<8x128xf32>
    %c0_105 = arith.constant 0 : index
    %c0_106 = arith.constant 0 : index
    %515 = vector.load %arg10[%c0_105, %c0_106] : memref<8x128xf32, #tpu.memory_space<vmem>>, vector<8x128xf32>
    tpu.vector_store %arg10[%c0_105, %c0_106], %514 {strides = array<i32>} : memref<8x128xf32, #tpu.memory_space<vmem>>, vector<8x128xf32>,
    return
  }
}

</mosaic_0001>

<llo_original>
// kernel: deep_system_predictor.1
$region0: #{deep_system_predictor.1}
  #allocation0 [shape = 'u32[]', space=smem, size = 0x4, offset = 0x4, fixed_abs, tag = 'smem constant byte address 0x4 - core index']
  #allocation1 [shape = 'u32[144,128]{1,0:T(1,128)}', space=vmem, size = 0x12000, scoped, tag = 'internal scratch']
  #allocation2 [shape = 'f32[64,512]{1,0:T(8,128)}', space=vmem, size = 0x20000, scoped, tag = 'scratch operand']
  %s0 = inlined_call_operand.vmem [shape: bf16[64,4], index: 0, kind: input, shape index: {}]
  %s1 = inlined_call_operand.vmem [shape: bf16[4,512], index: 1, kind: input, shape index: {}]
  %s2 = inlined_call_operand.vmem [shape: bf16[128,512], index: 2, kind: input, shape index: {}]
  %s3 = inlined_call_operand.vmem [shape: f32[1,512], index: 3, kind: input, shape index: {}]
  %s4 = inlined_call_operand.vmem [shape: bf16[256,512], index: 4, kind: input, shape index: {}]
  %s5 = inlined_call_operand.vmem [shape: f32[1,512], index: 5, kind: input, shape index: {}]
  %s6 = inlined_call_operand.vmem [shape: bf16[128,128], index: 6, kind: input, shape index: {}]
  %s7 = inlined_call_operand.vmem [shape: f32[1,128], index: 7, kind: input, shape index: {}]
  %s8 = inlined_call_operand.vmem [shape: bf16[128,128], index: 8, kind: input, shape index: {}]
  %s9 = inlined_call_operand.vmem [shape: f32[1,128], index: 9, kind: input, shape index: {}]
  %s10 = inlined_call_operand.vmem [shape: f32[8,128], index: 10, kind: output, shape index: {}]
  %s11 = sld [smem:[#allocation0]]
  $region50: #{deep_system_predictor.1} parent=0
    _
  %s13 = ssub.s32 1, %s11
  %s14 = scalar_select 0, %s13, %s11
  // Predicated region
  $region2: #{deep_system_predictor.1} parent=0 // pred_check
    _
  $region3: #{deep_system_predictor.1} parent=0 // pred_check_branch
    %16 = sbr.rel (0) target = $region5
  $region4: #{deep_system_predictor.1} parent=0 // pred_region
    _
  $region5: #{deep_system_predictor.1} parent=0 // pred_fallthru
    _
  // Predicated region
  $region6: #{deep_system_predictor.1} parent=0 // pred_check
    _
  $region7: #{deep_system_predictor.1} parent=0 // pred_check_branch
    %18 = sbr.rel (0) target = $region9
  $region8: #{deep_system_predictor.1} parent=0 // pred_region
    _
  $region9: #{deep_system_predictor.1} parent=0 // pred_fallthru
    _
  // Predicated region
  $region10: #{deep_system_predictor.1} parent=0 // pred_check
    _
  $region11: #{deep_system_predictor.1} parent=0 // pred_check_branch
    %20 = sbr.rel (0) target = $region13
  $region12: #{deep_system_predictor.1} parent=0 // pred_region
    _
  $region13: #{deep_system_predictor.1} parent=0 // pred_fallthru
    _
  // Predicated region
  $region14: #{deep_system_predictor.1} parent=0 // pred_check
    _
  $region15: #{deep_system_predictor.1} parent=0 // pred_check_branch
    %22 = sbr.rel (0) target = $region17
  $region16: #{deep_system_predictor.1} parent=0 // pred_region
    _
  $region17: #{deep_system_predictor.1} parent=0 // pred_fallthru
    _
  // Predicated region
  $region18: #{deep_system_predictor.1} parent=0 // pred_check
    _
  $region19: #{deep_system_predictor.1} parent=0 // pred_check_branch
    %24 = sbr.rel (0) target = $region21
  $region20: #{deep_system_predictor.1} parent=0 // pred_region
    _
  $region21: #{deep_system_predictor.1} parent=0 // pred_fallthru
    _
  // Predicated region
  $region22: #{deep_system_predictor.1} parent=0 // pred_check
    _
  $region23: #{deep_system_predictor.1} parent=0 // pred_check_branch
    %26 = sbr.rel (0) target = $region25
  $region24: #{deep_system_predictor.1} parent=0 // pred_region
    _
  $region25: #{deep_system_predictor.1} parent=0 // pred_fallthru
    _
  // Predicated region
  $region26: #{deep_system_predictor.1} parent=0 // pred_check
    _
  $region27: #{deep_system_predictor.1} parent=0 // pred_check_branch
    %28 = sbr.rel (0) target = $region29
  $region28: #{deep_system_predictor.1} parent=0 // pred_region
    _
  $region29: #{deep_system_predictor.1} parent=0 // pred_fallthru
    _
  // Predicated region
  $region30: #{deep_system_predictor.1} parent=0 // pred_check
    _
  $region31: #{deep_system_predictor.1} parent=0 // pred_check_branch
    %30 = sbr.rel (0) target = $region33
  $region32: #{deep_system_predictor.1} parent=0 // pred_region
    _
  $region33: #{deep_system_predictor.1} parent=0 // pred_fallthru
    _
  // Predicated region
  $region34: #{deep_system_predictor.1} parent=0 // pred_check
    _
  $region35: #{deep_system_predictor.1} parent=0 // pred_check_branch
    %32 = sbr.rel (0) target = $region37
  $region36: #{deep_system_predictor.1} parent=0 // pred_region
    _
  $region37: #{deep_system_predictor.1} parent=0 // pred_fallthru
    _
  // Predicated region
  $region38: #{deep_system_predictor.1} parent=0 // pred_check
    _
  $region39: #{deep_system_predictor.1} parent=0 // pred_check_branch
    %34 = sbr.rel (0) target = $region41
  $region40: #{deep_system_predictor.1} parent=0 // pred_region
    _
  $region41: #{deep_system_predictor.1} parent=0 // pred_fallthru
    _
  %v36 = vld [vmem:[%s0] sm:$0xf]
  %v37 = vld [vmem:[%s0 + $0x4] sm:$0xf]
  %v38 = vld [vmem:[%s0 + $0x8] sm:$0xf]
  %v39 = vld [vmem:[%s0 + $0xc] sm:$0xf]
  %v40 = vld [vmem:[%s0 + $0x10] sm:$0xf]
  %v41 = vld [vmem:[%s0 + $0x14] sm:$0xf]
  %v42 = vld [vmem:[%s0 + $0x18] sm:$0xf]
  %v43 = vld [vmem:[%s0 + $0x1c] sm:$0xf]
  %v44 = vld [vmem:[%s1] sm:$0xff]
  %v45 = vld [vmem:[%s3] sm:$0xf]
  %v47 = vlaneseq
  %v48 = vshrl.u32 %v47, 7
  %v49 = vsub.s32 0, %v48
  %v50 = vrot.slane %v45, %v49
  %v51 = vlaneseq
  %v52 = vshrl.u32 %v51, 7
  %v53 = vsub.s32 1, %v52
  %v54 = vrot.slane %v45, %v53
  %v55 = vlaneseq
  %v56 = vshrl.u32 %v55, 7
  %v57 = vsub.s32 2, %v56
  %v58 = vrot.slane %v45, %v57
  %v59 = vlaneseq
  %v60 = vshrl.u32 %v59, 7
  %v61 = vsub.s32 3, %v60
  %v62 = vrot.slane %v45, %v61
  %v75 = vunpack.c.l.b16 %v36
  %v76 = vunpack.c.l.b16 %v37
  %v77 = vunpack.c.l.b16 %v38
  %v78 = vunpack.c.l.b16 %v39
  %v79 = vunpack.c.l.b16 %v40
  %v80 = vunpack.c.l.b16 %v41
  %v81 = vunpack.c.l.b16 %v42
  %v82 = vunpack.c.l.b16 %v43
  %v83 = vpack.c.b16 %v76, %v75
  %v84 = vpack.c.b16 %v78, %v77
  %v85 = vpack.c.b16 %v80, %v79
  %v86 = vpack.c.b16 %v82, %v81
  %v88 = vcombine.high %v44, %v44
  %v90 = vunpack.c.l.s4 1983009808
  %v91 = vunpack.c.0.s8 %v90
  %v92 = vlaneseq
  %v93 = vshrl.u32 %v92, 7
  %v94 = vsub.s32 %v91, %v93
  %v95 = vrot.slane %v44, %v94
  %v97 = vunpack.c.l.s4 1983009808
  %v98 = vunpack.c.0.s8 %v97
  %v99 = vlaneseq
  %v100 = vshrl.u32 %v99, 7
  %v101 = vsub.s32 %v98, %v100
  %v102 = vrot.slane %v88, %v101
  %v103 = vcombine.high %v95, %v95
  %v104 = vcombine.high %v102, %v102
  %vm105 = vcmask 31744
  %v107 = vsel %vm105, %v83, 0
  %v110 = vsel %vm105, %v84, 0
  %v113 = vsel %vm105, %v85, 0
  %v116 = vsel %vm105, %v86, 0
  %vm118 = vcmask 1041408
  %v120 = vsel %vm118, %v95, 0
  %v123 = vsel %vm118, %v103, 0
  %v126 = vsel %vm118, %v102, 0
  %v129 = vsel %vm118, %v104, 0
  %131 = vmatprep.subr.bf16.mxu0 %v123
  %132 = vmatpush1.bf16.msra.mxu0 %v120
  %133 = vmatprep.subr.bf16.mxu0 0
  %134 = vmatpush1.bf16.msra.mxu0 0
  %135 = vmatprep.subr.bf16.mxu0 0
  %136 = vmatpush1.bf16.msra.mxu0 0
  %137 = vmatprep.subr.bf16.mxu0 0
  %138 = vmatpush1.bf16.msra.mxu0 0
  %139 = vmatprep.subr.bf16.mxu0 0
  %140 = vmatpush1.bf16.msra.mxu0 0
  %141 = vmatprep.subr.bf16.mxu0 0
  %142 = vmatpush1.bf16.msra.mxu0 0
  %143 = vmatprep.subr.bf16.mxu0 0
  %144 = vmatpush1.bf16.msra.mxu0 0
  %145 = vmatprep.subr.bf16.mxu0 0
  %146 = vmatpush1.bf16.msra.mxu0 0
  %147 = vmatprep.subr.bf16.mxu0 0
  %148 = vmatpush1.bf16.msra.mxu0 0
  %149 = vmatprep.subr.bf16.mxu0 0
  %150 = vmatpush1.bf16.msra.mxu0 0
  %151 = vmatprep.subr.bf16.mxu0 0
  %152 = vmatpush1.bf16.msra.mxu0 0
  %153 = vmatprep.subr.bf16.mxu0 0
  %154 = vmatpush1.bf16.msra.mxu0 0
  %155 = vmatprep.subr.bf16.mxu0 0
  %156 = vmatpush1.bf16.msra.mxu0 0
  %157 = vmatprep.subr.bf16.mxu0 0
  %158 = vmatpush1.bf16.msra.mxu0 0
  %159 = vmatprep.subr.bf16.mxu0 0
  %160 = vmatpush1.bf16.msra.mxu0 0
  %161 = vmatprep.subr.bf16.mxu0 0
  %162 = vmatpush1.bf16.msra.mxu0 0
  %163 = vmatprep.mubr.bf16.mxu0 0
  %164 = vmatmul.mubr.bf16.gmra.mrb[0].mxu0 %v107
  %v165 = vpop.f32.mrb[0].mxu0
  %v166 = vadd.f32 %v50, %v165
  %v167 = vpop.f32.mrb[0].mxu0
  %v168 = vadd.f32 %v54, %v167
  %v169 = vpop.f32.mrb[0].mxu0
  %v170 = vadd.f32 %v50, %v169
  %v171 = vpop.f32.mrb[0].mxu0
  %v172 = vadd.f32 %v54, %v171
  %173 = vmatprep.mubr.bf16.mxu0 0
  %174 = vmatmul.mubr.bf16.gmra.mrb[0].mxu0 %v110
  %v175 = vpop.f32.mrb[0].mxu0
  %v176 = vadd.f32 %v50, %v175
  %v177 = vpop.f32.mrb[0].mxu0
  %v178 = vadd.f32 %v54, %v177
  %v179 = vpop.f32.mrb[0].mxu0
  %v180 = vadd.f32 %v50, %v179
  %v181 = vpop.f32.mrb[0].mxu0
  %v182 = vadd.f32 %v54, %v181
  %183 = vmatprep.mubr.bf16.mxu0 0
  %184 = vmatmul.mubr.bf16.gmra.mrb[0].mxu0 %v113
  %v185 = vpop.f32.mrb[0].mxu0
  %v186 = vadd.f32 %v50, %v185
  %v187 = vpop.f32.mrb[0].mxu0
  %v188 = vadd.f32 %v54, %v187
  %v189 = vpop.f32.mrb[0].mxu0
  %v190 = vadd.f32 %v50, %v189
  %v191 = vpop.f32.mrb[0].mxu0
  %v192 = vadd.f32 %v54, %v191
  %193 = vmatprep.mubr.bf16.mxu0 0
  %194 = vmatmul.mubr.bf16.gmra.mrb[0].mxu0 %v116
  %v195 = vpop.f32.mrb[0].mxu0
  %v196 = vadd.f32 %v50, %v195
  %v197 = vpop.f32.mrb[0].mxu0
  %v198 = vadd.f32 %v54, %v197
  %v199 = vpop.f32.mrb[0].mxu0
  %v200 = vadd.f32 %v50, %v199
  %v201 = vpop.f32.mrb[0].mxu0
  %v202 = vadd.f32 %v54, %v201
  %203 = vdwg.mxu0
  %204 = vmatprep.subr.bf16.mxu0 %v129
  %205 = vmatpush1.bf16.msra.mxu0 %v126
  %206 = vmatprep.subr.bf16.mxu0 0
  %207 = vmatpush1.bf16.msra.mxu0 0
  %208 = vmatprep.subr.bf16.mxu0 0
  %209 = vmatpush1.bf16.msra.mxu0 0
  %210 = vmatprep.subr.bf16.mxu0 0
  %211 = vmatpush1.bf16.msra.mxu0 0
  %212 = vmatprep.subr.bf16.mxu0 0
  %213 = vmatpush1.bf16.msra.mxu0 0
  %214 = vmatprep.subr.bf16.mxu0 0
  %215 = vmatpush1.bf16.msra.mxu0 0
  %216 = vmatprep.subr.bf16.mxu0 0
  %217 = vmatpush1.bf16.msra.mxu0 0
  %218 = vmatprep.subr.bf16.mxu0 0
  %219 = vmatpush1.bf16.msra.mxu0 0
  %220 = vmatprep.subr.bf16.mxu0 0
  %221 = vmatpush1.bf16.msra.mxu0 0
  %222 = vmatprep.subr.bf16.mxu0 0
  %223 = vmatpush1.bf16.msra.mxu0 0
  %224 = vmatprep.subr.bf16.mxu0 0
  %225 = vmatpush1.bf16.msra.mxu0 0
  %226 = vmatprep.subr.bf16.mxu0 0
  %227 = vmatpush1.bf16.msra.mxu0 0
  %228 = vmatprep.subr.bf16.mxu0 0
  %229 = vmatpush1.bf16.msra.mxu0 0
  %230 = vmatprep.subr.bf16.mxu0 0
  %231 = vmatpush1.bf16.msra.mxu0 0
  %232 = vmatprep.subr.bf16.mxu0 0
  %233 = vmatpush1.bf16.msra.mxu0 0
  %234 = vmatprep.subr.bf16.mxu0 0
  %235 = vmatpush1.bf16.msra.mxu0 0
  %236 = vmatprep.mubr.bf16.mxu0 0
  %237 = vmatmul.mubr.bf16.gmra.mrb[0].mxu0 %v107
  %v238 = vpop.f32.mrb[0].mxu0
  %v239 = vadd.f32 %v58, %v238
  %v240 = vpop.f32.mrb[0].mxu0
  %v241 = vadd.f32 %v62, %v240
  %v242 = vpop.f32.mrb[0].mxu0
  %v243 = vadd.f32 %v58, %v242
  %v244 = vpop.f32.mrb[0].mxu0
  %v245 = vadd.f32 %v62, %v244
  %246 = vmatprep.mubr.bf16.mxu0 0
  %247 = vmatmul.mubr.bf16.gmra.mrb[0].mxu0 %v110
  %v248 = vpop.f32.mrb[0].mxu0
  %v249 = vadd.f32 %v58, %v248
  %v250 = vpop.f32.mrb[0].mxu0
  %v251 = vadd.f32 %v62, %v250
  %v252 = vpop.f32.mrb[0].mxu0
  %v253 = vadd.f32 %v58, %v252
  %v254 = vpop.f32.mrb[0].mxu0
  %v255 = vadd.f32 %v62, %v254
  %256 = vmatprep.mubr.bf16.mxu0 0
  %257 = vmatmul.mubr.bf16.gmra.mrb[0].mxu0 %v113
  %v258 = vpop.f32.mrb[0].mxu0
  %v259 = vadd.f32 %v58, %v258
  %v260 = vpop.f32.mrb[0].mxu0
  %v261 = vadd.f32 %v62, %v260
  %v262 = vpop.f32.mrb[0].mxu0
  %v263 = vadd.f32 %v58, %v262
  %v264 = vpop.f32.mrb[0].mxu0
  %v265 = vadd.f32 %v62, %v264
  %266 = vmatprep.mubr.bf16.mxu0 0
  %267 = vmatmul.mubr.bf16.gmra.mrb[0].mxu0 %v116
  %v268 = vpop.f32.mrb[0].mxu0
  %v269 = vadd.f32 %v58, %v268
  %v270 = vpop.f32.mrb[0].mxu0
  %v271 = vadd.f32 %v62, %v270
  %v272 = vpop.f32.mrb[0].mxu0
  %v273 = vadd.f32 %v58, %v272
  %v274 = vpop.f32.mrb[0].mxu0
  %v275 = vadd.f32 %v62, %v274
  %276 = vdwg.mxu0
  %277 = vst [vmem:[#allocation2] sm:$0xff] %v166
  %278 = vst [vmem:[#allocation2 + $0x8] sm:$0xff] %v168
  %279 = vst [vmem:[#allocation2 + $0x10] sm:$0xff] %v239
  %280 = vst [vmem:[#allocation2 + $0x18] sm:$0xff] %v241
  %281 = vst [vmem:[#allocation2 + $0x20] sm:$0xff] %v170
  %282 = vst [vmem:[#allocation2 + $0x28] sm:$0xff] %v172
  %283 = vst [vmem:[#allocation2 + $0x30] sm:$0xff] %v243
  %284 = vst [vmem:[#allocation2 + $0x38] sm:$0xff] %v245
  %285 = vst [vmem:[#allocation2 + $0x40] sm:$0xff] %v176
  %286 = vst [vmem:[#allocation2 + $0x48] sm:$0xff] %v178
  %287 = vst [vmem:[#allocation2 + $0x50] sm:$0xff] %v249
  %288 = vst [vmem:[#allocation2 + $0x58] sm:$0xff] %v251
  %289 = vst [vmem:[#allocation2 + $0x60] sm:$0xff] %v180
  %290 = vst [vmem:[#allocation2 + $0x68] sm:$0xff] %v182
  %291 = vst [vmem:[#allocation2 + $0x70] sm:$0xff] %v253
  %292 = vst [vmem:[#allocation2 + $0x78] sm:$0xff] %v255
  %293 = vst [vmem:[#allocation2 + $0x80] sm:$0xff] %v186
  %294 = vst [vmem:[#allocation2 + $0x88] sm:$0xff] %v188
  %295 = vst [vmem:[#allocation2 + $0x90] sm:$0xff] %v259
  %296 = vst [vmem:[#allocation2 + $0x98] sm:$0xff] %v261
  %297 = vst [vmem:[#allocation2 + $0xa0] sm:$0xff] %v190
  %298 = vst [vmem:[#allocation2 + $0xa8] sm:$0xff] %v192
  %299 = vst [vmem:[#allocation2 + $0xb0] sm:$0xff] %v263
  %300 = vst [vmem:[#allocation2 + $0xb8] sm:$0xff] %v265
  %301 = vst [vmem:[#allocation2 + $0xc0] sm:$0xff] %v196
  %302 = vst [vmem:[#allocation2 + $0xc8] sm:$0xff] %v198
  %303 = vst [vmem:[#allocation2 + $0xd0] sm:$0xff] %v269
  %304 = vst [vmem:[#allocation2 + $0xd8] sm:$0xff] %v271
  %305 = vst [vmem:[#allocation2 + $0xe0] sm:$0xff] %v200
  %306 = vst [vmem:[#allocation2 + $0xe8] sm:$0xff] %v202
  %307 = vst [vmem:[#allocation2 + $0xf0] sm:$0xff] %v273
  %308 = vst [vmem:[#allocation2 + $0xf8] sm:$0xff] %v275
  %v309 = vld [vmem:[%s2] sm:$0xff]
  %v310 = vld [vmem:[%s2 + $0x8] sm:$0xff]
  %v311 = vld [vmem:[%s2 + $0x10] sm:$0xff]
  %v312 = vld [vmem:[%s2 + $0x18] sm:$0xff]
  %v313 = vld [vmem:[%s2 + $0x20] sm:$0xff]
  %v314 = vld [vmem:[%s2 + $0x28] sm:$0xff]
  %v315 = vld [vmem:[%s2 + $0x30] sm:$0xff]
  %v316 = vld [vmem:[%s2 + $0x38] sm:$0xff]
  %v317 = vld [vmem:[%s2 + $0x40] sm:$0xff]
  %v318 = vld [vmem:[%s2 + $0x48] sm:$0xff]
  %v319 = vld [vmem:[%s2 + $0x50] sm:$0xff]
  %v320 = vld [vmem:[%s2 + $0x58] sm:$0xff]
  %v321 = vld [vmem:[%s2 + $0x60] sm:$0xff]
  %v322 = vld [vmem:[%s2 + $0x68] sm:$0xff]
  %v323 = vld [vmem:[%s2 + $0x70] sm:$0xff]
  %v324 = vld [vmem:[%s2 + $0x78] sm:$0xff]
  %v325 = vld [vmem:[%s2 + $0x80] sm:$0xff]
  %v326 = vld [vmem:[%s2 + $0x88] sm:$0xff]
  %v327 = vld [vmem:[%s2 + $0x90] sm:$0xff]
  %v328 = vld [vmem:[%s2 + $0x98] sm:$0xff]
  %v329 = vld [vmem:[%s2 + $0xa0] sm:$0xff]
  %v330 = vld [vmem:[%s2 + $0xa8] sm:$0xff]
  %v331 = vld [vmem:[%s2 + $0xb0] sm:$0xff]
  %v332 = vld [vmem:[%s2 + $0xb8] sm:$0xff]
  %v333 = vld [vmem:[%s2 + $0xc0] sm:$0xff]
  %v334 = vld [vmem:[%s2 + $0xc8] sm:$0xff]
  %v335 = vld [vmem:[%s2 + $0xd0] sm:$0xff]
  %v336 = vld [vmem:[%s2 + $0xd8] sm:$0xff]
  %v337 = vld [vmem:[%s2 + $0xe0] sm:$0xff]
  %v338 = vld [vmem:[%s2 + $0xe8] sm:$0xff]
  %v339 = vld [vmem:[%s2 + $0xf0] sm:$0xff]
  %v340 = vld [vmem:[%s2 + $0xf8] sm:$0xff]
  %v341 = vld [vmem:[%s4] sm:$0xff]
  %v342 = vld [vmem:[%s4 + $0x8] sm:$0xff]
  %v343 = vld [vmem:[%s4 + $0x10] sm:$0xff]
  %v344 = vld [vmem:[%s4 + $0x18] sm:$0xff]
  %v345 = vld [vmem:[%s4 + $0x20] sm:$0xff]
  %v346 = vld [vmem:[%s4 + $0x28] sm:$0xff]
  %v347 = vld [vmem:[%s4 + $0x30] sm:$0xff]
  %v348 = vld [vmem:[%s4 + $0x38] sm:$0xff]
  %v349 = vld [vmem:[%s4 + $0x40] sm:$0xff]
  %v350 = vld [vmem:[%s4 + $0x48] sm:$0xff]
  %v351 = vld [vmem:[%s4 + $0x50] sm:$0xff]
  %v352 = vld [vmem:[%s4 + $0x58] sm:$0xff]
  %v353 = vld [vmem:[%s4 + $0x60] sm:$0xff]
  %v354 = vld [vmem:[%s4 + $0x68] sm:$0xff]
  %v355 = vld [vmem:[%s4 + $0x70] sm:$0xff]
  %v356 = vld [vmem:[%s4 + $0x78] sm:$0xff]
  %v357 = vld [vmem:[%s4 + $0x80] sm:$0xff]
  %v358 = vld [vmem:[%s4 + $0x88] sm:$0xff]
  %v359 = vld [vmem:[%s4 + $0x90] sm:$0xff]
  %v360 = vld [vmem:[%s4 + $0x98] sm:$0xff]
  %v361 = vld [vmem:[%s4 + $0xa0] sm:$0xff]
  %v362 = vld [vmem:[%s4 + $0xa8] sm:$0xff]
  %v363 = vld [vmem:[%s4 + $0xb0] sm:$0xff]
  %v364 = vld [vmem:[%s4 + $0xb8] sm:$0xff]
  %v365 = vld [vmem:[%s4 + $0xc0] sm:$0xff]
  %v366 = vld [vmem:[%s4 + $0xc8] sm:$0xff]
  %v367 = vld [vmem:[%s4 + $0xd0] sm:$0xff]
  %v368 = vld [vmem:[%s4 + $0xd8] sm:$0xff]
  %v369 = vld [vmem:[%s4 + $0xe0] sm:$0xff]
  %v370 = vld [vmem:[%s4 + $0xe8] sm:$0xff]
  %v371 = vld [vmem:[%s4 + $0xf0] sm:$0xff]
  %v372 = vld [vmem:[%s4 + $0xf8] sm:$0xff]
  %v373 = vld [vmem:[%s4 + $0x100] sm:$0xff]
  %v374 = vld [vmem:[%s4 + $0x108] sm:$0xff]
  %v375 = vld [vmem:[%s4 + $0x110] sm:$0xff]
  %v376 = vld [vmem:[%s4 + $0x118] sm:$0xff]
  %v377 = vld [vmem:[%s4 + $0x120] sm:$0xff]
  %v378 = vld [vmem:[%s4 + $0x128] sm:$0xff]
  %v379 = vld [vmem:[%s4 + $0x130] sm:$0xff]
  %v380 = vld [vmem:[%s4 + $0x138] sm:$0xff]
  %v381 = vld [vmem:[%s4 + $0x140] sm:$0xff]
  %v382 = vld [vmem:[%s4 + $0x148] sm:$0xff]
  %v383 = vld [vmem:[%s4 + $0x150] sm:$0xff]
  %v384 = vld [vmem:[%s4 + $0x158] sm:$0xff]
  %v385 = vld [vmem:[%s4 + $0x160] sm:$0xff]
  %v386 = vld [vmem:[%s4 + $0x168] sm:$0xff]
  %v387 = vld [vmem:[%s4 + $0x170] sm:$0xff]
  %v388 = vld [vmem:[%s4 + $0x178] sm:$0xff]
  %v389 = vld [vmem:[%s4 + $0x180] sm:$0xff]
  %v390 = vld [vmem:[%s4 + $0x188] sm:$0xff]
  %v391 = vld [vmem:[%s4 + $0x190] sm:$0xff]
  %v392 = vld [vmem:[%s4 + $0x198] sm:$0xff]
  %v393 = vld [vmem:[%s4 + $0x1a0] sm:$0xff]
  %v394 = vld [vmem:[%s4 + $0x1a8] sm:$0xff]
  %v395 = vld [vmem:[%s4 + $0x1b0] sm:$0xff]
  %v396 = vld [vmem:[%s4 + $0x1b8] sm:$0xff]
  %v397 = vld [vmem:[%s4 + $0x1c0] sm:$0xff]
  %v398 = vld [vmem:[%s4 + $0x1c8] sm:$0xff]
  %v399 = vld [vmem:[%s4 + $0x1d0] sm:$0xff]
  %v400 = vld [vmem:[%s4 + $0x1d8] sm:$0xff]
  %v401 = vld [vmem:[%s4 + $0x1e0] sm:$0xff]
  %v402 = vld [vmem:[%s4 + $0x1e8] sm:$0xff]
  %v403 = vld [vmem:[%s4 + $0x1f0] sm:$0xff]
  %v404 = vld [vmem:[%s4 + $0x1f8] sm:$0xff]
  %v405 = vld [vmem:[%s5] sm:$0xf]
  %v407 = vlaneseq
  %v408 = vshrl.u32 %v407, 7
  %v409 = vsub.s32 0, %v408
  %v410 = vrot.slane %v405, %v409
  %v411 = vlaneseq
  %v412 = vshrl.u32 %v411, 7
  %v413 = vsub.s32 1, %v412
  %v414 = vrot.slane %v405, %v413
  %v415 = vlaneseq
  %v416 = vshrl.u32 %v415, 7
  %v417 = vsub.s32 2, %v416
  %v418 = vrot.slane %v405, %v417
  %v419 = vlaneseq
  %v420 = vshrl.u32 %v419, 7
  %v421 = vsub.s32 3, %v420
  %v422 = vrot.slane %v405, %v421
  %s427 = smul.u32 0, 4
  %s428 = smul.addr %s427, 8
  %s429 = scalar_lea.vmem [#allocation2], %s428
  %v430 = vld [vmem:[%s429] sm:$0xff]
  %v431 = vld [vmem:[%s429 + $0x8] sm:$0xff]
  %v432 = vld [vmem:[%s429 + $0x10] sm:$0xff]
  %v433 = vld [vmem:[%s429 + $0x18] sm:$0xff]
  %v466 = vunpack.c.l.b16 %v309
  %v467 = vunpack.c.h.b16 %v309
  %v468 = vunpack.c.l.b16 %v310
  %v469 = vunpack.c.h.b16 %v310
  %v470 = vunpack.c.l.b16 %v311
  %v471 = vunpack.c.h.b16 %v311
  %v472 = vunpack.c.l.b16 %v312
  %v473 = vunpack.c.h.b16 %v312
  %v474 = vunpack.c.l.b16 %v313
  %v475 = vunpack.c.h.b16 %v313
  %v476 = vunpack.c.l.b16 %v314
  %v477 = vunpack.c.h.b16 %v314
  %v478 = vunpack.c.l.b16 %v315
  %v479 = vunpack.c.h.b16 %v315
  %v480 = vunpack.c.l.b16 %v316
  %v481 = vunpack.c.h.b16 %v316
  %v482 = vunpack.c.l.b16 %v317
  %v483 = vunpack.c.h.b16 %v317
  %v484 = vunpack.c.l.b16 %v318
  %v485 = vunpack.c.h.b16 %v318
  %v486 = vunpack.c.l.b16 %v319
  %v487 = vunpack.c.h.b16 %v319
  %v488 = vunpack.c.l.b16 %v320
  %v489 = vunpack.c.h.b16 %v320
  %v490 = vunpack.c.l.b16 %v321
  %v491 = vunpack.c.h.b16 %v321
  %v492 = vunpack.c.l.b16 %v322
  %v493 = vunpack.c.h.b16 %v322
  %v494 = vunpack.c.l.b16 %v323
  %v495 = vunpack.c.h.b16 %v323
  %v496 = vunpack.c.l.b16 %v324
  %v497 = vunpack.c.h.b16 %v324
  %v498 = vunpack.c.l.b16 %v325
  %v499 = vunpack.c.h.b16 %v325
  %v500 = vunpack.c.l.b16 %v326
  %v501 = vunpack.c.h.b16 %v326
  %v502 = vunpack.c.l.b16 %v327
  %v503 = vunpack.c.h.b16 %v327
  %v504 = vunpack.c.l.b16 %v328
  %v505 = vunpack.c.h.b16 %v328
  %v506 = vunpack.c.l.b16 %v329
  %v507 = vunpack.c.h.b16 %v329
  %v508 = vunpack.c.l.b16 %v330
  %v509 = vunpack.c.h.b16 %v330
  %v510 = vunpack.c.l.b16 %v331
  %v511 = vunpack.c.h.b16 %v331
  %v512 = vunpack.c.l.b16 %v332
  %v513 = vunpack.c.h.b16 %v332
  %v514 = vunpack.c.l.b16 %v333
  %v515 = vunpack.c.h.b16 %v333
  %v516 = vunpack.c.l.b16 %v334
  %v517 = vunpack.c.h.b16 %v334
  %v518 = vunpack.c.l.b16 %v335
  %v519 = vunpack.c.h.b16 %v335
  %v520 = vunpack.c.l.b16 %v336
  %v521 = vunpack.c.h.b16 %v336
  %v522 = vunpack.c.l.b16 %v337
  %v523 = vunpack.c.h.b16 %v337
  %v524 = vunpack.c.l.b16 %v338
  %v525 = vunpack.c.h.b16 %v338
  %v526 = vunpack.c.l.b16 %v339
  %v527 = vunpack.c.h.b16 %v339
  %v528 = vunpack.c.l.b16 %v340
  %v529 = vunpack.c.h.b16 %v340
  %v530 = vpack.c.b16 %v470, %v466
  %v531 = vpack.c.b16 %v471, %v467
  %v532 = vpack.c.b16 %v472, %v468
  %v533 = vpack.c.b16 %v473, %v469
  %v534 = vpack.c.b16 %v478, %v474
  %v535 = vpack.c.b16 %v479, %v475
  %v536 = vpack.c.b16 %v480, %v476
  %v537 = vpack.c.b16 %v481, %v477
  %v538 = vpack.c.b16 %v486, %v482
  %v539 = vpack.c.b16 %v487, %v483
  %v540 = vpack.c.b16 %v488, %v484
  %v541 = vpack.c.b16 %v489, %v485
  %v542 = vpack.c.b16 %v494, %v490
  %v543 = vpack.c.b16 %v495, %v491
  %v544 = vpack.c.b16 %v496, %v492
  %v545 = vpack.c.b16 %v497, %v493
  %v546 = vpack.c.b16 %v502, %v498
  %v547 = vpack.c.b16 %v503, %v499
  %v548 = vpack.c.b16 %v504, %v500
  %v549 = vpack.c.b16 %v505, %v501
  %v550 = vpack.c.b16 %v510, %v506
  %v551 = vpack.c.b16 %v511, %v507
  %v552 = vpack.c.b16 %v512, %v508
  %v553 = vpack.c.b16 %v513, %v509
  %v554 = vpack.c.b16 %v518, %v514
  %v555 = vpack.c.b16 %v519, %v515
  %v556 = vpack.c.b16 %v520, %v516
  %v557 = vpack.c.b16 %v521, %v517
  %v558 = vpack.c.b16 %v526, %v522
  %v559 = vpack.c.b16 %v527, %v523
  %v560 = vpack.c.b16 %v528, %v524
  %v561 = vpack.c.b16 %v529, %v525
  %594 = vmatprep.subr.bf16.mxu0 %v531
  %595 = vmatpush1.bf16.msra.mxu0 %v530
  %596 = vmatprep.subr.bf16.mxu0 %v535
  %597 = vmatpush1.bf16.msra.mxu0 %v534
  %598 = vmatprep.subr.bf16.mxu0 %v539
  %599 = vmatpush1.bf16.msra.mxu0 %v538
  %600 = vmatprep.subr.bf16.mxu0 %v543
  %601 = vmatpush1.bf16.msra.mxu0 %v542
  %602 = vmatprep.subr.bf16.mxu0 %v547
  %603 = vmatpush1.bf16.msra.mxu0 %v546
  %604 = vmatprep.subr.bf16.mxu0 %v551
  %605 = vmatpush1.bf16.msra.mxu0 %v550
  %606 = vmatprep.subr.bf16.mxu0 %v555
  %607 = vmatpush1.bf16.msra.mxu0 %v554
  %608 = vmatprep.subr.bf16.mxu0 %v559
  %609 = vmatpush1.bf16.msra.mxu0 %v558
  %610 = vmatprep.subr.bf16.mxu0 0
  %611 = vmatpush1.bf16.msra.mxu0 0
  %612 = vmatprep.subr.bf16.mxu0 0
  %613 = vmatpush1.bf16.msra.mxu0 0
  %614 = vmatprep.subr.bf16.mxu0 0
  %615 = vmatpush1.bf16.msra.mxu0 0
  %616 = vmatprep.subr.bf16.mxu0 0
  %617 = vmatpush1.bf16.msra.mxu0 0
  %618 = vmatprep.subr.bf16.mxu0 0
  %619 = vmatpush1.bf16.msra.mxu0 0
  %620 = vmatprep.subr.bf16.mxu0 0
  %621 = vmatpush1.bf16.msra.mxu0 0
  %622 = vmatprep.subr.bf16.mxu0 0
  %623 = vmatpush1.bf16.msra.mxu0 0
  %624 = vmatprep.subr.bf16.mxu0 0
  %625 = vmatpush1.bf16.msra.mxu0 0
  %626 = vmatprep.mubr.bf16.mxu0 0
  %627 = vmatmul.mubr.bf16.gmra.mrb[0].mxu0 0
  %v628 = vpop.f32.mrb[0].mxu0
  %v629 = vadd.f32 0.0, %v628
  %v630 = vpop.f32.mrb[0].mxu0
  %v631 = vadd.f32 0.0, %v630
  %v632 = vpop.f32.mrb[0].mxu0
  %v633 = vpop.f32.mrb[0].mxu0
  %634 = vdwg.mxu0
  %635 = vmatprep.subr.bf16.mxu0 %v533
  %636 = vmatpush1.bf16.msra.mxu0 %v532
  %637 = vmatprep.subr.bf16.mxu0 %v537
  %638 = vmatpush1.bf16.msra.mxu0 %v536
  %639 = vmatprep.subr.bf16.mxu0 %v541
  %640 = vmatpush1.bf16.msra.mxu0 %v540
  %641 = vmatprep.subr.bf16.mxu0 %v545
  %642 = vmatpush1.bf16.msra.mxu0 %v544
  %643 = vmatprep.subr.bf16.mxu0 %v549
  %644 = vmatpush1.bf16.msra.mxu0 %v548
  %645 = vmatprep.subr.bf16.mxu0 %v553
  %646 = vmatpush1.bf16.msra.mxu0 %v552
  %647 = vmatprep.subr.bf16.mxu0 %v557
  %648 = vmatpush1.bf16.msra.mxu0 %v556
  %649 = vmatprep.subr.bf16.mxu0 %v561
  %650 = vmatpush1.bf16.msra.mxu0 %v560
  %651 = vmatprep.subr.bf16.mxu0 0
  %652 = vmatpush1.bf16.msra.mxu0 0
  %653 = vmatprep.subr.bf16.mxu0 0
  %654 = vmatpush1.bf16.msra.mxu0 0
  %655 = vmatprep.subr.bf16.mxu0 0
  %656 = vmatpush1.bf16.msra.mxu0 0
  %657 = vmatprep.subr.bf16.mxu0 0
  %658 = vmatpush1.bf16.msra.mxu0 0
  %659 = vmatprep.subr.bf16.mxu0 0
  %660 = vmatpush1.bf16.msra.mxu0 0
  %661 = vmatprep.subr.bf16.mxu0 0
  %662 = vmatpush1.bf16.msra.mxu0 0
  %663 = vmatprep.subr.bf16.mxu0 0
  %664 = vmatpush1.bf16.msra.mxu0 0
  %665 = vmatprep.subr.bf16.mxu0 0
  %666 = vmatpush1.bf16.msra.mxu0 0
  %667 = vmatprep.mubr.bf16.mxu0 0
  %668 = vmatmul.mubr.bf16.gmra.mrb[0].mxu0 0
  %v669 = vpop.f32.mrb[0].mxu0
  %v670 = vadd.f32 0.0, %v669
  %v671 = vpop.f32.mrb[0].mxu0
  %v672 = vadd.f32 0.0, %v671
  %v673 = vpop.f32.mrb[0].mxu0
  %v674 = vpop.f32.mrb[0].mxu0
  %675 = vdwg.mxu0
  %v676 = vadd.f32 %v430, %v629
  %v677 = vadd.f32 %v431, %v631
  %v678 = vadd.f32 %v432, %v670
  %v679 = vadd.f32 %v433, %v672
  %v680 = vxor.u32 %v676, 2147483648
  %v681 = vmul.f32 %v680, 1.442695
  %v682 = vpow.pop %v681
  %v683 = vadd.f32 %v682, 1.0
  %v684 = vrcp.pop %v683
  %v685 = vmul.f32 1.0, %v684
  %v686 = vxor.u32 %v677, 2147483648
  %v687 = vmul.f32 %v686, 1.442695
  %v688 = vpow.pop %v687
  %v689 = vadd.f32 %v688, 1.0
  %v690 = vrcp.pop %v689
  %v691 = vmul.f32 1.0, %v690
  %v692 = vtanh.pop %v678
  %v693 = vxor.u32 %v679, 2147483648
  %v694 = vmul.f32 %v693, 1.442695
  %v695 = vpow.pop %v694
  %v696 = vadd.f32 %v695, 1.0
  %v697 = vrcp.pop %v696
  %v698 = vmul.f32 1.0, %v697
  %v699 = vmul.f32 %v691, 0.0
  %v700 = vmul.f32 %v685, %v692
  %v701 = vadd.f32 %v699, %v700
  %v702 = vtanh.pop %v701
  %v703 = vmul.f32 %v698, %v702
  %v704 = vpack.c.bf16 %v703, %v703
  %v705 = vpack.c.bf16 0.0, 0.0
  %v770 = vunpack.c.l.b16 %v341
  %v771 = vunpack.c.h.b16 %v341
  %v772 = vunpack.c.l.b16 %v342
  %v773 = vunpack.c.h.b16 %v342
  %v774 = vunpack.c.l.b16 %v343
  %v775 = vunpack.c.h.b16 %v343
  %v776 = vunpack.c.l.b16 %v344
  %v777 = vunpack.c.h.b16 %v344
  %v778 = vunpack.c.l.b16 %v345
  %v779 = vunpack.c.h.b16 %v345
  %v780 = vunpack.c.l.b16 %v346
  %v781 = vunpack.c.h.b16 %v346
  %v782 = vunpack.c.l.b16 %v347
  %v783 = vunpack.c.h.b16 %v347
  %v784 = vunpack.c.l.b16 %v348
  %v785 = vunpack.c.h.b16 %v348
  %v786 = vunpack.c.l.b16 %v349
  %v787 = vunpack.c.h.b16 %v349
  %v788 = vunpack.c.l.b16 %v350
  %v789 = vunpack.c.h.b16 %v350
  %v790 = vunpack.c.l.b16 %v351
  %v791 = vunpack.c.h.b16 %v351
  %v792 = vunpack.c.l.b16 %v352
  %v793 = vunpack.c.h.b16 %v352
  %v794 = vunpack.c.l.b16 %v353
  %v795 = vunpack.c.h.b16 %v353
  %v796 = vunpack.c.l.b16 %v354
  %v797 = vunpack.c.h.b16 %v354
  %v798 = vunpack.c.l.b16 %v355
  %v799 = vunpack.c.h.b16 %v355
  %v800 = vunpack.c.l.b16 %v356
  %v801 = vunpack.c.h.b16 %v356
  %v802 = vunpack.c.l.b16 %v357
  %v803 = vunpack.c.h.b16 %v357
  %v804 = vunpack.c.l.b16 %v358
  %v805 = vunpack.c.h.b16 %v358
  %v806 = vunpack.c.l.b16 %v359
  %v807 = vunpack.c.h.b16 %v359
  %v808 = vunpack.c.l.b16 %v360
  %v809 = vunpack.c.h.b16 %v360
  %v810 = vunpack.c.l.b16 %v361
  %v811 = vunpack.c.h.b16 %v361
  %v812 = vunpack.c.l.b16 %v362
  %v813 = vunpack.c.h.b16 %v362
  %v814 = vunpack.c.l.b16 %v363
  %v815 = vunpack.c.h.b16 %v363
  %v816 = vunpack.c.l.b16 %v364
  %v817 = vunpack.c.h.b16 %v364
  %v818 = vunpack.c.l.b16 %v365
  %v819 = vunpack.c.h.b16 %v365
  %v820 = vunpack.c.l.b16 %v366
  %v821 = vunpack.c.h.b16 %v366
  %v822 = vunpack.c.l.b16 %v367
  %v823 = vunpack.c.h.b16 %v367
  %v824 = vunpack.c.l.b16 %v368
  %v825 = vunpack.c.h.b16 %v368
  %v826 = vunpack.c.l.b16 %v369
  %v827 = vunpack.c.h.b16 %v369
  %v828 = vunpack.c.l.b16 %v370
  %v829 = vunpack.c.h.b16 %v370
  %v830 = vunpack.c.l.b16 %v371
  %v831 = vunpack.c.h.b16 %v371
  %v832 = vunpack.c.l.b16 %v372
  %v833 = vunpack.c.h.b16 %v372
  %v834 = vunpack.c.l.b16 %v373
  %v835 = vunpack.c.h.b16 %v373
  %v836 = vunpack.c.l.b16 %v374
  %v837 = vunpack.c.h.b16 %v374
  %v838 = vunpack.c.l.b16 %v375
  %v839 = vunpack.c.h.b16 %v375
  %v840 = vunpack.c.l.b16 %v376
  %v841 = vunpack.c.h.b16 %v376
  %v842 = vunpack.c.l.b16 %v377
  %v843 = vunpack.c.h.b16 %v377
  %v844 = vunpack.c.l.b16 %v378
  %v845 = vunpack.c.h.b16 %v378
  %v846 = vunpack.c.l.b16 %v379
  %v847 = vunpack.c.h.b16 %v379
  %v848 = vunpack.c.l.b16 %v380
  %v849 = vunpack.c.h.b16 %v380
  %v850 = vunpack.c.l.b16 %v381
  %v851 = vunpack.c.h.b16 %v381
  %v852 = vunpack.c.l.b16 %v382
  %v853 = vunpack.c.h.b16 %v382
  %v854 = vunpack.c.l.b16 %v383
  %v855 = vunpack.c.h.b16 %v383
  %v856 = vunpack.c.l.b16 %v384
  %v857 = vunpack.c.h.b16 %v384
  %v858 = vunpack.c.l.b16 %v385
  %v859 = vunpack.c.h.b16 %v385
  %v860 = vunpack.c.l.b16 %v386
  %v861 = vunpack.c.h.b16 %v386
  %v862 = vunpack.c.l.b16 %v387
  %v863 = vunpack.c.h.b16 %v387
  %v864 = vunpack.c.l.b16 %v388
  %v865 = vunpack.c.h.b16 %v388
  %v866 = vunpack.c.l.b16 %v389
  %v867 = vunpack.c.h.b16 %v389
  %v868 = vunpack.c.l.b16 %v390
  %v869 = vunpack.c.h.b16 %v390
  %v870 = vunpack.c.l.b16 %v391
  %v871 = vunpack.c.h.b16 %v391
  %v872 = vunpack.c.l.b16 %v392
  %v873 = vunpack.c.h.b16 %v392
  %v874 = vunpack.c.l.b16 %v393
  %v875 = vunpack.c.h.b16 %v393
  %v876 = vunpack.c.l.b16 %v394
  %v877 = vunpack.c.h.b16 %v394
  %v878 = vunpack.c.l.b16 %v395
  %v879 = vunpack.c.h.b16 %v395
  %v880 = vunpack.c.l.b16 %v396
  %v881 = vunpack.c.h.b16 %v396
  %v882 = vunpack.c.l.b16 %v397
  %v883 = vunpack.c.h.b16 %v397
  %v884 = vunpack.c.l.b16 %v398
  %v885 = vunpack.c.h.b16 %v398
  %v886 = vunpack.c.l.b16 %v399
  %v887 = vunpack.c.h.b16 %v399
  %v888 = vunpack.c.l.b16 %v400
  %v889 = vunpack.c.h.b16 %v400
  %v890 = vunpack.c.l.b16 %v401
  %v891 = vunpack.c.h.b16 %v401
  %v892 = vunpack.c.l.b16 %v402
  %v893 = vunpack.c.h.b16 %v402
  %v894 = vunpack.c.l.b16 %v403
  %v895 = vunpack.c.h.b16 %v403
  %v896 = vunpack.c.l.b16 %v404
  %v897 = vunpack.c.h.b16 %v404
  %v898 = vpack.c.b16 %v774, %v770
  %v899 = vpack.c.b16 %v775, %v771
  %v900 = vpack.c.b16 %v776, %v772
  %v901 = vpack.c.b16 %v777, %v773
  %v902 = vpack.c.b16 %v782, %v778
  %v903 = vpack.c.b16 %v783, %v779
  %v904 = vpack.c.b16 %v784, %v780
  %v905 = vpack.c.b16 %v785, %v781
  %v906 = vpack.c.b16 %v790, %v786
  %v907 = vpack.c.b16 %v791, %v787
  %v908 = vpack.c.b16 %v792, %v788
  %v909 = vpack.c.b16 %v793, %v789
  %v910 = vpack.c.b16 %v798, %v794
  %v911 = vpack.c.b16 %v799, %v795
  %v912 = vpack.c.b16 %v800, %v796
  %v913 = vpack.c.b16 %v801, %v797
  %v914 = vpack.c.b16 %v806, %v802
  %v915 = vpack.c.b16 %v807, %v803
  %v916 = vpack.c.b16 %v808, %v804
  %v917 = vpack.c.b16 %v809, %v805
  %v918 = vpack.c.b16 %v814, %v810
  %v919 = vpack.c.b16 %v815, %v811
  %v920 = vpack.c.b16 %v816, %v812
  %v921 = vpack.c.b16 %v817, %v813
  %v922 = vpack.c.b16 %v822, %v818
  %v923 = vpack.c.b16 %v823, %v819
  %v924 = vpack.c.b16 %v824, %v820
  %v925 = vpack.c.b16 %v825, %v821
  %v926 = vpack.c.b16 %v830, %v826
  %v927 = vpack.c.b16 %v831, %v827
  %v928 = vpack.c.b16 %v832, %v828
  %v929 = vpack.c.b16 %v833, %v829
  %v930 = vpack.c.b16 %v838, %v834
  %v931 = vpack.c.b16 %v839, %v835
  %v932 = vpack.c.b16 %v840, %v836
  %v933 = vpack.c.b16 %v841, %v837
  %v934 = vpack.c.b16 %v846, %v842
  %v935 = vpack.c.b16 %v847, %v843
  %v936 = vpack.c.b16 %v848, %v844
  %v937 = vpack.c.b16 %v849, %v845
  %v938 = vpack.c.b16 %v854, %v850
  %v939 = vpack.c.b16 %v855, %v851
  %v940 = vpack.c.b16 %v856, %v852
  %v941 = vpack.c.b16 %v857, %v853
  %v942 = vpack.c.b16 %v862, %v858
  %v943 = vpack.c.b16 %v863, %v859
  %v944 = vpack.c.b16 %v864, %v860
  %v945 = vpack.c.b16 %v865, %v861
  %v946 = vpack.c.b16 %v870, %v866
  %v947 = vpack.c.b16 %v871, %v867
  %v948 = vpack.c.b16 %v872, %v868
  %v949 = vpack.c.b16 %v873, %v869
  %v950 = vpack.c.b16 %v878, %v874
  %v951 = vpack.c.b16 %v879, %v875
  %v952 = vpack.c.b16 %v880, %v876
  %v953 = vpack.c.b16 %v881, %v877
  %v954 = vpack.c.b16 %v886, %v882
  %v955 = vpack.c.b16 %v887, %v883
  %v956 = vpack.c.b16 %v888, %v884
  %v957 = vpack.c.b16 %v889, %v885
  %v958 = vpack.c.b16 %v894, %v890
  %v959 = vpack.c.b16 %v895, %v891
  %v960 = vpack.c.b16 %v896, %v892
  %v961 = vpack.c.b16 %v897, %v893
  %1026 = vmatprep.subr.bf16.mxu0 %v899
  %1027 = vmatpush1.bf16.msra.mxu0 %v898
  %1028 = vmatprep.subr.bf16.mxu0 %v903
  %1029 = vmatpush1.bf16.msra.mxu0 %v902
  %1030 = vmatprep.subr.bf16.mxu0 %v907
  %1031 = vmatpush1.bf16.msra.mxu0 %v906
  %1032 = vmatprep.subr.bf16.mxu0 %v911
  %1033 = vmatpush1.bf16.msra.mxu0 %v910
  %1034 = vmatprep.subr.bf16.mxu0 %v915
  %1035 = vmatpush1.bf16.msra.mxu0 %v914
  %1036 = vmatprep.subr.bf16.mxu0 %v919
  %1037 = vmatpush1.bf16.msra.mxu0 %v918
  %1038 = vmatprep.subr.bf16.mxu0 %v923
  %1039 = vmatpush1.bf16.msra.mxu0 %v922
  %1040 = vmatprep.subr.bf16.mxu0 %v927
  %1041 = vmatpush1.bf16.msra.mxu0 %v926
  %1042 = vmatprep.subr.bf16.mxu0 %v931
  %1043 = vmatpush1.bf16.msra.mxu0 %v930
  %1044 = vmatprep.subr.bf16.mxu0 %v935
  %1045 = vmatpush1.bf16.msra.mxu0 %v934
  %1046 = vmatprep.subr.bf16.mxu0 %v939
  %1047 = vmatpush1.bf16.msra.mxu0 %v938
  %1048 = vmatprep.subr.bf16.mxu0 %v943
  %1049 = vmatpush1.bf16.msra.mxu0 %v942
  %1050 = vmatprep.subr.bf16.mxu0 %v947
  %1051 = vmatpush1.bf16.msra.mxu0 %v946
  %1052 = vmatprep.subr.bf16.mxu0 %v951
  %1053 = vmatpush1.bf16.msra.mxu0 %v950
  %1054 = vmatprep.subr.bf16.mxu0 %v955
  %1055 = vmatpush1.bf16.msra.mxu0 %v954
  %1056 = vmatprep.subr.bf16.mxu0 %v959
  %1057 = vmatpush1.bf16.msra.mxu0 %v958
  %1058 = vmatprep.mubr.bf16.mxu0 %v705
  %1059 = vmatmul.mubr.bf16.gmra.mrb[0].mxu0 %v704
  %v1060 = vpop.f32.mrb[0].mxu0
  %v1061 = vadd.f32 %v410, %v1060
  %v1062 = vpop.f32.mrb[0].mxu0
  %v1063 = vadd.f32 %v414, %v1062
  %v1064 = vpop.f32.mrb[0].mxu0
  %v1065 = vpop.f32.mrb[0].mxu0
  %1066 = vdwg.mxu0
  %1067 = vmatprep.subr.bf16.mxu0 %v901
  %1068 = vmatpush1.bf16.msra.mxu0 %v900
  %1069 = vmatprep.subr.bf16.mxu0 %v905
  %1070 = vmatpush1.bf16.msra.mxu0 %v904
  %1071 = vmatprep.subr.bf16.mxu0 %v909
  %1072 = vmatpush1.bf16.msra.mxu0 %v908
  %1073 = vmatprep.subr.bf16.mxu0 %v913
  %1074 = vmatpush1.bf16.msra.mxu0 %v912
  %1075 = vmatprep.subr.bf16.mxu0 %v917
  %1076 = vmatpush1.bf16.msra.mxu0 %v916
  %1077 = vmatprep.subr.bf16.mxu0 %v921
  %1078 = vmatpush1.bf16.msra.mxu0 %v920
  %1079 = vmatprep.subr.bf16.mxu0 %v925
  %1080 = vmatpush1.bf16.msra.mxu0 %v924
  %1081 = vmatprep.subr.bf16.mxu0 %v929
  %1082 = vmatpush1.bf16.msra.mxu0 %v928
  %1083 = vmatprep.subr.bf16.mxu0 %v933
  %1084 = vmatpush1.bf16.msra.mxu0 %v932
  %1085 = vmatprep.subr.bf16.mxu0 %v937
  %1086 = vmatpush1.bf16.msra.mxu0 %v936
  %1087 = vmatprep.subr.bf16.mxu0 %v941
  %1088 = vmatpush1.bf16.msra.mxu0 %v940
  %1089 = vmatprep.subr.bf16.mxu0 %v945
  %1090 = vmatpush1.bf16.msra.mxu0 %v944
  %1091 = vmatprep.subr.bf16.mxu0 %v949
  %1092 = vmatpush1.bf16.msra.mxu0 %v948
  %1093 = vmatprep.subr.bf16.mxu0 %v953
  %1094 = vmatpush1.bf16.msra.mxu0 %v952
  %1095 = vmatprep.subr.bf16.mxu0 %v957
  %1096 = vmatpush1.bf16.msra.mxu0 %v956
  %1097 = vmatprep.subr.bf16.mxu0 %v961
  %1098 = vmatpush1.bf16.msra.mxu0 %v960
  %1099 = vmatprep.mubr.bf16.mxu0 %v705
  %1100 = vmatmul.mubr.bf16.gmra.mrb[0].mxu0 %v704
  %v1101 = vpop.f32.mrb[0].mxu0
  %v1102 = vadd.f32 %v418, %v1101
  %v1103 = vpop.f32.mrb[0].mxu0
  %v1104 = vadd.f32 %v422, %v1103
  %v1105 = vpop.f32.mrb[0].mxu0
  %v1106 = vpop.f32.mrb[0].mxu0
  %1107 = vdwg.mxu0
  %v1108 = vxor.u32 %v1061, 2147483648
  %v1109 = vmul.f32 %v1108, 1.442695
  %v1110 = vpow.pop %v1109
  %v1111 = vadd.f32 %v1110, 1.0
  %v1112 = vrcp.pop %v1111
  %v1113 = vmul.f32 1.0, %v1112
  %v1114 = vxor.u32 %v1063, 2147483648
  %v1115 = vmul.f32 %v1114, 1.442695
  %v1116 = vpow.pop %v1115
  %v1117 = vadd.f32 %v1116, 1.0
  %v1118 = vrcp.pop %v1117
  %v1119 = vmul.f32 1.0, %v1118
  %v1120 = vtanh.pop %v1102
  %v1121 = vxor.u32 %v1104, 2147483648
  %v1122 = vmul.f32 %v1121, 1.442695
  %v1123 = vpow.pop %v1122
  %v1124 = vadd.f32 %v1123, 1.0
  %v1125 = vrcp.pop %v1124
  %v1126 = vmul.f32 1.0, %v1125
  %v1127 = vmul.f32 %v1119, 0.0
  %v1128 = vmul.f32 %v1113, %v1120
  %v1129 = vadd.f32 %v1127, %v1128
  %v1130 = vtanh.pop %v1129
  %v1131 = vmul.f32 %v1126, %v1130
  %s1132 = smul.u32 1, 4
  %s1133 = smul.addr %s1132, 8
  %s1134 = scalar_lea.vmem [#allocation2], %s1133
  %v1135 = vld [vmem:[%s1134] sm:$0xff]
  %v1136 = vld [vmem:[%s1134 + $0x8] sm:$0xff]
  %v1137 = vld [vmem:[%s1134 + $0x10] sm:$0xff]
  %v1138 = vld [vmem:[%s1134 + $0x18] sm:$0xff]
  %1139 = vmatprep.subr.bf16.mxu0 %v531
  %1140 = vmatpush1.bf16.msra.mxu0 %v530
  %1141 = vmatprep.subr.bf16.mxu0 %v535
  %1142 = vmatpush1.bf16.msra.mxu0 %v534
  %1143 = vmatprep.subr.bf16.mxu0 %v539
  %1144 = vmatpush1.bf16.msra.mxu0 %v538
  %1145 = vmatprep.subr.bf16.mxu0 %v543
  %1146 = vmatpush1.bf16.msra.mxu0 %v542
  %1147 = vmatprep.subr.bf16.mxu0 %v547
  %1148 = vmatpush1.bf16.msra.mxu0 %v546
  %1149 = vmatprep.subr.bf16.mxu0 %v551
  %1150 = vmatpush1.bf16.msra.mxu0 %v550
  %1151 = vmatprep.subr.bf16.mxu0 %v555
  %1152 = vmatpush1.bf16.msra.mxu0 %v554
  %1153 = vmatprep.subr.bf16.mxu0 %v559
  %1154 = vmatpush1.bf16.msra.mxu0 %v558
  %1155 = vmatprep.subr.bf16.mxu0 0
  %1156 = vmatpush1.bf16.msra.mxu0 0
  %1157 = vmatprep.subr.bf16.mxu0 0
  %1158 = vmatpush1.bf16.msra.mxu0 0
  %1159 = vmatprep.subr.bf16.mxu0 0
  %1160 = vmatpush1.bf16.msra.mxu0 0
  %1161 = vmatprep.subr.bf16.mxu0 0
  %1162 = vmatpush1.bf16.msra.mxu0 0
  %1163 = vmatprep.subr.bf16.mxu0 0
  %1164 = vmatpush1.bf16.msra.mxu0 0
  %1165 = vmatprep.subr.bf16.mxu0 0
  %1166 = vmatpush1.bf16.msra.mxu0 0
  %1167 = vmatprep.subr.bf16.mxu0 0
  %1168 = vmatpush1.bf16.msra.mxu0 0
  %1169 = vmatprep.subr.bf16.mxu0 0
  %1170 = vmatpush1.bf16.msra.mxu0 0
  %1171 = vmatprep.mubr.bf16.mxu0 0
  %1172 = vmatmul.mubr.bf16.gmra.mrb[0].mxu0 %v704
  %v1173 = vpop.f32.mrb[0].mxu0
  %v1174 = vadd.f32 0.0, %v1173
  %v1175 = vpop.f32.mrb[0].mxu0
  %v1176 = vadd.f32 0.0, %v1175
  %v1177 = vpop.f32.mrb[0].mxu0
  %v1178 = vpop.f32.mrb[0].mxu0
  %1179 = vdwg.mxu0
  %1180 = vmatprep.subr.bf16.mxu0 %v533
  %1181 = vmatpush1.bf16.msra.mxu0 %v532
  %1182 = vmatprep.subr.bf16.mxu0 %v537
  %1183 = vmatpush1.bf16.msra.mxu0 %v536
  %1184 = vmatprep.subr.bf16.mxu0 %v541
  %1185 = vmatpush1.bf16.msra.mxu0 %v540
  %1186 = vmatprep.subr.bf16.mxu0 %v545
  %1187 = vmatpush1.bf16.msra.mxu0 %v544
  %1188 = vmatprep.subr.bf16.mxu0 %v549
  %1189 = vmatpush1.bf16.msra.mxu0 %v548
  %1190 = vmatprep.subr.bf16.mxu0 %v553
  %1191 = vmatpush1.bf16.msra.mxu0 %v552
  %1192 = vmatprep.subr.bf16.mxu0 %v557
  %1193 = vmatpush1.bf16.msra.mxu0 %v556
  %1194 = vmatprep.subr.bf16.mxu0 %v561
  %1195 = vmatpush1.bf16.msra.mxu0 %v560
  %1196 = vmatprep.subr.bf16.mxu0 0
  %1197 = vmatpush1.bf16.msra.mxu0 0
  %1198 = vmatprep.subr.bf16.mxu0 0
  %1199 = vmatpush1.bf16.msra.mxu0 0
  %1200 = vmatprep.subr.bf16.mxu0 0
  %1201 = vmatpush1.bf16.msra.mxu0 0
  %1202 = vmatprep.subr.bf16.mxu0 0
  %1203 = vmatpush1.bf16.msra.mxu0 0
  %1204 = vmatprep.subr.bf16.mxu0 0
  %1205 = vmatpush1.bf16.msra.mxu0 0
  %1206 = vmatprep.subr.bf16.mxu0 0
  %1207 = vmatpush1.bf16.msra.mxu0 0
  %1208 = vmatprep.subr.bf16.mxu0 0
  %1209 = vmatpush1.bf16.msra.mxu0 0
  %1210 = vmatprep.subr.bf16.mxu0 0
  %1211 = vmatpush1.bf16.msra.mxu0 0
  %1212 = vmatprep.mubr.bf16.mxu0 0
  %1213 = vmatmul.mubr.bf16.gmra.mrb[0].mxu0 %v704
  %v1214 = vpop.f32.mrb[0].mxu0
  %v1215 = vadd.f32 0.0, %v1214
  %v1216 = vpop.f32.mrb[0].mxu0
  %v1217 = vadd.f32 0.0, %v1216
  %v1218 = vpop.f32.mrb[0].mxu0
  %v1219 = vpop.f32.mrb[0].mxu0
  %1220 = vdwg.mxu0
  %v1221 = vadd.f32 %v1135, %v1174
  %v1222 = vadd.f32 %v1136, %v1176
  %v1223 = vadd.f32 %v1137, %v1215
  %v1224 = vadd.f32 %v1138, %v1217
  %v1225 = vxor.u32 %v1221, 2147483648
  %v1226 = vmul.f32 %v1225, 1.442695
  %v1227 = vpow.pop %v1226
  %v1228 = vadd.f32 %v1227, 1.0
  %v1229 = vrcp.pop %v1228
  %v1230 = vmul.f32 1.0, %v1229
  %v1231 = vxor.u32 %v1222, 2147483648
  %v1232 = vmul.f32 %v1231, 1.442695
  %v1233 = vpow.pop %v1232
  %v1234 = vadd.f32 %v1233, 1.0
  %v1235 = vrcp.pop %v1234
  %v1236 = vmul.f32 1.0, %v1235
  %v1237 = vtanh.pop %v1223
  %v1238 = vxor.u32 %v1224, 2147483648
  %v1239 = vmul.f32 %v1238, 1.442695
  %v1240 = vpow.pop %v1239
  %v1241 = vadd.f32 %v1240, 1.0
  %v1242 = vrcp.pop %v1241
  %v1243 = vmul.f32 1.0, %v1242
  %v1244 = vmul.f32 %v1236, %v701
  %v1245 = vmul.f32 %v1230, %v1237
  %v1246 = vadd.f32 %v1244, %v1245
  %v1247 = vtanh.pop %v1246
  %v1248 = vmul.f32 %v1243, %v1247
  %v1249 = vpack.c.bf16 %v1248, %v1248
  %v1250 = vpack.c.bf16 %v1131, %v1131
  %1251 = vmatprep.subr.bf16.mxu0 %v899
  %1252 = vmatpush1.bf16.msra.mxu0 %v898
  %1253 = vmatprep.subr.bf16.mxu0 %v903
  %1254 = vmatpush1.bf16.msra.mxu0 %v902
  %1255 = vmatprep.subr.bf16.mxu0 %v907
  %1256 = vmatpush1.bf16.msra.mxu0 %v906
  %1257 = vmatprep.subr.bf16.mxu0 %v911
  %1258 = vmatpush1.bf16.msra.mxu0 %v910
  %1259 = vmatprep.subr.bf16.mxu0 %v915
  %1260 = vmatpush1.bf16.msra.mxu0 %v914
  %1261 = vmatprep.subr.bf16.mxu0 %v919
  %1262 = vmatpush1.bf16.msra.mxu0 %v918
  %1263 = vmatprep.subr.bf16.mxu0 %v923
  %1264 = vmatpush1.bf16.msra.mxu0 %v922
  %1265 = vmatprep.subr.bf16.mxu0 %v927
  %1266 = vmatpush1.bf16.msra.mxu0 %v926
  %1267 = vmatprep.subr.bf16.mxu0 %v931
  %1268 = vmatpush1.bf16.msra.mxu0 %v930
  %1269 = vmatprep.subr.bf16.mxu0 %v935
  %1270 = vmatpush1.bf16.msra.mxu0 %v934
  %1271 = vmatprep.subr.bf16.mxu0 %v939
  %1272 = vmatpush1.bf16.msra.mxu0 %v938
  %1273 = vmatprep.subr.bf16.mxu0 %v943
  %1274 = vmatpush1.bf16.msra.mxu0 %v942
  %1275 = vmatprep.subr.bf16.mxu0 %v947
  %1276 = vmatpush1.bf16.msra.mxu0 %v946
  %1277 = vmatprep.subr.bf16.mxu0 %v951
  %1278 = vmatpush1.bf16.msra.mxu0 %v950
  %1279 = vmatprep.subr.bf16.mxu0 %v955
  %1280 = vmatpush1.bf16.msra.mxu0 %v954
  %1281 = vmatprep.subr.bf16.mxu0 %v959
  %1282 = vmatpush1.bf16.msra.mxu0 %v958
  %1283 = vmatprep.mubr.bf16.mxu0 %v1250
  %1284 = vmatmul.mubr.bf16.gmra.mrb[0].mxu0 %v1249
  %v1285 = vpop.f32.mrb[0].mxu0
  %v1286 = vadd.f32 %v410, %v1285
  %v1287 = vpop.f32.mrb[0].mxu0
  %v1288 = vadd.f32 %v414, %v1287
  %v1289 = vpop.f32.mrb[0].mxu0
  %v1290 = vpop.f32.mrb[0].mxu0
  %1291 = vdwg.mxu0
  %1292 = vmatprep.subr.bf16.mxu0 %v901
  %1293 = vmatpush1.bf16.msra.mxu0 %v900
  %1294 = vmatprep.subr.bf16.mxu0 %v905
  %1295 = vmatpush1.bf16.msra.mxu0 %v904
  %1296 = vmatprep.subr.bf16.mxu0 %v909
  %1297 = vmatpush1.bf16.msra.mxu0 %v908
  %1298 = vmatprep.subr.bf16.mxu0 %v913
  %1299 = vmatpush1.bf16.msra.mxu0 %v912
  %1300 = vmatprep.subr.bf16.mxu0 %v917
  %1301 = vmatpush1.bf16.msra.mxu0 %v916
  %1302 = vmatprep.subr.bf16.mxu0 %v921
  %1303 = vmatpush1.bf16.msra.mxu0 %v920
  %1304 = vmatprep.subr.bf16.mxu0 %v925
  %1305 = vmatpush1.bf16.msra.mxu0 %v924
  %1306 = vmatprep.subr.bf16.mxu0 %v929
  %1307 = vmatpush1.bf16.msra.mxu0 %v928
  %1308 = vmatprep.subr.bf16.mxu0 %v933
  %1309 = vmatpush1.bf16.msra.mxu0 %v932
  %1310 = vmatprep.subr.bf16.mxu0 %v937
  %1311 = vmatpush1.bf16.msra.mxu0 %v936
  %1312 = vmatprep.subr.bf16.mxu0 %v941
  %1313 = vmatpush1.bf16.msra.mxu0 %v940
  %1314 = vmatprep.subr.bf16.mxu0 %v945
  %1315 = vmatpush1.bf16.msra.mxu0 %v944
  %1316 = vmatprep.subr.bf16.mxu0 %v949
  %1317 = vmatpush1.bf16.msra.mxu0 %v948
  %1318 = vmatprep.subr.bf16.mxu0 %v953
  %1319 = vmatpush1.bf16.msra.mxu0 %v952
  %1320 = vmatprep.subr.bf16.mxu0 %v957
  %1321 = vmatpush1.bf16.msra.mxu0 %v956
  %1322 = vmatprep.subr.bf16.mxu0 %v961
  %1323 = vmatpush1.bf16.msra.mxu0 %v960
  %1324 = vmatprep.mubr.bf16.mxu0 %v1250
  %1325 = vmatmul.mubr.bf16.gmra.mrb[0].mxu0 %v1249
  %v1326 = vpop.f32.mrb[0].mxu0
  %v1327 = vadd.f32 %v418, %v1326
  %v1328 = vpop.f32.mrb[0].mxu0
  %v1329 = vadd.f32 %v422, %v1328
  %v1330 = vpop.f32.mrb[0].mxu0
  %v1331 = vpop.f32.mrb[0].mxu0
  %1332 = vdwg.mxu0
  %v1333 = vxor.u32 %v1286, 2147483648
  %v1334 = vmul.f32 %v1333, 1.442695
  %v1335 = vpow.pop %v1334
  %v1336 = vadd.f32 %v1335, 1.0
  %v1337 = vrcp.pop %v1336
  %v1338 = vmul.f32 1.0, %v1337
  %v1339 = vxor.u32 %v1288, 2147483648
  %v1340 = vmul.f32 %v1339, 1.442695
  %v1341 = vpow.pop %v1340
  %v1342 = vadd.f32 %v1341, 1.0
  %v1343 = vrcp.pop %v1342
  %v1344 = vmul.f32 1.0, %v1343
  %v1345 = vtanh.pop %v1327
  %v1346 = vxor.u32 %v1329, 2147483648
  %v1347 = vmul.f32 %v1346, 1.442695
  %v1348 = vpow.pop %v1347
  %v1349 = vadd.f32 %v1348, 1.0
  %v1350 = vrcp.pop %v1349
  %v1351 = vmul.f32 1.0, %v1350
  %v1352 = vmul.f32 %v1344, %v1129
  %v1353 = vmul.f32 %v1338, %v1345
  %v1354 = vadd.f32 %v1352, %v1353
  %v1355 = vtanh.pop %v1354
  %v1356 = vmul.f32 %v1351, %v1355
  %s1357 = smul.u32 2, 4
  %s1358 = smul.addr %s1357, 8
  %s1359 = scalar_lea.vmem [#allocation2], %s1358
  %v1360 = vld [vmem:[%s1359] sm:$0xff]
  %v1361 = vld [vmem:[%s1359 + $0x8] sm:$0xff]
  %v1362 = vld [vmem:[%s1359 + $0x10] sm:$0xff]
  %v1363 = vld [vmem:[%s1359 + $0x18] sm:$0xff]
  %1364 = vmatprep.subr.bf16.mxu0 %v531
  %1365 = vmatpush1.bf16.msra.mxu0 %v530
  %1366 = vmatprep.subr.bf16.mxu0 %v535
  %1367 = vmatpush1.bf16.msra.mxu0 %v534
  %1368 = vmatprep.subr.bf16.mxu0 %v539
  %1369 = vmatpush1.bf16.msra.mxu0 %v538
  %1370 = vmatprep.subr.bf16.mxu0 %v543
  %1371 = vmatpush1.bf16.msra.mxu0 %v542
  %1372 = vmatprep.subr.bf16.mxu0 %v547
  %1373 = vmatpush1.bf16.msra.mxu0 %v546
  %1374 = vmatprep.subr.bf16.mxu0 %v551
  %1375 = vmatpush1.bf16.msra.mxu0 %v550
  %1376 = vmatprep.subr.bf16.mxu0 %v555
  %1377 = vmatpush1.bf16.msra.mxu0 %v554
  %1378 = vmatprep.subr.bf16.mxu0 %v559
  %1379 = vmatpush1.bf16.msra.mxu0 %v558
  %1380 = vmatprep.subr.bf16.mxu0 0
  %1381 = vmatpush1.bf16.msra.mxu0 0
  %1382 = vmatprep.subr.bf16.mxu0 0
  %1383 = vmatpush1.bf16.msra.mxu0 0
  %1384 = vmatprep.subr.bf16.mxu0 0
  %1385 = vmatpush1.bf16.msra.mxu0 0
  %1386 = vmatprep.subr.bf16.mxu0 0
  %1387 = vmatpush1.bf16.msra.mxu0 0
  %1388 = vmatprep.subr.bf16.mxu0 0
  %1389 = vmatpush1.bf16.msra.mxu0 0
  %1390 = vmatprep.subr.bf16.mxu0 0
  %1391 = vmatpush1.bf16.msra.mxu0 0
  %1392 = vmatprep.subr.bf16.mxu0 0
  %1393 = vmatpush1.bf16.msra.mxu0 0
  %1394 = vmatprep.subr.bf16.mxu0 0
  %1395 = vmatpush1.bf16.msra.mxu0 0
  %1396 = vmatprep.mubr.bf16.mxu0 0
  %1397 = vmatmul.mubr.bf16.gmra.mrb[0].mxu0 %v1249
  %v1398 = vpop.f32.mrb[0].mxu0
  %v1399 = vadd.f32 0.0, %v1398
  %v1400 = vpop.f32.mrb[0].mxu0
  %v1401 = vadd.f32 0.0, %v1400
  %v1402 = vpop.f32.mrb[0].mxu0
  %v1403 = vpop.f32.mrb[0].mxu0
  %1404 = vdwg.mxu0
  %1405 = vmatprep.subr.bf16.mxu0 %v533
  %1406 = vmatpush1.bf16.msra.mxu0 %v532
  %1407 = vmatprep.subr.bf16.mxu0 %v537
  %1408 = vmatpush1.bf16.msra.mxu0 %v536
  %1409 = vmatprep.subr.bf16.mxu0 %v541
  %1410 = vmatpush1.bf16.msra.mxu0 %v540
  %1411 = vmatprep.subr.bf16.mxu0 %v545
  %1412 = vmatpush1.bf16.msra.mxu0 %v544
  %1413 = vmatprep.subr.bf16.mxu0 %v549
  %1414 = vmatpush1.bf16.msra.mxu0 %v548
  %1415 = vmatprep.subr.bf16.mxu0 %v553
  %1416 = vmatpush1.bf16.msra.mxu0 %v552
  %1417 = vmatprep.subr.bf16.mxu0 %v557
  %1418 = vmatpush1.bf16.msra.mxu0 %v556
  %1419 = vmatprep.subr.bf16.mxu0 %v561
  %1420 = vmatpush1.bf16.msra.mxu0 %v560
  %1421 = vmatprep.subr.bf16.mxu0 0
  %1422 = vmatpush1.bf16.msra.mxu0 0
  %1423 = vmatprep.subr.bf16.mxu0 0
  %1424 = vmatpush1.bf16.msra.mxu0 0
  %1425 = vmatprep.subr.bf16.mxu0 0
  %1426 = vmatpush1.bf16.msra.mxu0 0
  %1427 = vmatprep.subr.bf16.mxu0 0
  %1428 = vmatpush1.bf16.msra.mxu0 0
  %1429 = vmatprep.subr.bf16.mxu0 0
  %1430 = vmatpush1.bf16.msra.mxu0 0
  %1431 = vmatprep.subr.bf16.mxu0 0
  %1432 = vmatpush1.bf16.msra.mxu0 0
  %1433 = vmatprep.subr.bf16.mxu0 0
  %1434 = vmatpush1.bf16.msra.mxu0 0
  %1435 = vmatprep.subr.bf16.mxu0 0
  %1436 = vmatpush1.bf16.msra.mxu0 0
  %1437 = vmatprep.mubr.bf16.mxu0 0
  %1438 = vmatmul.mubr.bf16.gmra.mrb[0].mxu0 %v1249
  %v1439 = vpop.f32.mrb[0].mxu0
  %v1440 = vadd.f32 0.0, %v1439
  %v1441 = vpop.f32.mrb[0].mxu0
  %v1442 = vadd.f32 0.0, %v1441
  %v1443 = vpop.f32.mrb[0].mxu0
  %v1444 = vpop.f32.mrb[0].mxu0
  %1445 = vdwg.mxu0
  %v1446 = vadd.f32 %v1360, %v1399
  %v1447 = vadd.f32 %v1361, %v1401
  %v1448 = vadd.f32 %v1362, %v1440
  %v1449 = vadd.f32 %v1363, %v1442
  %v1450 = vxor.u32 %v1446, 2147483648
  %v1451 = vmul.f32 %v1450, 1.442695
  %v1452 = vpow.pop %v1451
  %v1453 = vadd.f32 %v1452, 1.0
  %v1454 = vrcp.pop %v1453
  %v1455 = vmul.f32 1.0, %v1454
  %v1456 = vxor.u32 %v1447, 2147483648
  %v1457 = vmul.f32 %v1456, 1.442695
  %v1458 = vpow.pop %v1457
  %v1459 = vadd.f32 %v1458, 1.0
  %v1460 = vrcp.pop %v1459
  %v1461 = vmul.f32 1.0, %v1460
  %v1462 = vtanh.pop %v1448
  %v1463 = vxor.u32 %v1449, 2147483648
  %v1464 = vmul.f32 %v1463, 1.442695
  %v1465 = vpow.pop %v1464
  %v1466 = vadd.f32 %v1465, 1.0
  %v1467 = vrcp.pop %v1466
  %v1468 = vmul.f32 1.0, %v1467
  %v1469 = vmul.f32 %v1461, %v1246
  %v1470 = vmul.f32 %v1455, %v1462
  %v1471 = vadd.f32 %v1469, %v1470
  %v1472 = vtanh.pop %v1471
  %v1473 = vmul.f32 %v1468, %v1472
  %v1474 = vpack.c.bf16 %v1473, %v1473
  %v1475 = vpack.c.bf16 %v1356, %v1356
  %1476 = vmatprep.subr.bf16.mxu0 %v899
  %1477 = vmatpush1.bf16.msra.mxu0 %v898
  %1478 = vmatprep.subr.bf16.mxu0 %v903
  %1479 = vmatpush1.bf16.msra.mxu0 %v902
  %1480 = vmatprep.subr.bf16.mxu0 %v907
  %1481 = vmatpush1.bf16.msra.mxu0 %v906
  %1482 = vmatprep.subr.bf16.mxu0 %v911
  %1483 = vmatpush1.bf16.msra.mxu0 %v910
  %1484 = vmatprep.subr.bf16.mxu0 %v915
  %1485 = vmatpush1.bf16.msra.mxu0 %v914
  %1486 = vmatprep.subr.bf16.mxu0 %v919
  %1487 = vmatpush1.bf16.msra.mxu0 %v918
  %1488 = vmatprep.subr.bf16.mxu0 %v923
  %1489 = vmatpush1.bf16.msra.mxu0 %v922
  %1490 = vmatprep.subr.bf16.mxu0 %v927
  %1491 = vmatpush1.bf16.msra.mxu0 %v926
  %1492 = vmatprep.subr.bf16.mxu0 %v931
  %1493 = vmatpush1.bf16.msra.mxu0 %v930
  %1494 = vmatprep.subr.bf16.mxu0 %v935
  %1495 = vmatpush1.bf16.msra.mxu0 %v934
  %1496 = vmatprep.subr.bf16.mxu0 %v939
  %1497 = vmatpush1.bf16.msra.mxu0 %v938
  %1498 = vmatprep.subr.bf16.mxu0 %v943
  %1499 = vmatpush1.bf16.msra.mxu0 %v942
  %1500 = vmatprep.subr.bf16.mxu0 %v947
  %1501 = vmatpush1.bf16.msra.mxu0 %v946
  %1502 = vmatprep.subr.bf16.mxu0 %v951
  %1503 = vmatpush1.bf16.msra.mxu0 %v950
  %1504 = vmatprep.subr.bf16.mxu0 %v955
  %1505 = vmatpush1.bf16.msra.mxu0 %v954
  %1506 = vmatprep.subr.bf16.mxu0 %v959
  %1507 = vmatpush1.bf16.msra.mxu0 %v958
  %1508 = vmatprep.mubr.bf16.mxu0 %v1475
  %1509 = vmatmul.mubr.bf16.gmra.mrb[0].mxu0 %v1474
  %v1510 = vpop.f32.mrb[0].mxu0
  %v1511 = vadd.f32 %v410, %v1510
  %v1512 = vpop.f32.mrb[0].mxu0
  %v1513 = vadd.f32 %v414, %v1512
  %v1514 = vpop.f32.mrb[0].mxu0
  %v1515 = vpop.f32.mrb[0].mxu0
  %1516 = vdwg.mxu0
  %1517 = vmatprep.subr.bf16.mxu0 %v901
  %1518 = vmatpush1.bf16.msra.mxu0 %v900
  %1519 = vmatprep.subr.bf16.mxu0 %v905
  %1520 = vmatpush1.bf16.msra.mxu0 %v904
  %1521 = vmatprep.subr.bf16.mxu0 %v909
  %1522 = vmatpush1.bf16.msra.mxu0 %v908
  %1523 = vmatprep.subr.bf16.mxu0 %v913
  %1524 = vmatpush1.bf16.msra.mxu0 %v912
  %1525 = vmatprep.subr.bf16.mxu0 %v917
  %1526 = vmatpush1.bf16.msra.mxu0 %v916
  %1527 = vmatprep.subr.bf16.mxu0 %v921
  %1528 = vmatpush1.bf16.msra.mxu0 %v920
  %1529 = vmatprep.subr.bf16.mxu0 %v925
  %1530 = vmatpush1.bf16.msra.mxu0 %v924
  %1531 = vmatprep.subr.bf16.mxu0 %v929
  %1532 = vmatpush1.bf16.msra.mxu0 %v928
  %1533 = vmatprep.subr.bf16.mxu0 %v933
  %1534 = vmatpush1.bf16.msra.mxu0 %v932
  %1535 = vmatprep.subr.bf16.mxu0 %v937
  %1536 = vmatpush1.bf16.msra.mxu0 %v936
  %1537 = vmatprep.subr.bf16.mxu0 %v941
  %1538 = vmatpush1.bf16.msra.mxu0 %v940
  %1539 = vmatprep.subr.bf16.mxu0 %v945
  %1540 = vmatpush1.bf16.msra.mxu0 %v944
  %1541 = vmatprep.subr.bf16.mxu0 %v949
  %1542 = vmatpush1.bf16.msra.mxu0 %v948
  %1543 = vmatprep.subr.bf16.mxu0 %v953
  %1544 = vmatpush1.bf16.msra.mxu0 %v952
  %1545 = vmatprep.subr.bf16.mxu0 %v957
  %1546 = vmatpush1.bf16.msra.mxu0 %v956
  %1547 = vmatprep.subr.bf16.mxu0 %v961
  %1548 = vmatpush1.bf16.msra.mxu0 %v960
  %1549 = vmatprep.mubr.bf16.mxu0 %v1475
  %1550 = vmatmul.mubr.bf16.gmra.mrb[0].mxu0 %v1474
  %v1551 = vpop.f32.mrb[0].mxu0
  %v1552 = vadd.f32 %v418, %v1551
  %v1553 = vpop.f32.mrb[0].mxu0
  %v1554 = vadd.f32 %v422, %v1553
  %v1555 = vpop.f32.mrb[0].mxu0
  %v1556 = vpop.f32.mrb[0].mxu0
  %1557 = vdwg.mxu0
  %v1558 = vxor.u32 %v1511, 2147483648
  %v1559 = vmul.f32 %v1558, 1.442695
  %v1560 = vpow.pop %v1559
  %v1561 = vadd.f32 %v1560, 1.0
  %v1562 = vrcp.pop %v1561
  %v1563 = vmul.f32 1.0, %v1562
  %v1564 = vxor.u32 %v1513, 2147483648
  %v1565 = vmul.f32 %v1564, 1.442695
  %v1566 = vpow.pop %v1565
  %v1567 = vadd.f32 %v1566, 1.0
  %v1568 = vrcp.pop %v1567
  %v1569 = vmul.f32 1.0, %v1568
  %v1570 = vtanh.pop %v1552
  %v1571 = vxor.u32 %v1554, 2147483648
  %v1572 = vmul.f32 %v1571, 1.442695
  %v1573 = vpow.pop %v1572
  %v1574 = vadd.f32 %v1573, 1.0
  %v1575 = vrcp.pop %v1574
  %v1576 = vmul.f32 1.0, %v1575
  %v1577 = vmul.f32 %v1569, %v1354
  %v1578 = vmul.f32 %v1563, %v1570
  %v1579 = vadd.f32 %v1577, %v1578
  %v1580 = vtanh.pop %v1579
  %v1581 = vmul.f32 %v1576, %v1580
  %s1582 = smul.u32 3, 4
  %s1583 = smul.addr %s1582, 8
  %s1584 = scalar_lea.vmem [#allocation2], %s1583
  %v1585 = vld [vmem:[%s1584] sm:$0xff]
  %v1586 = vld [vmem:[%s1584 + $0x8] sm:$0xff]
  %v1587 = vld [vmem:[%s1584 + $0x10] sm:$0xff]
  %v1588 = vld [vmem:[%s1584 + $0x18] sm:$0xff]
  %1589 = vmatprep.subr.bf16.mxu0 %v531
  %1590 = vmatpush1.bf16.msra.mxu0 %v530
  %1591 = vmatprep.subr.bf16.mxu0 %v535
  %1592 = vmatpush1.bf16.msra.mxu0 %v534
  %1593 = vmatprep.subr.bf16.mxu0 %v539
  %1594 = vmatpush1.bf16.msra.mxu0 %v538
  %1595 = vmatprep.subr.bf16.mxu0 %v543
  %1596 = vmatpush1.bf16.msra.mxu0 %v542
  %1597 = vmatprep.subr.bf16.mxu0 %v547
  %1598 = vmatpush1.bf16.msra.mxu0 %v546
  %1599 = vmatprep.subr.bf16.mxu0 %v551
  %1600 = vmatpush1.bf16.msra.mxu0 %v550
  %1601 = vmatprep.subr.bf16.mxu0 %v555
  %1602 = vmatpush1.bf16.msra.mxu0 %v554
  %1603 = vmatprep.subr.bf16.mxu0 %v559
  %1604 = vmatpush1.bf16.msra.mxu0 %v558
  %1605 = vmatprep.subr.bf16.mxu0 0
  %1606 = vmatpush1.bf16.msra.mxu0 0
  %1607 = vmatprep.subr.bf16.mxu0 0
  %1608 = vmatpush1.bf16.msra.mxu0 0
  %1609 = vmatprep.subr.bf16.mxu0 0
  %1610 = vmatpush1.bf16.msra.mxu0 0
  %1611 = vmatprep.subr.bf16.mxu0 0
  %1612 = vmatpush1.bf16.msra.mxu0 0
  %1613 = vmatprep.subr.bf16.mxu0 0
  %1614 = vmatpush1.bf16.msra.mxu0 0
  %1615 = vmatprep.subr.bf16.mxu0 0
  %1616 = vmatpush1.bf16.msra.mxu0 0
  %1617 = vmatprep.subr.bf16.mxu0 0
  %1618 = vmatpush1.bf16.msra.mxu0 0
  %1619 = vmatprep.subr.bf16.mxu0 0
  %1620 = vmatpush1.bf16.msra.mxu0 0
  %1621 = vmatprep.mubr.bf16.mxu0 0
  %1622 = vmatmul.mubr.bf16.gmra.mrb[0].mxu0 %v1474
  %v1623 = vpop.f32.mrb[0].mxu0
  %v1624 = vadd.f32 0.0, %v1623
  %v1625 = vpop.f32.mrb[0].mxu0
  %v1626 = vadd.f32 0.0, %v1625
  %v1627 = vpop.f32.mrb[0].mxu0
  %v1628 = vpop.f32.mrb[0].mxu0
  %1629 = vdwg.mxu0
  %1630 = vmatprep.subr.bf16.mxu0 %v533
  %1631 = vmatpush1.bf16.msra.mxu0 %v532
  %1632 = vmatprep.subr.bf16.mxu0 %v537
  %1633 = vmatpush1.bf16.msra.mxu0 %v536
  %1634 = vmatprep.subr.bf16.mxu0 %v541
  %1635 = vmatpush1.bf16.msra.mxu0 %v540
  %1636 = vmatprep.subr.bf16.mxu0 %v545
  %1637 = vmatpush1.bf16.msra.mxu0 %v544
  %1638 = vmatprep.subr.bf16.mxu0 %v549
  %1639 = vmatpush1.bf16.msra.mxu0 %v548
  %1640 = vmatprep.subr.bf16.mxu0 %v553
  %1641 = vmatpush1.bf16.msra.mxu0 %v552
  %1642 = vmatprep.subr.bf16.mxu0 %v557
  %1643 = vmatpush1.bf16.msra.mxu0 %v556
  %1644 = vmatprep.subr.bf16.mxu0 %v561
  %1645 = vmatpush1.bf16.msra.mxu0 %v560
  %1646 = vmatprep.subr.bf16.mxu0 0
  %1647 = vmatpush1.bf16.msra.mxu0 0
  %1648 = vmatprep.subr.bf16.mxu0 0
  %1649 = vmatpush1.bf16.msra.mxu0 0
  %1650 = vmatprep.subr.bf16.mxu0 0
  %1651 = vmatpush1.bf16.msra.mxu0 0
  %1652 = vmatprep.subr.bf16.mxu0 0
  %1653 = vmatpush1.bf16.msra.mxu0 0
  %1654 = vmatprep.subr.bf16.mxu0 0
  %1655 = vmatpush1.bf16.msra.mxu0 0
  %1656 = vmatprep.subr.bf16.mxu0 0
  %1657 = vmatpush1.bf16.msra.mxu0 0
  %1658 = vmatprep.subr.bf16.mxu0 0
  %1659 = vmatpush1.bf16.msra.mxu0 0
  %1660 = vmatprep.subr.bf16.mxu0 0
  %1661 = vmatpush1.bf16.msra.mxu0 0
  %1662 = vmatprep.mubr.bf16.mxu0 0
  %1663 = vmatmul.mubr.bf16.gmra.mrb[0].mxu0 %v1474
  %v1664 = vpop.f32.mrb[0].mxu0
  %v1665 = vadd.f32 0.0, %v1664
  %v1666 = vpop.f32.mrb[0].mxu0
  %v1667 = vadd.f32 0.0, %v1666
  %v1668 = vpop.f32.mrb[0].mxu0
  %v1669 = vpop.f32.mrb[0].mxu0
  %1670 = vdwg.mxu0
  %v1671 = vadd.f32 %v1585, %v1624
  %v1672 = vadd.f32 %v1586, %v1626
  %v1673 = vadd.f32 %v1587, %v1665
  %v1674 = vadd.f32 %v1588, %v1667
  %v1675 = vxor.u32 %v1671, 2147483648
  %v1676 = vmul.f32 %v1675, 1.442695
  %v1677 = vpow.pop %v1676
  %v1678 = vadd.f32 %v1677, 1.0
  %v1679 = vrcp.pop %v1678
  %v1680 = vmul.f32 1.0, %v1679
  %v1681 = vxor.u32 %v1672, 2147483648
  %v1682 = vmul.f32 %v1681, 1.442695
  %v1683 = vpow.pop %v1682
  %v1684 = vadd.f32 %v1683, 1.0
  %v1685 = vrcp.pop %v1684
  %v1686 = vmul.f32 1.0, %v1685
  %v1687 = vtanh.pop %v1673
  %v1688 = vxor.u32 %v1674, 2147483648
  %v1689 = vmul.f32 %v1688, 1.442695
  %v1690 = vpow.pop %v1689
  %v1691 = vadd.f32 %v1690, 1.0
  %v1692 = vrcp.pop %v1691
  %v1693 = vmul.f32 1.0, %v1692
  %v1694 = vmul.f32 %v1686, %v1471
  %v1695 = vmul.f32 %v1680, %v1687
  %v1696 = vadd.f32 %v1694, %v1695
  %v1697 = vtanh.pop %v1696
  %v1698 = vmul.f32 %v1693, %v1697
  %v1699 = vpack.c.bf16 %v1698, %v1698
  %v1700 = vpack.c.bf16 %v1581, %v1581
  %1701 = vmatprep.subr.bf16.mxu0 %v899
  %1702 = vmatpush1.bf16.msra.mxu0 %v898
  %1703 = vmatprep.subr.bf16.mxu0 %v903
  %1704 = vmatpush1.bf16.msra.mxu0 %v902
  %1705 = vmatprep.subr.bf16.mxu0 %v907
  %1706 = vmatpush1.bf16.msra.mxu0 %v906
  %1707 = vmatprep.subr.bf16.mxu0 %v911
  %1708 = vmatpush1.bf16.msra.mxu0 %v910
  %1709 = vmatprep.subr.bf16.mxu0 %v915
  %1710 = vmatpush1.bf16.msra.mxu0 %v914
  %1711 = vmatprep.subr.bf16.mxu0 %v919
  %1712 = vmatpush1.bf16.msra.mxu0 %v918
  %1713 = vmatprep.subr.bf16.mxu0 %v923
  %1714 = vmatpush1.bf16.msra.mxu0 %v922
  %1715 = vmatprep.subr.bf16.mxu0 %v927
  %1716 = vmatpush1.bf16.msra.mxu0 %v926
  %1717 = vmatprep.subr.bf16.mxu0 %v931
  %1718 = vmatpush1.bf16.msra.mxu0 %v930
  %1719 = vmatprep.subr.bf16.mxu0 %v935
  %1720 = vmatpush1.bf16.msra.mxu0 %v934
  %1721 = vmatprep.subr.bf16.mxu0 %v939
  %1722 = vmatpush1.bf16.msra.mxu0 %v938
  %1723 = vmatprep.subr.bf16.mxu0 %v943
  %1724 = vmatpush1.bf16.msra.mxu0 %v942
  %1725 = vmatprep.subr.bf16.mxu0 %v947
  %1726 = vmatpush1.bf16.msra.mxu0 %v946
  %1727 = vmatprep.subr.bf16.mxu0 %v951
  %1728 = vmatpush1.bf16.msra.mxu0 %v950
  %1729 = vmatprep.subr.bf16.mxu0 %v955
  %1730 = vmatpush1.bf16.msra.mxu0 %v954
  %1731 = vmatprep.subr.bf16.mxu0 %v959
  %1732 = vmatpush1.bf16.msra.mxu0 %v958
  %1733 = vmatprep.mubr.bf16.mxu0 %v1700
  %1734 = vmatmul.mubr.bf16.gmra.mrb[0].mxu0 %v1699
  %v1735 = vpop.f32.mrb[0].mxu0
  %v1736 = vadd.f32 %v410, %v1735
  %v1737 = vpop.f32.mrb[0].mxu0
  %v1738 = vadd.f32 %v414, %v1737
  %v1739 = vpop.f32.mrb[0].mxu0
  %v1740 = vpop.f32.mrb[0].mxu0
  %1741 = vdwg.mxu0
  %1742 = vmatprep.subr.bf16.mxu0 %v901
  %1743 = vmatpush1.bf16.msra.mxu0 %v900
  %1744 = vmatprep.subr.bf16.mxu0 %v905
  %1745 = vmatpush1.bf16.msra.mxu0 %v904
  %1746 = vmatprep.subr.bf16.mxu0 %v909
  %1747 = vmatpush1.bf16.msra.mxu0 %v908
  %1748 = vmatprep.subr.bf16.mxu0 %v913
  %1749 = vmatpush1.bf16.msra.mxu0 %v912
  %1750 = vmatprep.subr.bf16.mxu0 %v917
  %1751 = vmatpush1.bf16.msra.mxu0 %v916
  %1752 = vmatprep.subr.bf16.mxu0 %v921
  %1753 = vmatpush1.bf16.msra.mxu0 %v920
  %1754 = vmatprep.subr.bf16.mxu0 %v925
  %1755 = vmatpush1.bf16.msra.mxu0 %v924
  %1756 = vmatprep.subr.bf16.mxu0 %v929
  %1757 = vmatpush1.bf16.msra.mxu0 %v928
  %1758 = vmatprep.subr.bf16.mxu0 %v933
  %1759 = vmatpush1.bf16.msra.mxu0 %v932
  %1760 = vmatprep.subr.bf16.mxu0 %v937
  %1761 = vmatpush1.bf16.msra.mxu0 %v936
  %1762 = vmatprep.subr.bf16.mxu0 %v941
  %1763 = vmatpush1.bf16.msra.mxu0 %v940
  %1764 = vmatprep.subr.bf16.mxu0 %v945
  %1765 = vmatpush1.bf16.msra.mxu0 %v944
  %1766 = vmatprep.subr.bf16.mxu0 %v949
  %1767 = vmatpush1.bf16.msra.mxu0 %v948
  %1768 = vmatprep.subr.bf16.mxu0 %v953
  %1769 = vmatpush1.bf16.msra.mxu0 %v952
  %1770 = vmatprep.subr.bf16.mxu0 %v957
  %1771 = vmatpush1.bf16.msra.mxu0 %v956
  %1772 = vmatprep.subr.bf16.mxu0 %v961
  %1773 = vmatpush1.bf16.msra.mxu0 %v960
  %1774 = vmatprep.mubr.bf16.mxu0 %v1700
  %1775 = vmatmul.mubr.bf16.gmra.mrb[0].mxu0 %v1699
  %v1776 = vpop.f32.mrb[0].mxu0
  %v1777 = vadd.f32 %v418, %v1776
  %v1778 = vpop.f32.mrb[0].mxu0
  %v1779 = vadd.f32 %v422, %v1778
  %v1780 = vpop.f32.mrb[0].mxu0
  %v1781 = vpop.f32.mrb[0].mxu0
  %1782 = vdwg.mxu0
  %v1783 = vxor.u32 %v1736, 2147483648
  %v1784 = vmul.f32 %v1783, 1.442695
  %v1785 = vpow.pop %v1784
  %v1786 = vadd.f32 %v1785, 1.0
  %v1787 = vrcp.pop %v1786
  %v1788 = vmul.f32 1.0, %v1787
  %v1789 = vxor.u32 %v1738, 2147483648
  %v1790 = vmul.f32 %v1789, 1.442695
  %v1791 = vpow.pop %v1790
  %v1792 = vadd.f32 %v1791, 1.0
  %v1793 = vrcp.pop %v1792
  %v1794 = vmul.f32 1.0, %v1793
  %v1795 = vtanh.pop %v1777
  %v1796 = vxor.u32 %v1779, 2147483648
  %v1797 = vmul.f32 %v1796, 1.442695
  %v1798 = vpow.pop %v1797
  %v1799 = vadd.f32 %v1798, 1.0
  %v1800 = vrcp.pop %v1799
  %v1801 = vmul.f32 1.0, %v1800
  %v1802 = vmul.f32 %v1794, %v1579
  %v1803 = vmul.f32 %v1788, %v1795
  %v1804 = vadd.f32 %v1802, %v1803
  %v1805 = vtanh.pop %v1804
  %v1806 = vmul.f32 %v1801, %v1805
  %s1807 = smul.u32 4, 4
  %s1808 = smul.addr %s1807, 8
  %s1809 = scalar_lea.vmem [#allocation2], %s1808
  %v1810 = vld [vmem:[%s1809] sm:$0xff]
  %v1811 = vld [vmem:[%s1809 + $0x8] sm:$0xff]
  %v1812 = vld [vmem:[%s1809 + $0x10] sm:$0xff]
  %v1813 = vld [vmem:[%s1809 + $0x18] sm:$0xff]
  %1814 = vmatprep.subr.bf16.mxu0 %v531
  %1815 = vmatpush1.bf16.msra.mxu0 %v530
  %1816 = vmatprep.subr.bf16.mxu0 %v535
  %1817 = vmatpush1.bf16.msra.mxu0 %v534
  %1818 = vmatprep.subr.bf16.mxu0 %v539
  %1819 = vmatpush1.bf16.msra.mxu0 %v538
  %1820 = vmatprep.subr.bf16.mxu0 %v543
  %1821 = vmatpush1.bf16.msra.mxu0 %v542
  %1822 = vmatprep.subr.bf16.mxu0 %v547
  %1823 = vmatpush1.bf16.msra.mxu0 %v546
  %1824 = vmatprep.subr.bf16.mxu0 %v551
  %1825 = vmatpush1.bf16.msra.mxu0 %v550
  %1826 = vmatprep.subr.bf16.mxu0 %v555
  %1827 = vmatpush1.bf16.msra.mxu0 %v554
  %1828 = vmatprep.subr.bf16.mxu0 %v559
  %1829 = vmatpush1.bf16.msra.mxu0 %v558
  %1830 = vmatprep.subr.bf16.mxu0 0
  %1831 = vmatpush1.bf16.msra.mxu0 0
  %1832 = vmatprep.subr.bf16.mxu0 0
  %1833 = vmatpush1.bf16.msra.mxu0 0
  %1834 = vmatprep.subr.bf16.mxu0 0
  %1835 = vmatpush1.bf16.msra.mxu0 0
  %1836 = vmatprep.subr.bf16.mxu0 0
  %1837 = vmatpush1.bf16.msra.mxu0 0
  %1838 = vmatprep.subr.bf16.mxu0 0
  %1839 = vmatpush1.bf16.msra.mxu0 0
  %1840 = vmatprep.subr.bf16.mxu0 0
  %1841 = vmatpush1.bf16.msra.mxu0 0
  %1842 = vmatprep.subr.bf16.mxu0 0
  %1843 = vmatpush1.bf16.msra.mxu0 0
  %1844 = vmatprep.subr.bf16.mxu0 0
  %1845 = vmatpush1.bf16.msra.mxu0 0
  %1846 = vmatprep.mubr.bf16.mxu0 0
  %1847 = vmatmul.mubr.bf16.gmra.mrb[0].mxu0 %v1699
  %v1848 = vpop.f32.mrb[0].mxu0
  %v1849 = vadd.f32 0.0, %v1848
  %v1850 = vpop.f32.mrb[0].mxu0
  %v1851 = vadd.f32 0.0, %v1850
  %v1852 = vpop.f32.mrb[0].mxu0
  %v1853 = vpop.f32.mrb[0].mxu0
  %1854 = vdwg.mxu0
  %1855 = vmatprep.subr.bf16.mxu0 %v533
  %1856 = vmatpush1.bf16.msra.mxu0 %v532
  %1857 = vmatprep.subr.bf16.mxu0 %v537
  %1858 = vmatpush1.bf16.msra.mxu0 %v536
  %1859 = vmatprep.subr.bf16.mxu0 %v541
  %1860 = vmatpush1.bf16.msra.mxu0 %v540
  %1861 = vmatprep.subr.bf16.mxu0 %v545
  %1862 = vmatpush1.bf16.msra.mxu0 %v544
  %1863 = vmatprep.subr.bf16.mxu0 %v549
  %1864 = vmatpush1.bf16.msra.mxu0 %v548
  %1865 = vmatprep.subr.bf16.mxu0 %v553
  %1866 = vmatpush1.bf16.msra.mxu0 %v552
  %1867 = vmatprep.subr.bf16.mxu0 %v557
  %1868 = vmatpush1.bf16.msra.mxu0 %v556
  %1869 = vmatprep.subr.bf16.mxu0 %v561
  %1870 = vmatpush1.bf16.msra.mxu0 %v560
  %1871 = vmatprep.subr.bf16.mxu0 0
  %1872 = vmatpush1.bf16.msra.mxu0 0
  %1873 = vmatprep.subr.bf16.mxu0 0
  %1874 = vmatpush1.bf16.msra.mxu0 0
  %1875 = vmatprep.subr.bf16.mxu0 0
  %1876 = vmatpush1.bf16.msra.mxu0 0
  %1877 = vmatprep.subr.bf16.mxu0 0
  %1878 = vmatpush1.bf16.msra.mxu0 0
  %1879 = vmatprep.subr.bf16.mxu0 0
  %1880 = vmatpush1.bf16.msra.mxu0 0
  %1881 = vmatprep.subr.bf16.mxu0 0
  %1882 = vmatpush1.bf16.msra.mxu0 0
  %1883 = vmatprep.subr.bf16.mxu0 0
  %1884 = vmatpush1.bf16.msra.mxu0 0
  %1885 = vmatprep.subr.bf16.mxu0 0
  %1886 = vmatpush1.bf16.msra.mxu0 0
  %1887 = vmatprep.mubr.bf16.mxu0 0
  %1888 = vmatmul.mubr.bf16.gmra.mrb[0].mxu0 %v1699
  %v1889 = vpop.f32.mrb[0].mxu0
  %v1890 = vadd.f32 0.0, %v1889
  %v1891 = vpop.f32.mrb[0].mxu0
  %v1892 = vadd.f32 0.0, %v1891
  %v1893 = vpop.f32.mrb[0].mxu0
  %v1894 = vpop.f32.mrb[0].mxu0
  %1895 = vdwg.mxu0
  %v1896 = vadd.f32 %v1810, %v1849
  %v1897 = vadd.f32 %v1811, %v1851
  %v1898 = vadd.f32 %v1812, %v1890
  %v1899 = vadd.f32 %v1813, %v1892
  %v1900 = vxor.u32 %v1896, 2147483648
  %v1901 = vmul.f32 %v1900, 1.442695
  %v1902 = vpow.pop %v1901
  %v1903 = vadd.f32 %v1902, 1.0
  %v1904 = vrcp.pop %v1903
  %v1905 = vmul.f32 1.0, %v1904
  %v1906 = vxor.u32 %v1897, 2147483648
  %v1907 = vmul.f32 %v1906, 1.442695
  %v1908 = vpow.pop %v1907
  %v1909 = vadd.f32 %v1908, 1.0
  %v1910 = vrcp.pop %v1909
  %v1911 = vmul.f32 1.0, %v1910
  %v1912 = vtanh.pop %v1898
  %v1913 = vxor.u32 %v1899, 2147483648
  %v1914 = vmul.f32 %v1913, 1.442695
  %v1915 = vpow.pop %v1914
  %v1916 = vadd.f32 %v1915, 1.0
  %v1917 = vrcp.pop %v1916
  %v1918 = vmul.f32 1.0, %v1917
  %v1919 = vmul.f32 %v1911, %v1696
  %v1920 = vmul.f32 %v1905, %v1912
  %v1921 = vadd.f32 %v1919, %v1920
  %v1922 = vtanh.pop %v1921
  %v1923 = vmul.f32 %v1918, %v1922
  %v1924 = vpack.c.bf16 %v1923, %v1923
  %v1925 = vpack.c.bf16 %v1806, %v1806
  %1926 = vmatprep.subr.bf16.mxu0 %v899
  %1927 = vmatpush1.bf16.msra.mxu0 %v898
  %1928 = vmatprep.subr.bf16.mxu0 %v903
  %1929 = vmatpush1.bf16.msra.mxu0 %v902
  %1930 = vmatprep.subr.bf16.mxu0 %v907
  %1931 = vmatpush1.bf16.msra.mxu0 %v906
  %1932 = vmatprep.subr.bf16.mxu0 %v911
  %1933 = vmatpush1.bf16.msra.mxu0 %v910
  %1934 = vmatprep.subr.bf16.mxu0 %v915
  %1935 = vmatpush1.bf16.msra.mxu0 %v914
  %1936 = vmatprep.subr.bf16.mxu0 %v919
  %1937 = vmatpush1.bf16.msra.mxu0 %v918
  %1938 = vmatprep.subr.bf16.mxu0 %v923
  %1939 = vmatpush1.bf16.msra.mxu0 %v922
  %1940 = vmatprep.subr.bf16.mxu0 %v927
  %1941 = vmatpush1.bf16.msra.mxu0 %v926
  %1942 = vmatprep.subr.bf16.mxu0 %v931
  %1943 = vmatpush1.bf16.msra.mxu0 %v930
  %1944 = vmatprep.subr.bf16.mxu0 %v935
  %1945 = vmatpush1.bf16.msra.mxu0 %v934
  %1946 = vmatprep.subr.bf16.mxu0 %v939
  %1947 = vmatpush1.bf16.msra.mxu0 %v938
  %1948 = vmatprep.subr.bf16.mxu0 %v943
  %1949 = vmatpush1.bf16.msra.mxu0 %v942
  %1950 = vmatprep.subr.bf16.mxu0 %v947
  %1951 = vmatpush1.bf16.msra.mxu0 %v946
  %1952 = vmatprep.subr.bf16.mxu0 %v951
  %1953 = vmatpush1.bf16.msra.mxu0 %v950
  %1954 = vmatprep.subr.bf16.mxu0 %v955
  %1955 = vmatpush1.bf16.msra.mxu0 %v954
  %1956 = vmatprep.subr.bf16.mxu0 %v959
  %1957 = vmatpush1.bf16.msra.mxu0 %v958
  %1958 = vmatprep.mubr.bf16.mxu0 %v1925
  %1959 = vmatmul.mubr.bf16.gmra.mrb[0].mxu0 %v1924
  %v1960 = vpop.f32.mrb[0].mxu0
  %v1961 = vadd.f32 %v410, %v1960
  %v1962 = vpop.f32.mrb[0].mxu0
  %v1963 = vadd.f32 %v414, %v1962
  %v1964 = vpop.f32.mrb[0].mxu0
  %v1965 = vpop.f32.mrb[0].mxu0
  %1966 = vdwg.mxu0
  %1967 = vmatprep.subr.bf16.mxu0 %v901
  %1968 = vmatpush1.bf16.msra.mxu0 %v900
  %1969 = vmatprep.subr.bf16.mxu0 %v905
  %1970 = vmatpush1.bf16.msra.mxu0 %v904
  %1971 = vmatprep.subr.bf16.mxu0 %v909
  %1972 = vmatpush1.bf16.msra.mxu0 %v908
  %1973 = vmatprep.subr.bf16.mxu0 %v913
  %1974 = vmatpush1.bf16.msra.mxu0 %v912
  %1975 = vmatprep.subr.bf16.mxu0 %v917
  %1976 = vmatpush1.bf16.msra.mxu0 %v916
  %1977 = vmatprep.subr.bf16.mxu0 %v921
  %1978 = vmatpush1.bf16.msra.mxu0 %v920
  %1979 = vmatprep.subr.bf16.mxu0 %v925
  %1980 = vmatpush1.bf16.msra.mxu0 %v924
  %1981 = vmatprep.subr.bf16.mxu0 %v929
  %1982 = vmatpush1.bf16.msra.mxu0 %v928
  %1983 = vmatprep.subr.bf16.mxu0 %v933
  %1984 = vmatpush1.bf16.msra.mxu0 %v932
  %1985 = vmatprep.subr.bf16.mxu0 %v937
  %1986 = vmatpush1.bf16.msra.mxu0 %v936
  %1987 = vmatprep.subr.bf16.mxu0 %v941
  %1988 = vmatpush1.bf16.msra.mxu0 %v940
  %1989 = vmatprep.subr.bf16.mxu0 %v945
  %1990 = vmatpush1.bf16.msra.mxu0 %v944
  %1991 = vmatprep.subr.bf16.mxu0 %v949
  %1992 = vmatpush1.bf16.msra.mxu0 %v948
  %1993 = vmatprep.subr.bf16.mxu0 %v953
  %1994 = vmatpush1.bf16.msra.mxu0 %v952
  %1995 = vmatprep.subr.bf16.mxu0 %v957
  %1996 = vmatpush1.bf16.msra.mxu0 %v956
  %1997 = vmatprep.subr.bf16.mxu0 %v961
  %1998 = vmatpush1.bf16.msra.mxu0 %v960
  %1999 = vmatprep.mubr.bf16.mxu0 %v1925
  %2000 = vmatmul.mubr.bf16.gmra.mrb[0].mxu0 %v1924
  %v2001 = vpop.f32.mrb[0].mxu0
  %v2002 = vadd.f32 %v418, %v2001
  %v2003 = vpop.f32.mrb[0].mxu0
  %v2004 = vadd.f32 %v422, %v2003
  %v2005 = vpop.f32.mrb[0].mxu0
  %v2006 = vpop.f32.mrb[0].mxu0
  %2007 = vdwg.mxu0
  %v2008 = vxor.u32 %v1961, 2147483648
  %v2009 = vmul.f32 %v2008, 1.442695
  %v2010 = vpow.pop %v2009
  %v2011 = vadd.f32 %v2010, 1.0
  %v2012 = vrcp.pop %v2011
  %v2013 = vmul.f32 1.0, %v2012
  %v2014 = vxor.u32 %v1963, 2147483648
  %v2015 = vmul.f32 %v2014, 1.442695
  %v2016 = vpow.pop %v2015
  %v2017 = vadd.f32 %v2016, 1.0
  %v2018 = vrcp.pop %v2017
  %v2019 = vmul.f32 1.0, %v2018
  %v2020 = vtanh.pop %v2002
  %v2021 = vxor.u32 %v2004, 2147483648
  %v2022 = vmul.f32 %v2021, 1.442695
  %v2023 = vpow.pop %v2022
  %v2024 = vadd.f32 %v2023, 1.0
  %v2025 = vrcp.pop %v2024
  %v2026 = vmul.f32 1.0, %v2025
  %v2027 = vmul.f32 %v2019, %v1804
  %v2028 = vmul.f32 %v2013, %v2020
  %v2029 = vadd.f32 %v2027, %v2028
  %v2030 = vtanh.pop %v2029
  %v2031 = vmul.f32 %v2026, %v2030
  %s2032 = smul.u32 5, 4
  %s2033 = smul.addr %s2032, 8
  %s2034 = scalar_lea.vmem [#allocation2], %s2033
  %v2035 = vld [vmem:[%s2034] sm:$0xff]
  %v2036 = vld [vmem:[%s2034 + $0x8] sm:$0xff]
  %v2037 = vld [vmem:[%s2034 + $0x10] sm:$0xff]
  %v2038 = vld [vmem:[%s2034 + $0x18] sm:$0xff]
  %2039 = vmatprep.subr.bf16.mxu0 %v531
  %2040 = vmatpush1.bf16.msra.mxu0 %v530
  %2041 = vmatprep.subr.bf16.mxu0 %v535
  %2042 = vmatpush1.bf16.msra.mxu0 %v534
  %2043 = vmatprep.subr.bf16.mxu0 %v539
  %2044 = vmatpush1.bf16.msra.mxu0 %v538
  %2045 = vmatprep.subr.bf16.mxu0 %v543
  %2046 = vmatpush1.bf16.msra.mxu0 %v542
  %2047 = vmatprep.subr.bf16.mxu0 %v547
  %2048 = vmatpush1.bf16.msra.mxu0 %v546
  %2049 = vmatprep.subr.bf16.mxu0 %v551
  %2050 = vmatpush1.bf16.msra.mxu0 %v550
  %2051 = vmatprep.subr.bf16.mxu0 %v555
  %2052 = vmatpush1.bf16.msra.mxu0 %v554
  %2053 = vmatprep.subr.bf16.mxu0 %v559
  %2054 = vmatpush1.bf16.msra.mxu0 %v558
  %2055 = vmatprep.subr.bf16.mxu0 0
  %2056 = vmatpush1.bf16.msra.mxu0 0
  %2057 = vmatprep.subr.bf16.mxu0 0
  %2058 = vmatpush1.bf16.msra.mxu0 0
  %2059 = vmatprep.subr.bf16.mxu0 0
  %2060 = vmatpush1.bf16.msra.mxu0 0
  %2061 = vmatprep.subr.bf16.mxu0 0
  %2062 = vmatpush1.bf16.msra.mxu0 0
  %2063 = vmatprep.subr.bf16.mxu0 0
  %2064 = vmatpush1.bf16.msra.mxu0 0
  %2065 = vmatprep.subr.bf16.mxu0 0
  %2066 = vmatpush1.bf16.msra.mxu0 0
  %2067 = vmatprep.subr.bf16.mxu0 0
  %2068 = vmatpush1.bf16.msra.mxu0 0
  %2069 = vmatprep.subr.bf16.mxu0 0
  %2070 = vmatpush1.bf16.msra.mxu0 0
  %2071 = vmatprep.mubr.bf16.mxu0 0
  %2072 = vmatmul.mubr.bf16.gmra.mrb[0].mxu0 %v1924
  %v2073 = vpop.f32.mrb[0].mxu0
  %v2074 = vadd.f32 0.0, %v2073
  %v2075 = vpop.f32.mrb[0].mxu0
  %v2076 = vadd.f32 0.0, %v2075
  %v2077 = vpop.f32.mrb[0].mxu0
  %v2078 = vpop.f32.mrb[0].mxu0
  %2079 = vdwg.mxu0
  %2080 = vmatprep.subr.bf16.mxu0 %v533
  %2081 = vmatpush1.bf16.msra.mxu0 %v532
  %2082 = vmatprep.subr.bf16.mxu0 %v537
  %2083 = vmatpush1.bf16.msra.mxu0 %v536
  %2084 = vmatprep.subr.bf16.mxu0 %v541
  %2085 = vmatpush1.bf16.msra.mxu0 %v540
  %2086 = vmatprep.subr.bf16.mxu0 %v545
  %2087 = vmatpush1.bf16.msra.mxu0 %v544
  %2088 = vmatprep.subr.bf16.mxu0 %v549
  %2089 = vmatpush1.bf16.msra.mxu0 %v548
  %2090 = vmatprep.subr.bf16.mxu0 %v553
  %2091 = vmatpush1.bf16.msra.mxu0 %v552
  %2092 = vmatprep.subr.bf16.mxu0 %v557
  %2093 = vmatpush1.bf16.msra.mxu0 %v556
  %2094 = vmatprep.subr.bf16.mxu0 %v561
  %2095 = vmatpush1.bf16.msra.mxu0 %v560
  %2096 = vmatprep.subr.bf16.mxu0 0
  %2097 = vmatpush1.bf16.msra.mxu0 0
  %2098 = vmatprep.subr.bf16.mxu0 0
  %2099 = vmatpush1.bf16.msra.mxu0 0
  %2100 = vmatprep.subr.bf16.mxu0 0
  %2101 = vmatpush1.bf16.msra.mxu0 0
  %2102 = vmatprep.subr.bf16.mxu0 0
  %2103 = vmatpush1.bf16.msra.mxu0 0
  %2104 = vmatprep.subr.bf16.mxu0 0
  %2105 = vmatpush1.bf16.msra.mxu0 0
  %2106 = vmatprep.subr.bf16.mxu0 0
  %2107 = vmatpush1.bf16.msra.mxu0 0
  %2108 = vmatprep.subr.bf16.mxu0 0
  %2109 = vmatpush1.bf16.msra.mxu0 0
  %2110 = vmatprep.subr.bf16.mxu0 0
  %2111 = vmatpush1.bf16.msra.mxu0 0
  %2112 = vmatprep.mubr.bf16.mxu0 0
  %2113 = vmatmul.mubr.bf16.gmra.mrb[0].mxu0 %v1924
  %v2114 = vpop.f32.mrb[0].mxu0
  %v2115 = vadd.f32 0.0, %v2114
  %v2116 = vpop.f32.mrb[0].mxu0
  %v2117 = vadd.f32 0.0, %v2116
  %v2118 = vpop.f32.mrb[0].mxu0
  %v2119 = vpop.f32.mrb[0].mxu0
  %2120 = vdwg.mxu0
  %v2121 = vadd.f32 %v2035, %v2074
  %v2122 = vadd.f32 %v2036, %v2076
  %v2123 = vadd.f32 %v2037, %v2115
  %v2124 = vadd.f32 %v2038, %v2117
  %v2125 = vxor.u32 %v2121, 2147483648
  %v2126 = vmul.f32 %v2125, 1.442695
  %v2127 = vpow.pop %v2126
  %v2128 = vadd.f32 %v2127, 1.0
  %v2129 = vrcp.pop %v2128
  %v2130 = vmul.f32 1.0, %v2129
  %v2131 = vxor.u32 %v2122, 2147483648
  %v2132 = vmul.f32 %v2131, 1.442695
  %v2133 = vpow.pop %v2132
  %v2134 = vadd.f32 %v2133, 1.0
  %v2135 = vrcp.pop %v2134
  %v2136 = vmul.f32 1.0, %v2135
  %v2137 = vtanh.pop %v2123
  %v2138 = vxor.u32 %v2124, 2147483648
  %v2139 = vmul.f32 %v2138, 1.442695
  %v2140 = vpow.pop %v2139
  %v2141 = vadd.f32 %v2140, 1.0
  %v2142 = vrcp.pop %v2141
  %v2143 = vmul.f32 1.0, %v2142
  %v2144 = vmul.f32 %v2136, %v1921
  %v2145 = vmul.f32 %v2130, %v2137
  %v2146 = vadd.f32 %v2144, %v2145
  %v2147 = vtanh.pop %v2146
  %v2148 = vmul.f32 %v2143, %v2147
  %v2149 = vpack.c.bf16 %v2148, %v2148
  %v2150 = vpack.c.bf16 %v2031, %v2031
  %2151 = vmatprep.subr.bf16.mxu0 %v899
  %2152 = vmatpush1.bf16.msra.mxu0 %v898
  %2153 = vmatprep.subr.bf16.mxu0 %v903
  %2154 = vmatpush1.bf16.msra.mxu0 %v902
  %2155 = vmatprep.subr.bf16.mxu0 %v907
  %2156 = vmatpush1.bf16.msra.mxu0 %v906
  %2157 = vmatprep.subr.bf16.mxu0 %v911
  %2158 = vmatpush1.bf16.msra.mxu0 %v910
  %2159 = vmatprep.subr.bf16.mxu0 %v915
  %2160 = vmatpush1.bf16.msra.mxu0 %v914
  %2161 = vmatprep.subr.bf16.mxu0 %v919
  %2162 = vmatpush1.bf16.msra.mxu0 %v918
  %2163 = vmatprep.subr.bf16.mxu0 %v923
  %2164 = vmatpush1.bf16.msra.mxu0 %v922
  %2165 = vmatprep.subr.bf16.mxu0 %v927
  %2166 = vmatpush1.bf16.msra.mxu0 %v926
  %2167 = vmatprep.subr.bf16.mxu0 %v931
  %2168 = vmatpush1.bf16.msra.mxu0 %v930
  %2169 = vmatprep.subr.bf16.mxu0 %v935
  %2170 = vmatpush1.bf16.msra.mxu0 %v934
  %2171 = vmatprep.subr.bf16.mxu0 %v939
  %2172 = vmatpush1.bf16.msra.mxu0 %v938
  %2173 = vmatprep.subr.bf16.mxu0 %v943
  %2174 = vmatpush1.bf16.msra.mxu0 %v942
  %2175 = vmatprep.subr.bf16.mxu0 %v947
  %2176 = vmatpush1.bf16.msra.mxu0 %v946
  %2177 = vmatprep.subr.bf16.mxu0 %v951
  %2178 = vmatpush1.bf16.msra.mxu0 %v950
  %2179 = vmatprep.subr.bf16.mxu0 %v955
  %2180 = vmatpush1.bf16.msra.mxu0 %v954
  %2181 = vmatprep.subr.bf16.mxu0 %v959
  %2182 = vmatpush1.bf16.msra.mxu0 %v958
  %2183 = vmatprep.mubr.bf16.mxu0 %v2150
  %2184 = vmatmul.mubr.bf16.gmra.mrb[0].mxu0 %v2149
  %v2185 = vpop.f32.mrb[0].mxu0
  %v2186 = vadd.f32 %v410, %v2185
  %v2187 = vpop.f32.mrb[0].mxu0
  %v2188 = vadd.f32 %v414, %v2187
  %v2189 = vpop.f32.mrb[0].mxu0
  %v2190 = vpop.f32.mrb[0].mxu0
  %2191 = vdwg.mxu0
  %2192 = vmatprep.subr.bf16.mxu0 %v901
  %2193 = vmatpush1.bf16.msra.mxu0 %v900
  %2194 = vmatprep.subr.bf16.mxu0 %v905
  %2195 = vmatpush1.bf16.msra.mxu0 %v904
  %2196 = vmatprep.subr.bf16.mxu0 %v909
  %2197 = vmatpush1.bf16.msra.mxu0 %v908
  %2198 = vmatprep.subr.bf16.mxu0 %v913
  %2199 = vmatpush1.bf16.msra.mxu0 %v912
  %2200 = vmatprep.subr.bf16.mxu0 %v917
  %2201 = vmatpush1.bf16.msra.mxu0 %v916
  %2202 = vmatprep.subr.bf16.mxu0 %v921
  %2203 = vmatpush1.bf16.msra.mxu0 %v920
  %2204 = vmatprep.subr.bf16.mxu0 %v925
  %2205 = vmatpush1.bf16.msra.mxu0 %v924
  %2206 = vmatprep.subr.bf16.mxu0 %v929
  %2207 = vmatpush1.bf16.msra.mxu0 %v928
  %2208 = vmatprep.subr.bf16.mxu0 %v933
  %2209 = vmatpush1.bf16.msra.mxu0 %v932
  %2210 = vmatprep.subr.bf16.mxu0 %v937
  %2211 = vmatpush1.bf16.msra.mxu0 %v936
  %2212 = vmatprep.subr.bf16.mxu0 %v941
  %2213 = vmatpush1.bf16.msra.mxu0 %v940
  %2214 = vmatprep.subr.bf16.mxu0 %v945
  %2215 = vmatpush1.bf16.msra.mxu0 %v944
  %2216 = vmatprep.subr.bf16.mxu0 %v949
  %2217 = vmatpush1.bf16.msra.mxu0 %v948
  %2218 = vmatprep.subr.bf16.mxu0 %v953
  %2219 = vmatpush1.bf16.msra.mxu0 %v952
  %2220 = vmatprep.subr.bf16.mxu0 %v957
  %2221 = vmatpush1.bf16.msra.mxu0 %v956
  %2222 = vmatprep.subr.bf16.mxu0 %v961
  %2223 = vmatpush1.bf16.msra.mxu0 %v960
  %2224 = vmatprep.mubr.bf16.mxu0 %v2150
  %2225 = vmatmul.mubr.bf16.gmra.mrb[0].mxu0 %v2149
  %v2226 = vpop.f32.mrb[0].mxu0
  %v2227 = vadd.f32 %v418, %v2226
  %v2228 = vpop.f32.mrb[0].mxu0
  %v2229 = vadd.f32 %v422, %v2228
  %v2230 = vpop.f32.mrb[0].mxu0
  %v2231 = vpop.f32.mrb[0].mxu0
  %2232 = vdwg.mxu0
  %v2233 = vxor.u32 %v2186, 2147483648
  %v2234 = vmul.f32 %v2233, 1.442695
  %v2235 = vpow.pop %v2234
  %v2236 = vadd.f32 %v2235, 1.0
  %v2237 = vrcp.pop %v2236
  %v2238 = vmul.f32 1.0, %v2237
  %v2239 = vxor.u32 %v2188, 2147483648
  %v2240 = vmul.f32 %v2239, 1.442695
  %v2241 = vpow.pop %v2240
  %v2242 = vadd.f32 %v2241, 1.0
  %v2243 = vrcp.pop %v2242
  %v2244 = vmul.f32 1.0, %v2243
  %v2245 = vtanh.pop %v2227
  %v2246 = vxor.u32 %v2229, 2147483648
  %v2247 = vmul.f32 %v2246, 1.442695
  %v2248 = vpow.pop %v2247
  %v2249 = vadd.f32 %v2248, 1.0
  %v2250 = vrcp.pop %v2249
  %v2251 = vmul.f32 1.0, %v2250
  %v2252 = vmul.f32 %v2244, %v2029
  %v2253 = vmul.f32 %v2238, %v2245
  %v2254 = vadd.f32 %v2252, %v2253
  %v2255 = vtanh.pop %v2254
  %v2256 = vmul.f32 %v2251, %v2255
  %s2257 = smul.u32 6, 4
  %s2258 = smul.addr %s2257, 8
  %s2259 = scalar_lea.vmem [#allocation2], %s2258
  %v2260 = vld [vmem:[%s2259] sm:$0xff]
  %v2261 = vld [vmem:[%s2259 + $0x8] sm:$0xff]
  %v2262 = vld [vmem:[%s2259 + $0x10] sm:$0xff]
  %v2263 = vld [vmem:[%s2259 + $0x18] sm:$0xff]
  %2264 = vmatprep.subr.bf16.mxu0 %v531
  %2265 = vmatpush1.bf16.msra.mxu0 %v530
  %2266 = vmatprep.subr.bf16.mxu0 %v535
  %2267 = vmatpush1.bf16.msra.mxu0 %v534
  %2268 = vmatprep.subr.bf16.mxu0 %v539
  %2269 = vmatpush1.bf16.msra.mxu0 %v538
  %2270 = vmatprep.subr.bf16.mxu0 %v543
  %2271 = vmatpush1.bf16.msra.mxu0 %v542
  %2272 = vmatprep.subr.bf16.mxu0 %v547
  %2273 = vmatpush1.bf16.msra.mxu0 %v546
  %2274 = vmatprep.subr.bf16.mxu0 %v551
  %2275 = vmatpush1.bf16.msra.mxu0 %v550
  %2276 = vmatprep.subr.bf16.mxu0 %v555
  %2277 = vmatpush1.bf16.msra.mxu0 %v554
  %2278 = vmatprep.subr.bf16.mxu0 %v559
  %2279 = vmatpush1.bf16.msra.mxu0 %v558
  %2280 = vmatprep.subr.bf16.mxu0 0
  %2281 = vmatpush1.bf16.msra.mxu0 0
  %2282 = vmatprep.subr.bf16.mxu0 0
  %2283 = vmatpush1.bf16.msra.mxu0 0
  %2284 = vmatprep.subr.bf16.mxu0 0
  %2285 = vmatpush1.bf16.msra.mxu0 0
  %2286 = vmatprep.subr.bf16.mxu0 0
  %2287 = vmatpush1.bf16.msra.mxu0 0
  %2288 = vmatprep.subr.bf16.mxu0 0
  %2289 = vmatpush1.bf16.msra.mxu0 0
  %2290 = vmatprep.subr.bf16.mxu0 0
  %2291 = vmatpush1.bf16.msra.mxu0 0
  %2292 = vmatprep.subr.bf16.mxu0 0
  %2293 = vmatpush1.bf16.msra.mxu0 0
  %2294 = vmatprep.subr.bf16.mxu0 0
  %2295 = vmatpush1.bf16.msra.mxu0 0
  %2296 = vmatprep.mubr.bf16.mxu0 0
  %2297 = vmatmul.mubr.bf16.gmra.mrb[0].mxu0 %v2149
  %v2298 = vpop.f32.mrb[0].mxu0
  %v2299 = vadd.f32 0.0, %v2298
  %v2300 = vpop.f32.mrb[0].mxu0
  %v2301 = vadd.f32 0.0, %v2300
  %v2302 = vpop.f32.mrb[0].mxu0
  %v2303 = vpop.f32.mrb[0].mxu0
  %2304 = vdwg.mxu0
  %2305 = vmatprep.subr.bf16.mxu0 %v533
  %2306 = vmatpush1.bf16.msra.mxu0 %v532
  %2307 = vmatprep.subr.bf16.mxu0 %v537
  %2308 = vmatpush1.bf16.msra.mxu0 %v536
  %2309 = vmatprep.subr.bf16.mxu0 %v541
  %2310 = vmatpush1.bf16.msra.mxu0 %v540
  %2311 = vmatprep.subr.bf16.mxu0 %v545
  %2312 = vmatpush1.bf16.msra.mxu0 %v544
  %2313 = vmatprep.subr.bf16.mxu0 %v549
  %2314 = vmatpush1.bf16.msra.mxu0 %v548
  %2315 = vmatprep.subr.bf16.mxu0 %v553
  %2316 = vmatpush1.bf16.msra.mxu0 %v552
  %2317 = vmatprep.subr.bf16.mxu0 %v557
  %2318 = vmatpush1.bf16.msra.mxu0 %v556
  %2319 = vmatprep.subr.bf16.mxu0 %v561
  %2320 = vmatpush1.bf16.msra.mxu0 %v560
  %2321 = vmatprep.subr.bf16.mxu0 0
  %2322 = vmatpush1.bf16.msra.mxu0 0
  %2323 = vmatprep.subr.bf16.mxu0 0
  %2324 = vmatpush1.bf16.msra.mxu0 0
  %2325 = vmatprep.subr.bf16.mxu0 0
  %2326 = vmatpush1.bf16.msra.mxu0 0
  %2327 = vmatprep.subr.bf16.mxu0 0
  %2328 = vmatpush1.bf16.msra.mxu0 0
  %2329 = vmatprep.subr.bf16.mxu0 0
  %2330 = vmatpush1.bf16.msra.mxu0 0
  %2331 = vmatprep.subr.bf16.mxu0 0
  %2332 = vmatpush1.bf16.msra.mxu0 0
  %2333 = vmatprep.subr.bf16.mxu0 0
  %2334 = vmatpush1.bf16.msra.mxu0 0
  %2335 = vmatprep.subr.bf16.mxu0 0
  %2336 = vmatpush1.bf16.msra.mxu0 0
  %2337 = vmatprep.mubr.bf16.mxu0 0
  %2338 = vmatmul.mubr.bf16.gmra.mrb[0].mxu0 %v2149
  %v2339 = vpop.f32.mrb[0].mxu0
  %v2340 = vadd.f32 0.0, %v2339
  %v2341 = vpop.f32.mrb[0].mxu0
  %v2342 = vadd.f32 0.0, %v2341
  %v2343 = vpop.f32.mrb[0].mxu0
  %v2344 = vpop.f32.mrb[0].mxu0
  %2345 = vdwg.mxu0
  %v2346 = vadd.f32 %v2260, %v2299
  %v2347 = vadd.f32 %v2261, %v2301
  %v2348 = vadd.f32 %v2262, %v2340
  %v2349 = vadd.f32 %v2263, %v2342
  %v2350 = vxor.u32 %v2346, 2147483648
  %v2351 = vmul.f32 %v2350, 1.442695
  %v2352 = vpow.pop %v2351
  %v2353 = vadd.f32 %v2352, 1.0
  %v2354 = vrcp.pop %v2353
  %v2355 = vmul.f32 1.0, %v2354
  %v2356 = vxor.u32 %v2347, 2147483648
  %v2357 = vmul.f32 %v2356, 1.442695
  %v2358 = vpow.pop %v2357
  %v2359 = vadd.f32 %v2358, 1.0
  %v2360 = vrcp.pop %v2359
  %v2361 = vmul.f32 1.0, %v2360
  %v2362 = vtanh.pop %v2348
  %v2363 = vxor.u32 %v2349, 2147483648
  %v2364 = vmul.f32 %v2363, 1.442695
  %v2365 = vpow.pop %v2364
  %v2366 = vadd.f32 %v2365, 1.0
  %v2367 = vrcp.pop %v2366
  %v2368 = vmul.f32 1.0, %v2367
  %v2369 = vmul.f32 %v2361, %v2146
  %v2370 = vmul.f32 %v2355, %v2362
  %v2371 = vadd.f32 %v2369, %v2370
  %v2372 = vtanh.pop %v2371
  %v2373 = vmul.f32 %v2368, %v2372
  %v2374 = vpack.c.bf16 %v2373, %v2373
  %v2375 = vpack.c.bf16 %v2256, %v2256
  %2376 = vmatprep.subr.bf16.mxu0 %v899
  %2377 = vmatpush1.bf16.msra.mxu0 %v898
  %2378 = vmatprep.subr.bf16.mxu0 %v903
  %2379 = vmatpush1.bf16.msra.mxu0 %v902
  %2380 = vmatprep.subr.bf16.mxu0 %v907
  %2381 = vmatpush1.bf16.msra.mxu0 %v906
  %2382 = vmatprep.subr.bf16.mxu0 %v911
  %2383 = vmatpush1.bf16.msra.mxu0 %v910
  %2384 = vmatprep.subr.bf16.mxu0 %v915
  %2385 = vmatpush1.bf16.msra.mxu0 %v914
  %2386 = vmatprep.subr.bf16.mxu0 %v919
  %2387 = vmatpush1.bf16.msra.mxu0 %v918
  %2388 = vmatprep.subr.bf16.mxu0 %v923
  %2389 = vmatpush1.bf16.msra.mxu0 %v922
  %2390 = vmatprep.subr.bf16.mxu0 %v927
  %2391 = vmatpush1.bf16.msra.mxu0 %v926
  %2392 = vmatprep.subr.bf16.mxu0 %v931
  %2393 = vmatpush1.bf16.msra.mxu0 %v930
  %2394 = vmatprep.subr.bf16.mxu0 %v935
  %2395 = vmatpush1.bf16.msra.mxu0 %v934
  %2396 = vmatprep.subr.bf16.mxu0 %v939
  %2397 = vmatpush1.bf16.msra.mxu0 %v938
  %2398 = vmatprep.subr.bf16.mxu0 %v943
  %2399 = vmatpush1.bf16.msra.mxu0 %v942
  %2400 = vmatprep.subr.bf16.mxu0 %v947
  %2401 = vmatpush1.bf16.msra.mxu0 %v946
  %2402 = vmatprep.subr.bf16.mxu0 %v951
  %2403 = vmatpush1.bf16.msra.mxu0 %v950
  %2404 = vmatprep.subr.bf16.mxu0 %v955
  %2405 = vmatpush1.bf16.msra.mxu0 %v954
  %2406 = vmatprep.subr.bf16.mxu0 %v959
  %2407 = vmatpush1.bf16.msra.mxu0 %v958
  %2408 = vmatprep.mubr.bf16.mxu0 %v2375
  %2409 = vmatmul.mubr.bf16.gmra.mrb[0].mxu0 %v2374
  %v2410 = vpop.f32.mrb[0].mxu0
  %v2411 = vadd.f32 %v410, %v2410
  %v2412 = vpop.f32.mrb[0].mxu0
  %v2413 = vadd.f32 %v414, %v2412
  %v2414 = vpop.f32.mrb[0].mxu0
  %v2415 = vpop.f32.mrb[0].mxu0
  %2416 = vdwg.mxu0
  %2417 = vmatprep.subr.bf16.mxu0 %v901
  %2418 = vmatpush1.bf16.msra.mxu0 %v900
  %2419 = vmatprep.subr.bf16.mxu0 %v905
  %2420 = vmatpush1.bf16.msra.mxu0 %v904
  %2421 = vmatprep.subr.bf16.mxu0 %v909
  %2422 = vmatpush1.bf16.msra.mxu0 %v908
  %2423 = vmatprep.subr.bf16.mxu0 %v913
  %2424 = vmatpush1.bf16.msra.mxu0 %v912
  %2425 = vmatprep.subr.bf16.mxu0 %v917
  %2426 = vmatpush1.bf16.msra.mxu0 %v916
  %2427 = vmatprep.subr.bf16.mxu0 %v921
  %2428 = vmatpush1.bf16.msra.mxu0 %v920
  %2429 = vmatprep.subr.bf16.mxu0 %v925
  %2430 = vmatpush1.bf16.msra.mxu0 %v924
  %2431 = vmatprep.subr.bf16.mxu0 %v929
  %2432 = vmatpush1.bf16.msra.mxu0 %v928
  %2433 = vmatprep.subr.bf16.mxu0 %v933
  %2434 = vmatpush1.bf16.msra.mxu0 %v932
  %2435 = vmatprep.subr.bf16.mxu0 %v937
  %2436 = vmatpush1.bf16.msra.mxu0 %v936
  %2437 = vmatprep.subr.bf16.mxu0 %v941
  %2438 = vmatpush1.bf16.msra.mxu0 %v940
  %2439 = vmatprep.subr.bf16.mxu0 %v945
  %2440 = vmatpush1.bf16.msra.mxu0 %v944
  %2441 = vmatprep.subr.bf16.mxu0 %v949
  %2442 = vmatpush1.bf16.msra.mxu0 %v948
  %2443 = vmatprep.subr.bf16.mxu0 %v953
  %2444 = vmatpush1.bf16.msra.mxu0 %v952
  %2445 = vmatprep.subr.bf16.mxu0 %v957
  %2446 = vmatpush1.bf16.msra.mxu0 %v956
  %2447 = vmatprep.subr.bf16.mxu0 %v961
  %2448 = vmatpush1.bf16.msra.mxu0 %v960
  %2449 = vmatprep.mubr.bf16.mxu0 %v2375
  %2450 = vmatmul.mubr.bf16.gmra.mrb[0].mxu0 %v2374
  %v2451 = vpop.f32.mrb[0].mxu0
  %v2452 = vadd.f32 %v418, %v2451
  %v2453 = vpop.f32.mrb[0].mxu0
  %v2454 = vadd.f32 %v422, %v2453
  %v2455 = vpop.f32.mrb[0].mxu0
  %v2456 = vpop.f32.mrb[0].mxu0
  %2457 = vdwg.mxu0
  %v2458 = vxor.u32 %v2411, 2147483648
  %v2459 = vmul.f32 %v2458, 1.442695
  %v2460 = vpow.pop %v2459
  %v2461 = vadd.f32 %v2460, 1.0
  %v2462 = vrcp.pop %v2461
  %v2463 = vmul.f32 1.0, %v2462
  %v2464 = vxor.u32 %v2413, 2147483648
  %v2465 = vmul.f32 %v2464, 1.442695
  %v2466 = vpow.pop %v2465
  %v2467 = vadd.f32 %v2466, 1.0
  %v2468 = vrcp.pop %v2467
  %v2469 = vmul.f32 1.0, %v2468
  %v2470 = vtanh.pop %v2452
  %v2471 = vxor.u32 %v2454, 2147483648
  %v2472 = vmul.f32 %v2471, 1.442695
  %v2473 = vpow.pop %v2472
  %v2474 = vadd.f32 %v2473, 1.0
  %v2475 = vrcp.pop %v2474
  %v2476 = vmul.f32 1.0, %v2475
  %v2477 = vmul.f32 %v2469, %v2254
  %v2478 = vmul.f32 %v2463, %v2470
  %v2479 = vadd.f32 %v2477, %v2478
  %v2480 = vtanh.pop %v2479
  %v2481 = vmul.f32 %v2476, %v2480
  %s2482 = smul.u32 7, 4
  %s2483 = smul.addr %s2482, 8
  %s2484 = scalar_lea.vmem [#allocation2], %s2483
  %v2485 = vld [vmem:[%s2484] sm:$0xff]
  %v2486 = vld [vmem:[%s2484 + $0x8] sm:$0xff]
  %v2487 = vld [vmem:[%s2484 + $0x10] sm:$0xff]
  %v2488 = vld [vmem:[%s2484 + $0x18] sm:$0xff]
  %2489 = vmatprep.subr.bf16.mxu0 %v531
  %2490 = vmatpush1.bf16.msra.mxu0 %v530
  %2491 = vmatprep.subr.bf16.mxu0 %v535
  %2492 = vmatpush1.bf16.msra.mxu0 %v534
  %2493 = vmatprep.subr.bf16.mxu0 %v539
  %2494 = vmatpush1.bf16.msra.mxu0 %v538
  %2495 = vmatprep.subr.bf16.mxu0 %v543
  %2496 = vmatpush1.bf16.msra.mxu0 %v542
  %2497 = vmatprep.subr.bf16.mxu0 %v547
  %2498 = vmatpush1.bf16.msra.mxu0 %v546
  %2499 = vmatprep.subr.bf16.mxu0 %v551
  %2500 = vmatpush1.bf16.msra.mxu0 %v550
  %2501 = vmatprep.subr.bf16.mxu0 %v555
  %2502 = vmatpush1.bf16.msra.mxu0 %v554
  %2503 = vmatprep.subr.bf16.mxu0 %v559
  %2504 = vmatpush1.bf16.msra.mxu0 %v558
  %2505 = vmatprep.subr.bf16.mxu0 0
  %2506 = vmatpush1.bf16.msra.mxu0 0
  %2507 = vmatprep.subr.bf16.mxu0 0
  %2508 = vmatpush1.bf16.msra.mxu0 0
  %2509 = vmatprep.subr.bf16.mxu0 0
  %2510 = vmatpush1.bf16.msra.mxu0 0
  %2511 = vmatprep.subr.bf16.mxu0 0
  %2512 = vmatpush1.bf16.msra.mxu0 0
  %2513 = vmatprep.subr.bf16.mxu0 0
  %2514 = vmatpush1.bf16.msra.mxu0 0
  %2515 = vmatprep.subr.bf16.mxu0 0
  %2516 = vmatpush1.bf16.msra.mxu0 0
  %2517 = vmatprep.subr.bf16.mxu0 0
  %2518 = vmatpush1.bf16.msra.mxu0 0
  %2519 = vmatprep.subr.bf16.mxu0 0
  %2520 = vmatpush1.bf16.msra.mxu0 0
  %2521 = vmatprep.mubr.bf16.mxu0 0
  %2522 = vmatmul.mubr.bf16.gmra.mrb[0].mxu0 %v2374
  %v2523 = vpop.f32.mrb[0].mxu0
  %v2524 = vadd.f32 0.0, %v2523
  %v2525 = vpop.f32.mrb[0].mxu0
  %v2526 = vadd.f32 0.0, %v2525
  %v2527 = vpop.f32.mrb[0].mxu0
  %v2528 = vpop.f32.mrb[0].mxu0
  %2529 = vdwg.mxu0
  %2530 = vmatprep.subr.bf16.mxu0 %v533
  %2531 = vmatpush1.bf16.msra.mxu0 %v532
  %2532 = vmatprep.subr.bf16.mxu0 %v537
  %2533 = vmatpush1.bf16.msra.mxu0 %v536
  %2534 = vmatprep.subr.bf16.mxu0 %v541
  %2535 = vmatpush1.bf16.msra.mxu0 %v540
  %2536 = vmatprep.subr.bf16.mxu0 %v545
  %2537 = vmatpush1.bf16.msra.mxu0 %v544
  %2538 = vmatprep.subr.bf16.mxu0 %v549
  %2539 = vmatpush1.bf16.msra.mxu0 %v548
  %2540 = vmatprep.subr.bf16.mxu0 %v553
  %2541 = vmatpush1.bf16.msra.mxu0 %v552
  %2542 = vmatprep.subr.bf16.mxu0 %v557
  %2543 = vmatpush1.bf16.msra.mxu0 %v556
  %2544 = vmatprep.subr.bf16.mxu0 %v561
  %2545 = vmatpush1.bf16.msra.mxu0 %v560
  %2546 = vmatprep.subr.bf16.mxu0 0
  %2547 = vmatpush1.bf16.msra.mxu0 0
  %2548 = vmatprep.subr.bf16.mxu0 0
  %2549 = vmatpush1.bf16.msra.mxu0 0
  %2550 = vmatprep.subr.bf16.mxu0 0
  %2551 = vmatpush1.bf16.msra.mxu0 0
  %2552 = vmatprep.subr.bf16.mxu0 0
  %2553 = vmatpush1.bf16.msra.mxu0 0
  %2554 = vmatprep.subr.bf16.mxu0 0
  %2555 = vmatpush1.bf16.msra.mxu0 0
  %2556 = vmatprep.subr.bf16.mxu0 0
  %2557 = vmatpush1.bf16.msra.mxu0 0
  %2558 = vmatprep.subr.bf16.mxu0 0
  %2559 = vmatpush1.bf16.msra.mxu0 0
  %2560 = vmatprep.subr.bf16.mxu0 0
  %2561 = vmatpush1.bf16.msra.mxu0 0
  %2562 = vmatprep.mubr.bf16.mxu0 0
  %2563 = vmatmul.mubr.bf16.gmra.mrb[0].mxu0 %v2374
  %v2564 = vpop.f32.mrb[0].mxu0
  %v2565 = vadd.f32 0.0, %v2564
  %v2566 = vpop.f32.mrb[0].mxu0
  %v2567 = vadd.f32 0.0, %v2566
  %v2568 = vpop.f32.mrb[0].mxu0
  %v2569 = vpop.f32.mrb[0].mxu0
  %2570 = vdwg.mxu0
  %v2571 = vadd.f32 %v2485, %v2524
  %v2572 = vadd.f32 %v2486, %v2526
  %v2573 = vadd.f32 %v2487, %v2565
  %v2574 = vadd.f32 %v2488, %v2567
  %v2575 = vxor.u32 %v2571, 2147483648
  %v2576 = vmul.f32 %v2575, 1.442695
  %v2577 = vpow.pop %v2576
  %v2578 = vadd.f32 %v2577, 1.0
  %v2579 = vrcp.pop %v2578
  %v2580 = vmul.f32 1.0, %v2579
  %v2581 = vxor.u32 %v2572, 2147483648
  %v2582 = vmul.f32 %v2581, 1.442695
  %v2583 = vpow.pop %v2582
  %v2584 = vadd.f32 %v2583, 1.0
  %v2585 = vrcp.pop %v2584
  %v2586 = vmul.f32 1.0, %v2585
  %v2587 = vtanh.pop %v2573
  %v2588 = vxor.u32 %v2574, 2147483648
  %v2589 = vmul.f32 %v2588, 1.442695
  %v2590 = vpow.pop %v2589
  %v2591 = vadd.f32 %v2590, 1.0
  %v2592 = vrcp.pop %v2591
  %v2593 = vmul.f32 1.0, %v2592
  %v2594 = vmul.f32 %v2586, %v2371
  %v2595 = vmul.f32 %v2580, %v2587
  %v2596 = vadd.f32 %v2594, %v2595
  %v2597 = vtanh.pop %v2596
  %v2598 = vmul.f32 %v2593, %v2597
  %v2599 = vpack.c.bf16 %v2598, %v2598
  %v2600 = vpack.c.bf16 %v2481, %v2481
  %2601 = vmatprep.subr.bf16.mxu0 %v899
  %2602 = vmatpush1.bf16.msra.mxu0 %v898
  %2603 = vmatprep.subr.bf16.mxu0 %v903
  %2604 = vmatpush1.bf16.msra.mxu0 %v902
  %2605 = vmatprep.subr.bf16.mxu0 %v907
  %2606 = vmatpush1.bf16.msra.mxu0 %v906
  %2607 = vmatprep.subr.bf16.mxu0 %v911
  %2608 = vmatpush1.bf16.msra.mxu0 %v910
  %2609 = vmatprep.subr.bf16.mxu0 %v915
  %2610 = vmatpush1.bf16.msra.mxu0 %v914
  %2611 = vmatprep.subr.bf16.mxu0 %v919
  %2612 = vmatpush1.bf16.msra.mxu0 %v918
  %2613 = vmatprep.subr.bf16.mxu0 %v923
  %2614 = vmatpush1.bf16.msra.mxu0 %v922
  %2615 = vmatprep.subr.bf16.mxu0 %v927
  %2616 = vmatpush1.bf16.msra.mxu0 %v926
  %2617 = vmatprep.subr.bf16.mxu0 %v931
  %2618 = vmatpush1.bf16.msra.mxu0 %v930
  %2619 = vmatprep.subr.bf16.mxu0 %v935
  %2620 = vmatpush1.bf16.msra.mxu0 %v934
  %2621 = vmatprep.subr.bf16.mxu0 %v939
  %2622 = vmatpush1.bf16.msra.mxu0 %v938
  %2623 = vmatprep.subr.bf16.mxu0 %v943
  %2624 = vmatpush1.bf16.msra.mxu0 %v942
  %2625 = vmatprep.subr.bf16.mxu0 %v947
  %2626 = vmatpush1.bf16.msra.mxu0 %v946
  %2627 = vmatprep.subr.bf16.mxu0 %v951
  %2628 = vmatpush1.bf16.msra.mxu0 %v950
  %2629 = vmatprep.subr.bf16.mxu0 %v955
  %2630 = vmatpush1.bf16.msra.mxu0 %v954
  %2631 = vmatprep.subr.bf16.mxu0 %v959
  %2632 = vmatpush1.bf16.msra.mxu0 %v958
  %2633 = vmatprep.mubr.bf16.mxu0 %v2600
  %2634 = vmatmul.mubr.bf16.gmra.mrb[0].mxu0 %v2599
  %v2635 = vpop.f32.mrb[0].mxu0
  %v2636 = vadd.f32 %v410, %v2635
  %v2637 = vpop.f32.mrb[0].mxu0
  %v2638 = vadd.f32 %v414, %v2637
  %v2639 = vpop.f32.mrb[0].mxu0
  %v2640 = vpop.f32.mrb[0].mxu0
  %2641 = vdwg.mxu0
  %2642 = vmatprep.subr.bf16.mxu0 %v901
  %2643 = vmatpush1.bf16.msra.mxu0 %v900
  %2644 = vmatprep.subr.bf16.mxu0 %v905
  %2645 = vmatpush1.bf16.msra.mxu0 %v904
  %2646 = vmatprep.subr.bf16.mxu0 %v909
  %2647 = vmatpush1.bf16.msra.mxu0 %v908
  %2648 = vmatprep.subr.bf16.mxu0 %v913
  %2649 = vmatpush1.bf16.msra.mxu0 %v912
  %2650 = vmatprep.subr.bf16.mxu0 %v917
  %2651 = vmatpush1.bf16.msra.mxu0 %v916
  %2652 = vmatprep.subr.bf16.mxu0 %v921
  %2653 = vmatpush1.bf16.msra.mxu0 %v920
  %2654 = vmatprep.subr.bf16.mxu0 %v925
  %2655 = vmatpush1.bf16.msra.mxu0 %v924
  %2656 = vmatprep.subr.bf16.mxu0 %v929
  %2657 = vmatpush1.bf16.msra.mxu0 %v928
  %2658 = vmatprep.subr.bf16.mxu0 %v933
  %2659 = vmatpush1.bf16.msra.mxu0 %v932
  %2660 = vmatprep.subr.bf16.mxu0 %v937
  %2661 = vmatpush1.bf16.msra.mxu0 %v936
  %2662 = vmatprep.subr.bf16.mxu0 %v941
  %2663 = vmatpush1.bf16.msra.mxu0 %v940
  %2664 = vmatprep.subr.bf16.mxu0 %v945
  %2665 = vmatpush1.bf16.msra.mxu0 %v944
  %2666 = vmatprep.subr.bf16.mxu0 %v949
  %2667 = vmatpush1.bf16.msra.mxu0 %v948
  %2668 = vmatprep.subr.bf16.mxu0 %v953
  %2669 = vmatpush1.bf16.msra.mxu0 %v952
  %2670 = vmatprep.subr.bf16.mxu0 %v957
  %2671 = vmatpush1.bf16.msra.mxu0 %v956
  %2672 = vmatprep.subr.bf16.mxu0 %v961
  %2673 = vmatpush1.bf16.msra.mxu0 %v960
  %2674 = vmatprep.mubr.bf16.mxu0 %v2600
  %2675 = vmatmul.mubr.bf16.gmra.mrb[0].mxu0 %v2599
  %v2676 = vpop.f32.mrb[0].mxu0
  %v2677 = vadd.f32 %v418, %v2676
  %v2678 = vpop.f32.mrb[0].mxu0
  %v2679 = vadd.f32 %v422, %v2678
  %v2680 = vpop.f32.mrb[0].mxu0
  %v2681 = vpop.f32.mrb[0].mxu0
  %2682 = vdwg.mxu0
  %v2683 = vxor.u32 %v2636, 2147483648
  %v2684 = vmul.f32 %v2683, 1.442695
  %v2685 = vpow.pop %v2684
  %v2686 = vadd.f32 %v2685, 1.0
  %v2687 = vrcp.pop %v2686
  %v2688 = vmul.f32 1.0, %v2687
  %v2689 = vxor.u32 %v2638, 2147483648
  %v2690 = vmul.f32 %v2689, 1.442695
  %v2691 = vpow.pop %v2690
  %v2692 = vadd.f32 %v2691, 1.0
  %v2693 = vrcp.pop %v2692
  %v2694 = vmul.f32 1.0, %v2693
  %v2695 = vtanh.pop %v2677
  %v2696 = vxor.u32 %v2679, 2147483648
  %v2697 = vmul.f32 %v2696, 1.442695
  %v2698 = vpow.pop %v2697
  %v2699 = vadd.f32 %v2698, 1.0
  %v2700 = vrcp.pop %v2699
  %v2701 = vmul.f32 1.0, %v2700
  %v2702 = vmul.f32 %v2694, %v2479
  %v2703 = vmul.f32 %v2688, %v2695
  %v2704 = vadd.f32 %v2702, %v2703
  %v2705 = vtanh.pop %v2704
  %v2706 = vmul.f32 %v2701, %v2705
  %v2707 = vpack.c.bf16 %v2706, %v2706
  %v2708 = vld [vmem:[%s6] sm:$0xf]
  %v2709 = vld [vmem:[%s6 + $0x4] sm:$0xf]
  %v2710 = vld [vmem:[%s6 + $0x8] sm:$0xf]
  %v2711 = vld [vmem:[%s6 + $0xc] sm:$0xf]
  %v2712 = vld [vmem:[%s6 + $0x10] sm:$0xf]
  %v2713 = vld [vmem:[%s6 + $0x14] sm:$0xf]
  %v2714 = vld [vmem:[%s6 + $0x18] sm:$0xf]
  %v2715 = vld [vmem:[%s6 + $0x1c] sm:$0xf]
  %v2716 = vld [vmem:[%s6 + $0x20] sm:$0xf]
  %v2717 = vld [vmem:[%s6 + $0x24] sm:$0xf]
  %v2718 = vld [vmem:[%s6 + $0x28] sm:$0xf]
  %v2719 = vld [vmem:[%s6 + $0x2c] sm:$0xf]
  %v2720 = vld [vmem:[%s6 + $0x30] sm:$0xf]
  %v2721 = vld [vmem:[%s6 + $0x34] sm:$0xf]
  %v2722 = vld [vmem:[%s6 + $0x38] sm:$0xf]
  %v2723 = vld [vmem:[%s6 + $0x3c] sm:$0xf]
  %v2724 = vld [vmem:[%s7] sm:$0x1]
  %v2726 = vlaneseq
  %v2727 = vshrl.u32 %v2726, 7
  %v2728 = vsub.s32 0, %v2727
  %v2729 = vrot.slane %v2724, %v2728
  %v2747 = vunpack.c.l.b16 %v2708
  %v2748 = vunpack.c.l.b16 %v2709
  %v2749 = vunpack.c.l.b16 %v2710
  %v2750 = vunpack.c.l.b16 %v2711
  %v2751 = vunpack.c.l.b16 %v2712
  %v2752 = vunpack.c.l.b16 %v2713
  %v2753 = vunpack.c.l.b16 %v2714
  %v2754 = vunpack.c.l.b16 %v2715
  %v2755 = vunpack.c.l.b16 %v2716
  %v2756 = vunpack.c.l.b16 %v2717
  %v2757 = vunpack.c.l.b16 %v2718
  %v2758 = vunpack.c.l.b16 %v2719
  %v2759 = vunpack.c.l.b16 %v2720
  %v2760 = vunpack.c.l.b16 %v2721
  %v2761 = vunpack.c.l.b16 %v2722
  %v2762 = vunpack.c.l.b16 %v2723
  %v2763 = vpack.c.b16 %v2748, %v2747
  %v2764 = vpack.c.b16 %v2750, %v2749
  %v2765 = vpack.c.b16 %v2752, %v2751
  %v2766 = vpack.c.b16 %v2754, %v2753
  %v2767 = vpack.c.b16 %v2756, %v2755
  %v2768 = vpack.c.b16 %v2758, %v2757
  %v2769 = vpack.c.b16 %v2760, %v2759
  %v2770 = vpack.c.b16 %v2762, %v2761
  %2779 = vmatprep.subr.bf16.mxu0 0
  %2780 = vmatpush1.bf16.msra.mxu0 %v2763
  %2781 = vmatprep.subr.bf16.mxu0 0
  %2782 = vmatpush1.bf16.msra.mxu0 %v2764
  %2783 = vmatprep.subr.bf16.mxu0 0
  %2784 = vmatpush1.bf16.msra.mxu0 %v2765
  %2785 = vmatprep.subr.bf16.mxu0 0
  %2786 = vmatpush1.bf16.msra.mxu0 %v2766
  %2787 = vmatprep.subr.bf16.mxu0 0
  %2788 = vmatpush1.bf16.msra.mxu0 %v2767
  %2789 = vmatprep.subr.bf16.mxu0 0
  %2790 = vmatpush1.bf16.msra.mxu0 %v2768
  %2791 = vmatprep.subr.bf16.mxu0 0
  %2792 = vmatpush1.bf16.msra.mxu0 %v2769
  %2793 = vmatprep.subr.bf16.mxu0 0
  %2794 = vmatpush1.bf16.msra.mxu0 %v2770
  %2795 = vmatprep.subr.bf16.mxu0 0
  %2796 = vmatpush1.bf16.msra.mxu0 0
  %2797 = vmatprep.subr.bf16.mxu0 0
  %2798 = vmatpush1.bf16.msra.mxu0 0
  %2799 = vmatprep.subr.bf16.mxu0 0
  %2800 = vmatpush1.bf16.msra.mxu0 0
  %2801 = vmatprep.subr.bf16.mxu0 0
  %2802 = vmatpush1.bf16.msra.mxu0 0
  %2803 = vmatprep.subr.bf16.mxu0 0
  %2804 = vmatpush1.bf16.msra.mxu0 0
  %2805 = vmatprep.subr.bf16.mxu0 0
  %2806 = vmatpush1.bf16.msra.mxu0 0
  %2807 = vmatprep.subr.bf16.mxu0 0
  %2808 = vmatpush1.bf16.msra.mxu0 0
  %2809 = vmatprep.subr.bf16.mxu0 0
  %2810 = vmatpush1.bf16.msra.mxu0 0
  %2811 = vmatprep.mubr.bf16.mxu0 0
  %2812 = vmatmul.mubr.bf16.gmra.mrb[0].mxu0 %v2707
  %v2813 = vpop.f32.mrb[0].mxu0
  %v2814 = vadd.f32 %v2729, %v2813
  %v2815 = vpop.f32.mrb[0].mxu0
  %v2816 = vpop.f32.mrb[0].mxu0
  %v2817 = vpop.f32.mrb[0].mxu0
  %2818 = vdwg.mxu0
  %v2819 = vmax.f32 %v2814, 0.0
  %v2820 = vpack.c.bf16 %v2819, %v2819
  %v2821 = vld [vmem:[%s8] sm:$0xf]
  %v2822 = vld [vmem:[%s8 + $0x4] sm:$0xf]
  %v2823 = vld [vmem:[%s8 + $0x8] sm:$0xf]
  %v2824 = vld [vmem:[%s8 + $0xc] sm:$0xf]
  %v2825 = vld [vmem:[%s8 + $0x10] sm:$0xf]
  %v2826 = vld [vmem:[%s8 + $0x14] sm:$0xf]
  %v2827 = vld [vmem:[%s8 + $0x18] sm:$0xf]
  %v2828 = vld [vmem:[%s8 + $0x1c] sm:$0xf]
  %v2829 = vld [vmem:[%s8 + $0x20] sm:$0xf]
  %v2830 = vld [vmem:[%s8 + $0x24] sm:$0xf]
  %v2831 = vld [vmem:[%s8 + $0x28] sm:$0xf]
  %v2832 = vld [vmem:[%s8 + $0x2c] sm:$0xf]
  %v2833 = vld [vmem:[%s8 + $0x30] sm:$0xf]
  %v2834 = vld [vmem:[%s8 + $0x34] sm:$0xf]
  %v2835 = vld [vmem:[%s8 + $0x38] sm:$0xf]
  %v2836 = vld [vmem:[%s8 + $0x3c] sm:$0xf]
  %v2837 = vld [vmem:[%s9] sm:$0x1]
  %v2839 = vlaneseq
  %v2840 = vshrl.u32 %v2839, 7
  %v2841 = vsub.s32 0, %v2840
  %v2842 = vrot.slane %v2837, %v2841
  %v2860 = vunpack.c.l.b16 %v2821
  %v2861 = vunpack.c.l.b16 %v2822
  %v2862 = vunpack.c.l.b16 %v2823
  %v2863 = vunpack.c.l.b16 %v2824
  %v2864 = vunpack.c.l.b16 %v2825
  %v2865 = vunpack.c.l.b16 %v2826
  %v2866 = vunpack.c.l.b16 %v2827
  %v2867 = vunpack.c.l.b16 %v2828
  %v2868 = vunpack.c.l.b16 %v2829
  %v2869 = vunpack.c.l.b16 %v2830
  %v2870 = vunpack.c.l.b16 %v2831
  %v2871 = vunpack.c.l.b16 %v2832
  %v2872 = vunpack.c.l.b16 %v2833
  %v2873 = vunpack.c.l.b16 %v2834
  %v2874 = vunpack.c.l.b16 %v2835
  %v2875 = vunpack.c.l.b16 %v2836
  %v2876 = vpack.c.b16 %v2861, %v2860
  %v2877 = vpack.c.b16 %v2863, %v2862
  %v2878 = vpack.c.b16 %v2865, %v2864
  %v2879 = vpack.c.b16 %v2867, %v2866
  %v2880 = vpack.c.b16 %v2869, %v2868
  %v2881 = vpack.c.b16 %v2871, %v2870
  %v2882 = vpack.c.b16 %v2873, %v2872
  %v2883 = vpack.c.b16 %v2875, %v2874
  %2892 = vmatprep.subr.bf16.mxu0 0
  %2893 = vmatpush1.bf16.msra.mxu0 %v2876
  %2894 = vmatprep.subr.bf16.mxu0 0
  %2895 = vmatpush1.bf16.msra.mxu0 %v2877
  %2896 = vmatprep.subr.bf16.mxu0 0
  %2897 = vmatpush1.bf16.msra.mxu0 %v2878
  %2898 = vmatprep.subr.bf16.mxu0 0
  %2899 = vmatpush1.bf16.msra.mxu0 %v2879
  %2900 = vmatprep.subr.bf16.mxu0 0
  %2901 = vmatpush1.bf16.msra.mxu0 %v2880
  %2902 = vmatprep.subr.bf16.mxu0 0
  %2903 = vmatpush1.bf16.msra.mxu0 %v2881
  %2904 = vmatprep.subr.bf16.mxu0 0
  %2905 = vmatpush1.bf16.msra.mxu0 %v2882
  %2906 = vmatprep.subr.bf16.mxu0 0
  %2907 = vmatpush1.bf16.msra.mxu0 %v2883
  %2908 = vmatprep.subr.bf16.mxu0 0
  %2909 = vmatpush1.bf16.msra.mxu0 0
  %2910 = vmatprep.subr.bf16.mxu0 0
  %2911 = vmatpush1.bf16.msra.mxu0 0
  %2912 = vmatprep.subr.bf16.mxu0 0
  %2913 = vmatpush1.bf16.msra.mxu0 0
  %2914 = vmatprep.subr.bf16.mxu0 0
  %2915 = vmatpush1.bf16.msra.mxu0 0
  %2916 = vmatprep.subr.bf16.mxu0 0
  %2917 = vmatpush1.bf16.msra.mxu0 0
  %2918 = vmatprep.subr.bf16.mxu0 0
  %2919 = vmatpush1.bf16.msra.mxu0 0
  %2920 = vmatprep.subr.bf16.mxu0 0
  %2921 = vmatpush1.bf16.msra.mxu0 0
  %2922 = vmatprep.subr.bf16.mxu0 0
  %2923 = vmatpush1.bf16.msra.mxu0 0
  %2924 = vmatprep.mubr.bf16.mxu0 0
  %2925 = vmatmul.mubr.bf16.gmra.mrb[0].mxu0 %v2820
  %v2926 = vpop.f32.mrb[0].mxu0
  %v2927 = vadd.f32 %v2842, %v2926
  %v2928 = vpop.f32.mrb[0].mxu0
  %v2929 = vpop.f32.mrb[0].mxu0
  %v2930 = vpop.f32.mrb[0].mxu0
  %2931 = vdwg.mxu0
  %2932 = vst [vmem:[%s10] sm:$0xff] %v2927
  // Predicated region
  $region42: #{deep_system_predictor.1} parent=0 // pred_check
    _
  $region43: #{deep_system_predictor.1} parent=0 // pred_check_branch
    %2934 = sbr.rel (0) target = $region45
  $region44: #{deep_system_predictor.1} parent=0 // pred_region
    _
  $region45: #{deep_system_predictor.1} parent=0 // pred_fallthru
    _
  // Predicated region
  $region46: #{deep_system_predictor.1} parent=0 // pred_check
    _
  $region47: #{deep_system_predictor.1} parent=0 // pred_check_branch
    %2936 = sbr.rel (0) target = $region49
  $region48: #{deep_system_predictor.1} parent=0 // pred_region
    _
  $region49: #{deep_system_predictor.1} parent=0 // pred_fallthru
    _

</llo_original>
